<compile_context>
chip_gen: v6e
topology: v6e:2x2x1
jax: 0.10.0
libtpu: 0.0.40
codegen_flags: <defaults>
</compile_context>

<pallas_src>
import jax
import jax.numpy as jnp
from jax.experimental import pallas as pl
from jax.experimental.pallas import tpu as pltpu

# ---- problem sizes (small, consistent with the module: d_model hard-coded to 512) ----
B = 2      # batch
LS = 16    # src sequence length
LT = 8     # title sequence length
D = 512    # d_model (similar_attn is constructed with d_model=512)
SCALE = float(D) ** 0.5
NEG = -1e30


def _trunc(x):
    # torch.div(x, scale, rounding_mode='trunc') == trunc toward zero (stays float)
    return jnp.where(x >= 0.0, jnp.floor(x), jnp.ceil(x))


def title_attention_merge_kernel(
    src_ref, tlt_ref, mask_ref,
    wq_ref, bq_ref, wk_ref, bk_ref, wl_ref, bl_ref,
    out_ref,
):
    src = src_ref[...]                 # (B, LS, D)  f32
    tlt = tlt_ref[...]                 # (B, LT, D)  f32
    valid = mask_ref[...] > 0.0        # (B, LS, 1)  bool, True = valid src position

    # ---- projections: flatten batch into M for better MXU sublane fill ----
    qt = jnp.dot(tlt.reshape(B * LT, D), wq_ref[...],
                 preferred_element_type=jnp.float32) + bq_ref[...]
    ks = jnp.dot(src.reshape(B * LS, D), wk_ref[...],
                 preferred_element_type=jnp.float32) + bk_ref[...]
    qt = _trunc(qt / SCALE)

    qt = qt.reshape(B, LT, D)
    ks = ks.reshape(B, LS, D)

    # score[b, q, k] = sum_h ks[b,q,h] * qt[b,k,h]   (no transposes, minor-dim contraction)
    score = jnp.einsum("bqh,bkh->bqk", ks, qt,
                       preferred_element_type=jnp.float32)      # (B, LS, LT)

    # key-padding mask along q; softmax over q (== torch softmax(dim=2) of (b,k,q,1))
    score = jnp.where(valid, score, NEG)
    m = jnp.max(score, axis=1, keepdims=True)                   # (B, 1, LT)
    p = jnp.exp(score - m)
    p = jnp.where(valid, p, 0.0)                                # masked q -> exactly 0
    denom = jnp.sum(p, axis=1, keepdims=True)
    denom = jnp.where(denom == 0.0, 1.0, denom)                 # fully-masked -> all-zero (torch NaN->0)
    attn = p / denom                                            # (B, LS, LT)

    # attn_similar[b,q,:] = sum_k attn[b,q,k] * tlt[b,k,:]
    sim = jnp.einsum("bqk,bkn->bqn", attn, tlt,
                     preferred_element_type=jnp.float32)        # (B, LS, D)

    merged = 0.5 * src + 0.5 * sim

    out = jnp.dot(merged.reshape(B * LS, D), wl_ref[...],
                  preferred_element_type=jnp.float32) + bl_ref[...]
    out_ref[...] = out.reshape(B, LS, D)


def title_attention_merge(src_embed, tlt_embed, src_mask, params):
    """src_embed: (B,LS,D) f32, tlt_embed: (B,LT,D) f32, src_mask: (B,LS) f32 (0 = pad)."""
    wq, bq, wk, bk, wl, bl = params
    mask3 = src_mask[:, :, None].astype(jnp.float32)            # (B, LS, 1)

    def full(shape):
        return pl.BlockSpec(shape, lambda i, _s=shape: (0,) * len(_s))

    flops = int(2 * (B * LT * D * D            # q projection
                     + B * LS * D * D          # k projection
                     + 2 * B * LS * LT * D     # score + attn-apply
                     + B * LS * D * D))        # final linear
    bytes_accessed = int(4 * (src_embed.size + tlt_embed.size + mask3.size
                              + wq.size + bq.size + wk.size + bk.size
                              + wl.size + bl.size + B * LS * D))
    cost = pl.CostEstimate(flops=flops, transcendentals=B * LS * LT,
                           bytes_accessed=bytes_accessed)

    return pl.pallas_call(
        title_attention_merge_kernel,
        out_shape=jax.ShapeDtypeStruct((B, LS, D), jnp.float32),
        grid=(1,),
        in_specs=[
            full((B, LS, D)), full((B, LT, D)), full((B, LS, 1)),
            full((D, D)), full((1, D)),        # wq, bq
            full((D, D)), full((1, D)),        # wk, bk
            full((D, D)), full((1, D)),        # wl, bl (line_layer)
        ],
        out_specs=full((B, LS, D)),
        compiler_params=pltpu.CompilerParams(dimension_semantics=("arbitrary",)),
        cost_estimate=cost,
    )(src_embed, tlt_embed, mask3, wq, bq, wk, bk, wl, bl)


def reference(src, tlt, mask, params):
    """Pure-JAX reference mirroring the PyTorch forward (eval mode)."""
    HI = jax.lax.Precision.HIGHEST
    wq, bq, wk, bk, wl, bl = params
    qt = jnp.dot(tlt, wq, precision=HI) + bq
    ks = jnp.dot(src, wk, precision=HI) + bk
    qt = _trunc(qt / SCALE)
    score = jnp.einsum("bqh,bkh->bkq", ks, qt, precision=HI)    # (B, LT, LS), score[b,k,q]
    valid = (mask > 0.0)[:, None, :]                            # (B, 1, LS)
    score = jnp.where(valid, score, -jnp.inf)
    attn = jax.nn.softmax(score, axis=-1)                       # softmax over q
    attn = jnp.where(jnp.isnan(attn), 0.0, attn)
    sim = jnp.einsum("bkq,bkn->bqn", attn, tlt, precision=HI)   # (B, LS, D)
    merged = 0.5 * src + 0.5 * sim
    return jnp.dot(merged, wl, precision=HI) + bl


if __name__ == "__main__":
    key = jax.random.PRNGKey(0)
    ks_ = jax.random.split(key, 10)

    def q64(x):
        # quantize the q-projection operands to a 1/64 grid so trunc(qt/scale) is
        # insensitive to matmul accumulation-order differences (kernel vs reference)
        return jnp.round(x * 64.0) / 64.0

    src_embed = jax.random.normal(ks_[0], (B, LS, D), jnp.float32)
    tlt_embed = q64(jax.random.normal(ks_[1], (B, LT, D), jnp.float32) * 3.0)

    wq = q64(jax.random.normal(ks_[2], (D, D), jnp.float32) * 0.5)
    bq = q64(jax.random.normal(ks_[3], (1, D), jnp.float32) * 0.5)
    wk = jax.random.normal(ks_[4], (D, D), jnp.float32) * 0.002
    bk = jax.random.normal(ks_[5], (1, D), jnp.float32) * 0.002
    wl = jax.random.normal(ks_[6], (D, D), jnp.float32) * 0.04
    bl = jax.random.normal(ks_[7], (1, D), jnp.float32) * 0.04
    params = (wq, bq, wk, bk, wl, bl)

    # src key-padding mask: batch 0 fully valid, batch 1 pads last 5 positions
    src_mask = jnp.concatenate(
        [jnp.ones((1, LS), jnp.float32),
         jnp.concatenate([jnp.ones((1, LS - 5), jnp.float32),
                          jnp.zeros((1, 5), jnp.float32)], axis=1)],
        axis=0)

    out = title_attention_merge(src_embed, tlt_embed, src_mask, params)
    out = jax.block_until_ready(out)

    ref = reference(src_embed, tlt_embed, src_mask, params)
    assert out.shape == (B, LS, D)
    max_err = float(jnp.max(jnp.abs(out - ref)))
    assert jnp.allclose(out, ref, atol=2e-4, rtol=2e-4), max_err

    print("KERNEL_OK")
</pallas_src>

<mosaic_0001>
module attributes {stable_mosaic.version = 11 : i64} {
  func.func @title_attention_merge_kernel(%arg0: i32, %arg1: memref<2x16x512xf32, #tpu.memory_space<vmem>>, %arg2: memref<2x8x512xf32, #tpu.memory_space<vmem>>, %arg3: memref<2x16x1xf32, #tpu.memory_space<vmem>>, %arg4: memref<512x512xf32, #tpu.memory_space<vmem>>, %arg5: memref<1x512xf32, #tpu.memory_space<vmem>>, %arg6: memref<512x512xf32, #tpu.memory_space<vmem>>, %arg7: memref<1x512xf32, #tpu.memory_space<vmem>>, %arg8: memref<512x512xf32, #tpu.memory_space<vmem>>, %arg9: memref<1x512xf32, #tpu.memory_space<vmem>>, %arg10: memref<2x16x512xf32, #tpu.memory_space<vmem>>) attributes {dimension_semantics = [#tpu.dimension_semantics<arbitrary>], iteration_bounds = array<i64: 1>, scalar_prefetch = 0 : i64, scratch_operands = 0 : i64, tpu.core_type = #tpu.core_type<tc>, window_params = [{pipeline_mode = #tpu.pipeline_mode<synchronous>, transform_indices = @transform_0, window_bounds = array<i64: 2, 16, 512>}, {pipeline_mode = #tpu.pipeline_mode<synchronous>, transform_indices = @transform_1, window_bounds = array<i64: 2, 8, 512>}, {pipeline_mode = #tpu.pipeline_mode<synchronous>, transform_indices = @transform_2, window_bounds = array<i64: 2, 16, 1>}, {pipeline_mode = #tpu.pipeline_mode<synchronous>, transform_indices = @transform_3, window_bounds = array<i64: 512, 512>}, {pipeline_mode = #tpu.pipeline_mode<synchronous>, transform_indices = @transform_4, window_bounds = array<i64: 1, 512>}, {pipeline_mode = #tpu.pipeline_mode<synchronous>, transform_indices = @transform_5, window_bounds = array<i64: 512, 512>}, {pipeline_mode = #tpu.pipeline_mode<synchronous>, transform_indices = @transform_6, window_bounds = array<i64: 1, 512>}, {pipeline_mode = #tpu.pipeline_mode<synchronous>, transform_indices = @transform_7, window_bounds = array<i64: 512, 512>}, {pipeline_mode = #tpu.pipeline_mode<synchronous>, transform_indices = @transform_8, window_bounds = array<i64: 1, 512>}, {pipeline_mode = #tpu.pipeline_mode<synchronous>, transform_indices = @transform_9, window_bounds = array<i64: 2, 16, 512>}]} {
    %c0 = arith.constant 0 : index
    %c0_0 = arith.constant 0 : index
    %c0_1 = arith.constant 0 : index
    %0 = vector.load %arg1[%c0, %c0_0, %c0_1] : memref<2x16x512xf32, #tpu.memory_space<vmem>>, vector<2x16x512xf32>
    %c0_2 = arith.constant 0 : index
    %c0_3 = arith.constant 0 : index
    %c0_4 = arith.constant 0 : index
    %1 = vector.load %arg2[%c0_2, %c0_3, %c0_4] : memref<2x8x512xf32, #tpu.memory_space<vmem>>, vector<2x8x512xf32>
    %c0_5 = arith.constant 0 : index
    %c0_6 = arith.constant 0 : index
    %c0_7 = arith.constant 0 : index
    %2 = vector.load %arg3[%c0_5, %c0_6, %c0_7] : memref<2x16x1xf32, #tpu.memory_space<vmem>>, vector<2x16x1xf32>
    %cst = arith.constant 0.000000e+00 : f32
    %3 = vector.broadcast %cst : f32 to vector<2x16x1xf32>
    %4 = arith.cmpf ogt, %2, %3 : vector<2x16x1xf32>
    %5 = vector.shape_cast %1 : vector<2x8x512xf32> to vector<16x512xf32>
    %c0_8 = arith.constant 0 : index
    %c0_9 = arith.constant 0 : index
    %6 = vector.load %arg4[%c0_8, %c0_9] : memref<512x512xf32, #tpu.memory_space<vmem>>, vector<512x512xf32>
    %cst_10 = arith.constant dense<0.000000e+00> : vector<16x512xf32>
    %7 = tpu.matmul %5, %6, %cst_10 {dimension_numbers = #tpu.dot_dimension_numbers<[1], [0], [0], [1], [0, 0, 1, 1], [], []>} : vector<16x512xf32>, vector<512x512xf32>, vector<16x512xf32> -> vector<16x512xf32>
    %c0_11 = arith.constant 0 : index
    %c0_12 = arith.constant 0 : index
    %8 = vector.load %arg5[%c0_11, %c0_12] : memref<1x512xf32, #tpu.memory_space<vmem>>, vector<1x512xf32>
    %9 = vector.broadcast %8 : vector<1x512xf32> to vector<16x512xf32>
    %10 = arith.addf %7, %9 : vector<16x512xf32>
    %11 = vector.shape_cast %0 : vector<2x16x512xf32> to vector<32x512xf32>
    %c0_13 = arith.constant 0 : index
    %c0_14 = arith.constant 0 : index
    %12 = vector.load %arg6[%c0_13, %c0_14] : memref<512x512xf32, #tpu.memory_space<vmem>>, vector<512x512xf32>
    %cst_15 = arith.constant dense<0.000000e+00> : vector<32x512xf32>
    %13 = tpu.matmul %11, %12, %cst_15 {dimension_numbers = #tpu.dot_dimension_numbers<[1], [0], [0], [1], [0, 0, 1, 1], [], []>} : vector<32x512xf32>, vector<512x512xf32>, vector<32x512xf32> -> vector<32x512xf32>
    %c0_16 = arith.constant 0 : index
    %c0_17 = arith.constant 0 : index
    %14 = vector.load %arg7[%c0_16, %c0_17] : memref<1x512xf32, #tpu.memory_space<vmem>>, vector<1x512xf32>
    %15 = vector.broadcast %14 : vector<1x512xf32> to vector<32x512xf32>
    %16 = arith.addf %13, %15 : vector<32x512xf32>
    %cst_18 = arith.constant 22.6274166 : f32
    %17 = vector.broadcast %cst_18 : f32 to vector<16x512xf32>
    %18 = arith.divf %10, %17 : vector<16x512xf32>
    %cst_19 = arith.constant 0.000000e+00 : f32
    %19 = vector.broadcast %cst_19 : f32 to vector<16x512xf32>
    %20 = arith.cmpf oge, %18, %19 : vector<16x512xf32>
    %21 = math.floor %18 : vector<16x512xf32>
    %22 = math.ceil %18 : vector<16x512xf32>
    %23 = arith.select %20, %21, %22 : vector<16x512xi1>, vector<16x512xf32>
    %24 = vector.shape_cast %23 : vector<16x512xf32> to vector<2x8x512xf32>
    %25 = vector.shape_cast %16 : vector<32x512xf32> to vector<2x16x512xf32>
    "tpu.trace_start"() <{level = 10 : i32, message = "bqh,bkh->bqk"}> : () -> ()
    %cst_20 = arith.constant dense<0.000000e+00> : vector<2x16x8xf32>
    %26 = tpu.matmul %25, %24, %cst_20 {dimension_numbers = #tpu.dot_dimension_numbers<[2], [2], [1], [1], [0, 0, 0, 1, 1, 1], [0], [0]>} : vector<2x16x512xf32>, vector<2x8x512xf32>, vector<2x16x8xf32> -> vector<2x16x8xf32>
    %cst_21 = arith.constant -1.000000e+30 : f32
    "tpu.trace_stop"() : () -> ()
    %27 = vector.shape_cast %4 : vector<2x16x1xi1> to vector<2x16x1xi1>
    %28 = vector.broadcast %27 : vector<2x16x1xi1> to vector<2x16x8xi1>
    %29 = vector.broadcast %cst_21 : f32 to vector<2x16x8xf32>
    %30 = arith.select %28, %26, %29 : vector<2x16x8xi1>, vector<2x16x8xf32>
    %cst_22 = arith.constant dense<0xFF800000> : vector<2x8xf32>
    %31 = vector.multi_reduction <maximumf>, %30, %cst_22 [1] : vector<2x16x8xf32> to vector<2x8xf32>
    %32 = vector.shape_cast %31 : vector<2x8xf32> to vector<2x1x8xf32>
    %33 = vector.broadcast %32 : vector<2x1x8xf32> to vector<2x16x8xf32>
    %34 = arith.subf %30, %33 : vector<2x16x8xf32>
    %35 = math.exp %34 : vector<2x16x8xf32>
    %cst_23 = arith.constant 0.000000e+00 : f32
    %36 = vector.shape_cast %4 : vector<2x16x1xi1> to vector<2x16x1xi1>
    %37 = vector.broadcast %36 : vector<2x16x1xi1> to vector<2x16x8xi1>
    %38 = vector.broadcast %cst_23 : f32 to vector<2x16x8xf32>
    %39 = arith.select %37, %35, %38 : vector<2x16x8xi1>, vector<2x16x8xf32>
    %cst_24 = arith.constant dense<0.000000e+00> : vector<2x8xf32>
    %40 = vector.multi_reduction <add>, %39, %cst_24 [1] : vector<2x16x8xf32> to vector<2x8xf32>
    %41 = vector.shape_cast %40 : vector<2x8xf32> to vector<2x1x8xf32>
    %cst_25 = arith.constant 0.000000e+00 : f32
    %42 = vector.broadcast %cst_25 : f32 to vector<2x1x8xf32>
    %43 = arith.cmpf oeq, %41, %42 : vector<2x1x8xf32>
    %cst_26 = arith.constant 1.000000e+00 : f32
    %44 = vector.broadcast %cst_26 : f32 to vector<2x1x8xf32>
    %45 = arith.select %43, %44, %41 : vector<2x1x8xi1>, vector<2x1x8xf32>
    %46 = vector.broadcast %45 : vector<2x1x8xf32> to vector<2x16x8xf32>
    %47 = arith.divf %39, %46 : vector<2x16x8xf32>
    "tpu.trace_start"() <{level = 10 : i32, message = "bqk,bkn->bqn"}> : () -> ()
    %cst_27 = arith.constant dense<0.000000e+00> : vector<2x16x512xf32>
    %48 = tpu.matmul %47, %1, %cst_27 {dimension_numbers = #tpu.dot_dimension_numbers<[2], [1], [1], [2], [0, 0, 0, 1, 1, 2], [0], [0]>} : vector<2x16x8xf32>, vector<2x8x512xf32>, vector<2x16x512xf32> -> vector<2x16x512xf32>
    "tpu.trace_stop"() : () -> ()
    %cst_28 = arith.constant 5.000000e-01 : f32
    %49 = vector.broadcast %cst_28 : f32 to vector<2x16x512xf32>
    %50 = arith.mulf %49, %0 : vector<2x16x512xf32>
    %cst_29 = arith.constant 5.000000e-01 : f32
    %51 = vector.broadcast %cst_29 : f32 to vector<2x16x512xf32>
    %52 = arith.mulf %51, %48 : vector<2x16x512xf32>
    %53 = arith.addf %50, %52 : vector<2x16x512xf32>
    %54 = vector.shape_cast %53 : vector<2x16x512xf32> to vector<32x512xf32>
    %c0_30 = arith.constant 0 : index
    %c0_31 = arith.constant 0 : index
    %55 = vector.load %arg8[%c0_30, %c0_31] : memref<512x512xf32, #tpu.memory_space<vmem>>, vector<512x512xf32>
    %cst_32 = arith.constant dense<0.000000e+00> : vector<32x512xf32>
    %56 = tpu.matmul %54, %55, %cst_32 {dimension_numbers = #tpu.dot_dimension_numbers<[1], [0], [0], [1], [0, 0, 1, 1], [], []>} : vector<32x512xf32>, vector<512x512xf32>, vector<32x512xf32> -> vector<32x512xf32>
    %c0_33 = arith.constant 0 : index
    %c0_34 = arith.constant 0 : index
    %57 = vector.load %arg9[%c0_33, %c0_34] : memref<1x512xf32, #tpu.memory_space<vmem>>, vector<1x512xf32>
    %58 = vector.broadcast %57 : vector<1x512xf32> to vector<32x512xf32>
    %59 = arith.addf %56, %58 : vector<32x512xf32>
    %60 = vector.shape_cast %59 : vector<32x512xf32> to vector<2x16x512xf32>
    %c0_35 = arith.constant 0 : index
    %c0_36 = arith.constant 0 : index
    %c0_37 = arith.constant 0 : index
    %61 = vector.load %arg10[%c0_35, %c0_36, %c0_37] : memref<2x16x512xf32, #tpu.memory_space<vmem>>, vector<2x16x512xf32>
    tpu.vector_store %arg10[%c0_35, %c0_36, %c0_37], %60 {strides = array<i32>} : memref<2x16x512xf32, #tpu.memory_space<vmem>>, vector<2x16x512xf32>,
    return
  }
  func.func @transform_0(%arg0: i32) -> (i32, i32, i32) {
    %c0_i32 = arith.constant 0 : i32
    %c0_i32_0 = arith.constant 0 : i32
    %c0_i32_1 = arith.constant 0 : i32
    %c0_i32_2 = arith.constant 0 : i32
    return %c0_i32, %c0_i32_0, %c0_i32_1 : i32, i32, i32
  }
  func.func @transform_1(%arg0: i32) -> (i32, i32, i32) {
    %c0_i32 = arith.constant 0 : i32
    %c0_i32_0 = arith.constant 0 : i32
    %c0_i32_1 = arith.constant 0 : i32
    %c0_i32_2 = arith.constant 0 : i32
    return %c0_i32, %c0_i32_0, %c0_i32_1 : i32, i32, i32
  }
  func.func @transform_2(%arg0: i32) -> (i32, i32, i32) {
    %c0_i32 = arith.constant 0 : i32
    %c0_i32_0 = arith.constant 0 : i32
    %c0_i32_1 = arith.constant 0 : i32
    %c0_i32_2 = arith.constant 0 : i32
    return %c0_i32, %c0_i32_0, %c0_i32_1 : i32, i32, i32
  }
  func.func @transform_3(%arg0: i32) -> (i32, i32) {
    %c0_i32 = arith.constant 0 : i32
    %c0_i32_0 = arith.constant 0 : i32
    %c0_i32_1 = arith.constant 0 : i32
    return %c0_i32, %c0_i32_0 : i32, i32
  }
  func.func @transform_4(%arg0: i32) -> (i32, i32) {
    %c0_i32 = arith.constant 0 : i32
    %c0_i32_0 = arith.constant 0 : i32
    %c0_i32_1 = arith.constant 0 : i32
    return %c0_i32, %c0_i32_0 : i32, i32
  }
  func.func @transform_5(%arg0: i32) -> (i32, i32) {
    %c0_i32 = arith.constant 0 : i32
    %c0_i32_0 = arith.constant 0 : i32
    %c0_i32_1 = arith.constant 0 : i32
    return %c0_i32, %c0_i32_0 : i32, i32
  }
  func.func @transform_6(%arg0: i32) -> (i32, i32) {
    %c0_i32 = arith.constant 0 : i32
    %c0_i32_0 = arith.constant 0 : i32
    %c0_i32_1 = arith.constant 0 : i32
    return %c0_i32, %c0_i32_0 : i32, i32
  }
  func.func @transform_7(%arg0: i32) -> (i32, i32) {
    %c0_i32 = arith.constant 0 : i32
    %c0_i32_0 = arith.constant 0 : i32
    %c0_i32_1 = arith.constant 0 : i32
    return %c0_i32, %c0_i32_0 : i32, i32
  }
  func.func @transform_8(%arg0: i32) -> (i32, i32) {
    %c0_i32 = arith.constant 0 : i32
    %c0_i32_0 = arith.constant 0 : i32
    %c0_i32_1 = arith.constant 0 : i32
    return %c0_i32, %c0_i32_0 : i32, i32
  }
  func.func @transform_9(%arg0: i32) -> (i32, i32, i32) {
    %c0_i32 = arith.constant 0 : i32
    %c0_i32_0 = arith.constant 0 : i32
    %c0_i32_1 = arith.constant 0 : i32
    %c0_i32_2 = arith.constant 0 : i32
    return %c0_i32, %c0_i32_0, %c0_i32_1 : i32, i32, i32
  }
}

</mosaic_0001>

<llo_original>
// kernel: tpu_custom_call.1
$region0: #{tpu_custom_call.1}
  #allocation0 [shape = 'u32[]', space=smem, size = 0x4, offset = 0x4, fixed_abs, tag = 'smem constant byte address 0x4 - core index']
  #allocation1 [shape = 'u32[144,128]{1,0:T(1,128)}', space=vmem, size = 0x12000, scoped, tag = 'internal scratch']
  %s0 = inlined_call_operand.hbm [shape: f32[2,16,512], index: 0, kind: input, shape index: {}]
  %s1 = inlined_call_operand.hbm [shape: f32[2,8,512], index: 1, kind: input, shape index: {}]
  %s2 = inlined_call_operand.vmem [shape: f32[2,16,1], index: 2, kind: input, shape index: {}]
  %s3 = inlined_call_operand.hbm [shape: f32[512,512], index: 3, kind: input, shape index: {}]
  %s4 = inlined_call_operand.vmem [shape: f32[1,512], index: 4, kind: input, shape index: {}]
  %s5 = inlined_call_operand.hbm [shape: f32[512,512], index: 5, kind: input, shape index: {}]
  %s6 = inlined_call_operand.vmem [shape: f32[1,512], index: 6, kind: input, shape index: {}]
  %s7 = inlined_call_operand.hbm [shape: f32[512,512], index: 7, kind: input, shape index: {}]
  %s8 = inlined_call_operand.vmem [shape: f32[1,512], index: 8, kind: input, shape index: {}]
  %s9 = inlined_call_operand.hbm [shape: f32[2,16,512], index: 9, kind: output, shape index: {}]
  %s10 = sld [smem:[#allocation0]]
  $region66: #{tpu_custom_call.1} parent=0
    _
  %s12 = ssub.s32 1, %s10
  %s13 = scalar_select 0, %s12, %s10
  $region1: #{tpu_custom_call.1} parent=0
    #allocation2 [shape = 'u8[65536]{0}', space=vmem, size = 0x10000, scoped, tag = 'input window, operand 0, single buffered']
    #allocation3 [shape = 's32[1]{0}', space=sflag, size = 0x4, scoped, tag = 'scoped memory for tpu_custom_call.1']
    #allocation4 [shape = 's32[1]{0}', space=sflag, size = 0x4, scoped, tag = 'scoped memory for tpu_custom_call.1']
    #allocation5 [shape = 'u8[32768]{0}', space=vmem, size = 0x8000, scoped, tag = 'input window, operand 1, single buffered']
    #allocation6 [shape = 's32[1]{0}', space=sflag, size = 0x4, scoped, tag = 'scoped memory for tpu_custom_call.1']
    #allocation7 [shape = 'u8[1048576]{0}', space=vmem, size = 0x100000, scoped, tag = 'input window, operand 3, single buffered']
    #allocation8 [shape = 'u8[1048576]{0}', space=vmem, size = 0x100000, scoped, tag = 'input window, operand 5, single buffered']
    #allocation9 [shape = 's32[1]{0}', space=sflag, size = 0x4, scoped, tag = 'scoped memory for tpu_custom_call.1']
    #allocation10 [shape = 'u8[1048576]{0}', space=vmem, size = 0x100000, scoped, tag = 'input window, operand 7, single buffered']
    #allocation11 [shape = 'u8[65536]{0}', space=vmem, size = 0x10000, scoped, tag = 'output window, operand 0, single buffered']
    %14 = vsyncpa [#allocation3], 0
    %15 = vsyncpa [#allocation6], 0
    %16 = vsyncpa [#allocation9], 0
    %17 = vsyncpa [#allocation4], 0
    // Predicated region
    $region2: #{tpu_custom_call.1} parent=1 // pred_check
      _
    $region3: #{tpu_custom_call.1} parent=1 // pred_check_branch
      %19 = sbr.rel (0) target = $region5
    $region4: #{tpu_custom_call.1} parent=1 // pred_region
      %s21 = ssub.s32 2048, 2048
      %22 = vsyncadd [#allocation3], %s21
      %s23 = sshll.u32 [#allocation2], 4
      %s24 = int_to_ptr.vmem [resolvable:$true] %s23
      %29 = dma.hbm_to_vmem [thread:$0]  %s0, 2048, %s24, [#allocation3], 512, 512, 32
    $region5: #{tpu_custom_call.1} parent=1 // pred_fallthru
      _
    // Predicated region
    $region6: #{tpu_custom_call.1} parent=1 // pred_check
      _
    $region7: #{tpu_custom_call.1} parent=1 // pred_check_branch
      %31 = sbr.rel (0) target = $region9
    $region8: #{tpu_custom_call.1} parent=1 // pred_region
      %s33 = ssub.s32 1024, 1024
      %34 = vsyncadd [#allocation6], %s33
      %s35 = sshll.u32 [#allocation5], 4
      %s36 = int_to_ptr.vmem [resolvable:$true] %s35
      %41 = dma.hbm_to_vmem [thread:$0]  %s1, 1024, %s36, [#allocation6], 512, 512, 32
    $region9: #{tpu_custom_call.1} parent=1 // pred_fallthru
      _
    // Predicated region
    $region10: #{tpu_custom_call.1} parent=1 // pred_check
      _
    $region11: #{tpu_custom_call.1} parent=1 // pred_check_branch
      %43 = sbr.rel (0) target = $region13
    $region12: #{tpu_custom_call.1} parent=1 // pred_region
      _
    $region13: #{tpu_custom_call.1} parent=1 // pred_fallthru
      _
    // Predicated region
    $region14: #{tpu_custom_call.1} parent=1 // pred_check
      _
    $region15: #{tpu_custom_call.1} parent=1 // pred_check_branch
      %45 = sbr.rel (0) target = $region17
    $region16: #{tpu_custom_call.1} parent=1 // pred_region
      %s47 = ssub.s32 32768, 32768
      %48 = vsyncadd [#allocation6], %s47
      %s49 = sshll.u32 [#allocation7], 4
      %s50 = int_to_ptr.vmem [resolvable:$true] %s49
      %55 = dma.hbm_to_vmem [thread:$0]  %s3, 32768, %s50, [#allocation6], 512, 512, 32
    $region17: #{tpu_custom_call.1} parent=1 // pred_fallthru
      _
    // Predicated region
    $region18: #{tpu_custom_call.1} parent=1 // pred_check
      _
    $region19: #{tpu_custom_call.1} parent=1 // pred_check_branch
      %57 = sbr.rel (0) target = $region21
    $region20: #{tpu_custom_call.1} parent=1 // pred_region
      _
    $region21: #{tpu_custom_call.1} parent=1 // pred_fallthru
      _
    // Predicated region
    $region22: #{tpu_custom_call.1} parent=1 // pred_check
      _
    $region23: #{tpu_custom_call.1} parent=1 // pred_check_branch
      %59 = sbr.rel (0) target = $region25
    $region24: #{tpu_custom_call.1} parent=1 // pred_region
      %s61 = ssub.s32 32768, 32768
      %62 = vsyncadd [#allocation9], %s61
      %s63 = sshll.u32 [#allocation8], 4
      %s64 = int_to_ptr.vmem [resolvable:$true] %s63
      %69 = dma.hbm_to_vmem [thread:$0]  %s5, 32768, %s64, [#allocation9], 512, 512, 32
    $region25: #{tpu_custom_call.1} parent=1 // pred_fallthru
      _
    // Predicated region
    $region26: #{tpu_custom_call.1} parent=1 // pred_check
      _
    $region27: #{tpu_custom_call.1} parent=1 // pred_check_branch
      %71 = sbr.rel (0) target = $region29
    $region28: #{tpu_custom_call.1} parent=1 // pred_region
      _
    $region29: #{tpu_custom_call.1} parent=1 // pred_fallthru
      _
    // Predicated region
    $region30: #{tpu_custom_call.1} parent=1 // pred_check
      _
    $region31: #{tpu_custom_call.1} parent=1 // pred_check_branch
      %73 = sbr.rel (0) target = $region33
    $region32: #{tpu_custom_call.1} parent=1 // pred_region
      %s75 = ssub.s32 32768, 32768
      %76 = vsyncadd [#allocation9], %s75
      %s77 = sshll.u32 [#allocation10], 4
      %s78 = int_to_ptr.vmem [resolvable:$true] %s77
      %83 = dma.hbm_to_vmem [thread:$0]  %s7, 32768, %s78, [#allocation9], 512, 512, 32
    $region33: #{tpu_custom_call.1} parent=1 // pred_fallthru
      _
    // Predicated region
    $region34: #{tpu_custom_call.1} parent=1 // pred_check
      _
    $region35: #{tpu_custom_call.1} parent=1 // pred_check_branch
      %85 = sbr.rel (0) target = $region37
    $region36: #{tpu_custom_call.1} parent=1 // pred_region
      _
    $region37: #{tpu_custom_call.1} parent=1 // pred_fallthru
      _
    // Predicated region
    $region38: #{tpu_custom_call.1} parent=1 // pred_check
      _
    $region39: #{tpu_custom_call.1} parent=1 // pred_check_branch
      %87 = sbr.rel (0) target = $region41
    $region40: #{tpu_custom_call.1} parent=1 // pred_region
      %88 = dma.done [#allocation3], 2048
    $region41: #{tpu_custom_call.1} parent=1 // pred_fallthru
      _
    // Predicated region
    $region42: #{tpu_custom_call.1} parent=1 // pred_check
      _
    $region43: #{tpu_custom_call.1} parent=1 // pred_check_branch
      %90 = sbr.rel (0) target = $region45
    $region44: #{tpu_custom_call.1} parent=1 // pred_region
      %91 = dma.done [#allocation6], 1024
    $region45: #{tpu_custom_call.1} parent=1 // pred_fallthru
      _
    // Predicated region
    $region46: #{tpu_custom_call.1} parent=1 // pred_check
      _
    $region47: #{tpu_custom_call.1} parent=1 // pred_check_branch
      %93 = sbr.rel (0) target = $region49
    $region48: #{tpu_custom_call.1} parent=1 // pred_region
      %94 = dma.done [#allocation6], 32768
    $region49: #{tpu_custom_call.1} parent=1 // pred_fallthru
      _
    // Predicated region
    $region50: #{tpu_custom_call.1} parent=1 // pred_check
      _
    $region51: #{tpu_custom_call.1} parent=1 // pred_check_branch
      %96 = sbr.rel (0) target = $region53
    $region52: #{tpu_custom_call.1} parent=1 // pred_region
      %97 = dma.done [#allocation9], 32768
    $region53: #{tpu_custom_call.1} parent=1 // pred_fallthru
      _
    // Predicated region
    $region54: #{tpu_custom_call.1} parent=1 // pred_check
      _
    $region55: #{tpu_custom_call.1} parent=1 // pred_check_branch
      %99 = sbr.rel (0) target = $region57
    $region56: #{tpu_custom_call.1} parent=1 // pred_region
      %100 = dma.done [#allocation9], 32768
    $region57: #{tpu_custom_call.1} parent=1 // pred_fallthru
      _
    %v101 = vld [vmem:[#allocation2] sm:$0xff]
    %v102 = vld [vmem:[#allocation2 + $0x8] sm:$0xff]
    %v103 = vld [vmem:[#allocation2 + $0x10] sm:$0xff]
    %v104 = vld [vmem:[#allocation2 + $0x18] sm:$0xff]
    %v105 = vld [vmem:[#allocation2 + $0x20] sm:$0xff]
    %v106 = vld [vmem:[#allocation2 + $0x28] sm:$0xff]
    %v107 = vld [vmem:[#allocation2 + $0x30] sm:$0xff]
    %v108 = vld [vmem:[#allocation2 + $0x38] sm:$0xff]
    %v109 = vld [vmem:[#allocation2 + $0x40] sm:$0xff]
    %v110 = vld [vmem:[#allocation2 + $0x48] sm:$0xff]
    %v111 = vld [vmem:[#allocation2 + $0x50] sm:$0xff]
    %v112 = vld [vmem:[#allocation2 + $0x58] sm:$0xff]
    %v113 = vld [vmem:[#allocation2 + $0x60] sm:$0xff]
    %v114 = vld [vmem:[#allocation2 + $0x68] sm:$0xff]
    %v115 = vld [vmem:[#allocation2 + $0x70] sm:$0xff]
    %v116 = vld [vmem:[#allocation2 + $0x78] sm:$0xff]
    %v117 = vld [vmem:[#allocation5] sm:$0xff]
    %v118 = vld [vmem:[#allocation5 + $0x8] sm:$0xff]
    %v119 = vld [vmem:[#allocation5 + $0x10] sm:$0xff]
    %v120 = vld [vmem:[#allocation5 + $0x18] sm:$0xff]
    %v121 = vld [vmem:[#allocation5 + $0x20] sm:$0xff]
    %v122 = vld [vmem:[#allocation5 + $0x28] sm:$0xff]
    %v123 = vld [vmem:[#allocation5 + $0x30] sm:$0xff]
    %v124 = vld [vmem:[#allocation5 + $0x38] sm:$0xff]
    %v125 = vld [vmem:[%s2] sm:$0xff]
    %v126 = vld [vmem:[%s2 + $0x8] sm:$0xff]
    %v127 = vld [vmem:[%s2 + $0x10] sm:$0xff]
    %v128 = vld [vmem:[%s2 + $0x18] sm:$0xff]
    %vm129 = vcmp.gt.f32.partialorder %v125, 0.0
    %vm130 = vcmp.gt.f32.partialorder %v126, 0.0
    %vm131 = vcmp.gt.f32.partialorder %v127, 0.0
    %vm132 = vcmp.gt.f32.partialorder %v128, 0.0
    %v133 = vld [vmem:[#allocation7] sm:$0xff]
    %v134 = vld [vmem:[#allocation7 + $0x8] sm:$0xff]
    %v135 = vld [vmem:[#allocation7 + $0x10] sm:$0xff]
    %v136 = vld [vmem:[#allocation7 + $0x18] sm:$0xff]
    %v137 = vld [vmem:[#allocation7 + $0x20] sm:$0xff]
    %v138 = vld [vmem:[#allocation7 + $0x28] sm:$0xff]
    %v139 = vld [vmem:[#allocation7 + $0x30] sm:$0xff]
    %v140 = vld [vmem:[#allocation7 + $0x38] sm:$0xff]
    %v141 = vld [vmem:[#allocation7 + $0x40] sm:$0xff]
    %v142 = vld [vmem:[#allocation7 + $0x48] sm:$0xff]
    %v143 = vld [vmem:[#allocation7 + $0x50] sm:$0xff]
    %v144 = vld [vmem:[#allocation7 + $0x58] sm:$0xff]
    %v145 = vld [vmem:[#allocation7 + $0x60] sm:$0xff]
    %v146 = vld [vmem:[#allocation7 + $0x68] sm:$0xff]
    %v147 = vld [vmem:[#allocation7 + $0x70] sm:$0xff]
    %v148 = vld [vmem:[#allocation7 + $0x78] sm:$0xff]
    %v149 = vld [vmem:[#allocation7 + $0x80] sm:$0xff]
    %v150 = vld [vmem:[#allocation7 + $0x88] sm:$0xff]
    %v151 = vld [vmem:[#allocation7 + $0x90] sm:$0xff]
    %v152 = vld [vmem:[#allocation7 + $0x98] sm:$0xff]
    %v153 = vld [vmem:[#allocation7 + $0xa0] sm:$0xff]
    %v154 = vld [vmem:[#allocation7 + $0xa8] sm:$0xff]
    %v155 = vld [vmem:[#allocation7 + $0xb0] sm:$0xff]
    %v156 = vld [vmem:[#allocation7 + $0xb8] sm:$0xff]
    %v157 = vld [vmem:[#allocation7 + $0xc0] sm:$0xff]
    %v158 = vld [vmem:[#allocation7 + $0xc8] sm:$0xff]
    %v159 = vld [vmem:[#allocation7 + $0xd0] sm:$0xff]
    %v160 = vld [vmem:[#allocation7 + $0xd8] sm:$0xff]
    %v161 = vld [vmem:[#allocation7 + $0xe0] sm:$0xff]
    %v162 = vld [vmem:[#allocation7 + $0xe8] sm:$0xff]
    %v163 = vld [vmem:[#allocation7 + $0xf0] sm:$0xff]
    %v164 = vld [vmem:[#allocation7 + $0xf8] sm:$0xff]
    %v165 = vld [vmem:[#allocation7 + $0x100] sm:$0xff]
    %v166 = vld [vmem:[#allocation7 + $0x108] sm:$0xff]
    %v167 = vld [vmem:[#allocation7 + $0x110] sm:$0xff]
    %v168 = vld [vmem:[#allocation7 + $0x118] sm:$0xff]
    %v169 = vld [vmem:[#allocation7 + $0x120] sm:$0xff]
    %v170 = vld [vmem:[#allocation7 + $0x128] sm:$0xff]
    %v171 = vld [vmem:[#allocation7 + $0x130] sm:$0xff]
    %v172 = vld [vmem:[#allocation7 + $0x138] sm:$0xff]
    %v173 = vld [vmem:[#allocation7 + $0x140] sm:$0xff]
    %v174 = vld [vmem:[#allocation7 + $0x148] sm:$0xff]
    %v175 = vld [vmem:[#allocation7 + $0x150] sm:$0xff]
    %v176 = vld [vmem:[#allocation7 + $0x158] sm:$0xff]
    %v177 = vld [vmem:[#allocation7 + $0x160] sm:$0xff]
    %v178 = vld [vmem:[#allocation7 + $0x168] sm:$0xff]
    %v179 = vld [vmem:[#allocation7 + $0x170] sm:$0xff]
    %v180 = vld [vmem:[#allocation7 + $0x178] sm:$0xff]
    %v181 = vld [vmem:[#allocation7 + $0x180] sm:$0xff]
    %v182 = vld [vmem:[#allocation7 + $0x188] sm:$0xff]
    %v183 = vld [vmem:[#allocation7 + $0x190] sm:$0xff]
    %v184 = vld [vmem:[#allocation7 + $0x198] sm:$0xff]
    %v185 = vld [vmem:[#allocation7 + $0x1a0] sm:$0xff]
    %v186 = vld [vmem:[#allocation7 + $0x1a8] sm:$0xff]
    %v187 = vld [vmem:[#allocation7 + $0x1b0] sm:$0xff]
    %v188 = vld [vmem:[#allocation7 + $0x1b8] sm:$0xff]
    %v189 = vld [vmem:[#allocation7 + $0x1c0] sm:$0xff]
    %v190 = vld [vmem:[#allocation7 + $0x1c8] sm:$0xff]
    %v191 = vld [vmem:[#allocation7 + $0x1d0] sm:$0xff]
    %v192 = vld [vmem:[#allocation7 + $0x1d8] sm:$0xff]
    %v193 = vld [vmem:[#allocation7 + $0x1e0] sm:$0xff]
    %v194 = vld [vmem:[#allocation7 + $0x1e8] sm:$0xff]
    %v195 = vld [vmem:[#allocation7 + $0x1f0] sm:$0xff]
    %v196 = vld [vmem:[#allocation7 + $0x1f8] sm:$0xff]
    %v197 = vld [vmem:[#allocation7 + $0x200] sm:$0xff]
    %v198 = vld [vmem:[#allocation7 + $0x208] sm:$0xff]
    %v199 = vld [vmem:[#allocation7 + $0x210] sm:$0xff]
    %v200 = vld [vmem:[#allocation7 + $0x218] sm:$0xff]
    %v201 = vld [vmem:[#allocation7 + $0x220] sm:$0xff]
    %v202 = vld [vmem:[#allocation7 + $0x228] sm:$0xff]
    %v203 = vld [vmem:[#allocation7 + $0x230] sm:$0xff]
    %v204 = vld [vmem:[#allocation7 + $0x238] sm:$0xff]
    %v205 = vld [vmem:[#allocation7 + $0x240] sm:$0xff]
    %v206 = vld [vmem:[#allocation7 + $0x248] sm:$0xff]
    %v207 = vld [vmem:[#allocation7 + $0x250] sm:$0xff]
    %v208 = vld [vmem:[#allocation7 + $0x258] sm:$0xff]
    %v209 = vld [vmem:[#allocation7 + $0x260] sm:$0xff]
    %v210 = vld [vmem:[#allocation7 + $0x268] sm:$0xff]
    %v211 = vld [vmem:[#allocation7 + $0x270] sm:$0xff]
    %v212 = vld [vmem:[#allocation7 + $0x278] sm:$0xff]
    %v213 = vld [vmem:[#allocation7 + $0x280] sm:$0xff]
    %v214 = vld [vmem:[#allocation7 + $0x288] sm:$0xff]
    %v215 = vld [vmem:[#allocation7 + $0x290] sm:$0xff]
    %v216 = vld [vmem:[#allocation7 + $0x298] sm:$0xff]
    %v217 = vld [vmem:[#allocation7 + $0x2a0] sm:$0xff]
    %v218 = vld [vmem:[#allocation7 + $0x2a8] sm:$0xff]
    %v219 = vld [vmem:[#allocation7 + $0x2b0] sm:$0xff]
    %v220 = vld [vmem:[#allocation7 + $0x2b8] sm:$0xff]
    %v221 = vld [vmem:[#allocation7 + $0x2c0] sm:$0xff]
    %v222 = vld [vmem:[#allocation7 + $0x2c8] sm:$0xff]
    %v223 = vld [vmem:[#allocation7 + $0x2d0] sm:$0xff]
    %v224 = vld [vmem:[#allocation7 + $0x2d8] sm:$0xff]
    %v225 = vld [vmem:[#allocation7 + $0x2e0] sm:$0xff]
    %v226 = vld [vmem:[#allocation7 + $0x2e8] sm:$0xff]
    %v227 = vld [vmem:[#allocation7 + $0x2f0] sm:$0xff]
    %v228 = vld [vmem:[#allocation7 + $0x2f8] sm:$0xff]
    %v229 = vld [vmem:[#allocation7 + $0x300] sm:$0xff]
    %v230 = vld [vmem:[#allocation7 + $0x308] sm:$0xff]
    %v231 = vld [vmem:[#allocation7 + $0x310] sm:$0xff]
    %v232 = vld [vmem:[#allocation7 + $0x318] sm:$0xff]
    %v233 = vld [vmem:[#allocation7 + $0x320] sm:$0xff]
    %v234 = vld [vmem:[#allocation7 + $0x328] sm:$0xff]
    %v235 = vld [vmem:[#allocation7 + $0x330] sm:$0xff]
    %v236 = vld [vmem:[#allocation7 + $0x338] sm:$0xff]
    %v237 = vld [vmem:[#allocation7 + $0x340] sm:$0xff]
    %v238 = vld [vmem:[#allocation7 + $0x348] sm:$0xff]
    %v239 = vld [vmem:[#allocation7 + $0x350] sm:$0xff]
    %v240 = vld [vmem:[#allocation7 + $0x358] sm:$0xff]
    %v241 = vld [vmem:[#allocation7 + $0x360] sm:$0xff]
    %v242 = vld [vmem:[#allocation7 + $0x368] sm:$0xff]
    %v243 = vld [vmem:[#allocation7 + $0x370] sm:$0xff]
    %v244 = vld [vmem:[#allocation7 + $0x378] sm:$0xff]
    %v245 = vld [vmem:[#allocation7 + $0x380] sm:$0xff]
    %v246 = vld [vmem:[#allocation7 + $0x388] sm:$0xff]
    %v247 = vld [vmem:[#allocation7 + $0x390] sm:$0xff]
    %v248 = vld [vmem:[#allocation7 + $0x398] sm:$0xff]
    %v249 = vld [vmem:[#allocation7 + $0x3a0] sm:$0xff]
    %v250 = vld [vmem:[#allocation7 + $0x3a8] sm:$0xff]
    %v251 = vld [vmem:[#allocation7 + $0x3b0] sm:$0xff]
    %v252 = vld [vmem:[#allocation7 + $0x3b8] sm:$0xff]
    %v253 = vld [vmem:[#allocation7 + $0x3c0] sm:$0xff]
    %v254 = vld [vmem:[#allocation7 + $0x3c8] sm:$0xff]
    %v255 = vld [vmem:[#allocation7 + $0x3d0] sm:$0xff]
    %v256 = vld [vmem:[#allocation7 + $0x3d8] sm:$0xff]
    %v257 = vld [vmem:[#allocation7 + $0x3e0] sm:$0xff]
    %v258 = vld [vmem:[#allocation7 + $0x3e8] sm:$0xff]
    %v259 = vld [vmem:[#allocation7 + $0x3f0] sm:$0xff]
    %v260 = vld [vmem:[#allocation7 + $0x3f8] sm:$0xff]
    %v261 = vld [vmem:[#allocation7 + $0x400] sm:$0xff]
    %v262 = vld [vmem:[#allocation7 + $0x408] sm:$0xff]
    %v263 = vld [vmem:[#allocation7 + $0x410] sm:$0xff]
    %v264 = vld [vmem:[#allocation7 + $0x418] sm:$0xff]
    %v265 = vld [vmem:[#allocation7 + $0x420] sm:$0xff]
    %v266 = vld [vmem:[#allocation7 + $0x428] sm:$0xff]
    %v267 = vld [vmem:[#allocation7 + $0x430] sm:$0xff]
    %v268 = vld [vmem:[#allocation7 + $0x438] sm:$0xff]
    %v269 = vld [vmem:[#allocation7 + $0x440] sm:$0xff]
    %v270 = vld [vmem:[#allocation7 + $0x448] sm:$0xff]
    %v271 = vld [vmem:[#allocation7 + $0x450] sm:$0xff]
    %v272 = vld [vmem:[#allocation7 + $0x458] sm:$0xff]
    %v273 = vld [vmem:[#allocation7 + $0x460] sm:$0xff]
    %v274 = vld [vmem:[#allocation7 + $0x468] sm:$0xff]
    %v275 = vld [vmem:[#allocation7 + $0x470] sm:$0xff]
    %v276 = vld [vmem:[#allocation7 + $0x478] sm:$0xff]
    %v277 = vld [vmem:[#allocation7 + $0x480] sm:$0xff]
    %v278 = vld [vmem:[#allocation7 + $0x488] sm:$0xff]
    %v279 = vld [vmem:[#allocation7 + $0x490] sm:$0xff]
    %v280 = vld [vmem:[#allocation7 + $0x498] sm:$0xff]
    %v281 = vld [vmem:[#allocation7 + $0x4a0] sm:$0xff]
    %v282 = vld [vmem:[#allocation7 + $0x4a8] sm:$0xff]
    %v283 = vld [vmem:[#allocation7 + $0x4b0] sm:$0xff]
    %v284 = vld [vmem:[#allocation7 + $0x4b8] sm:$0xff]
    %v285 = vld [vmem:[#allocation7 + $0x4c0] sm:$0xff]
    %v286 = vld [vmem:[#allocation7 + $0x4c8] sm:$0xff]
    %v287 = vld [vmem:[#allocation7 + $0x4d0] sm:$0xff]
    %v288 = vld [vmem:[#allocation7 + $0x4d8] sm:$0xff]
    %v289 = vld [vmem:[#allocation7 + $0x4e0] sm:$0xff]
    %v290 = vld [vmem:[#allocation7 + $0x4e8] sm:$0xff]
    %v291 = vld [vmem:[#allocation7 + $0x4f0] sm:$0xff]
    %v292 = vld [vmem:[#allocation7 + $0x4f8] sm:$0xff]
    %v293 = vld [vmem:[#allocation7 + $0x500] sm:$0xff]
    %v294 = vld [vmem:[#allocation7 + $0x508] sm:$0xff]
    %v295 = vld [vmem:[#allocation7 + $0x510] sm:$0xff]
    %v296 = vld [vmem:[#allocation7 + $0x518] sm:$0xff]
    %v297 = vld [vmem:[#allocation7 + $0x520] sm:$0xff]
    %v298 = vld [vmem:[#allocation7 + $0x528] sm:$0xff]
    %v299 = vld [vmem:[#allocation7 + $0x530] sm:$0xff]
    %v300 = vld [vmem:[#allocation7 + $0x538] sm:$0xff]
    %v301 = vld [vmem:[#allocation7 + $0x540] sm:$0xff]
    %v302 = vld [vmem:[#allocation7 + $0x548] sm:$0xff]
    %v303 = vld [vmem:[#allocation7 + $0x550] sm:$0xff]
    %v304 = vld [vmem:[#allocation7 + $0x558] sm:$0xff]
    %v305 = vld [vmem:[#allocation7 + $0x560] sm:$0xff]
    %v306 = vld [vmem:[#allocation7 + $0x568] sm:$0xff]
    %v307 = vld [vmem:[#allocation7 + $0x570] sm:$0xff]
    %v308 = vld [vmem:[#allocation7 + $0x578] sm:$0xff]
    %v309 = vld [vmem:[#allocation7 + $0x580] sm:$0xff]
    %v310 = vld [vmem:[#allocation7 + $0x588] sm:$0xff]
    %v311 = vld [vmem:[#allocation7 + $0x590] sm:$0xff]
    %v312 = vld [vmem:[#allocation7 + $0x598] sm:$0xff]
    %v313 = vld [vmem:[#allocation7 + $0x5a0] sm:$0xff]
    %v314 = vld [vmem:[#allocation7 + $0x5a8] sm:$0xff]
    %v315 = vld [vmem:[#allocation7 + $0x5b0] sm:$0xff]
    %v316 = vld [vmem:[#allocation7 + $0x5b8] sm:$0xff]
    %v317 = vld [vmem:[#allocation7 + $0x5c0] sm:$0xff]
    %v318 = vld [vmem:[#allocation7 + $0x5c8] sm:$0xff]
    %v319 = vld [vmem:[#allocation7 + $0x5d0] sm:$0xff]
    %v320 = vld [vmem:[#allocation7 + $0x5d8] sm:$0xff]
    %v321 = vld [vmem:[#allocation7 + $0x5e0] sm:$0xff]
    %v322 = vld [vmem:[#allocation7 + $0x5e8] sm:$0xff]
    %v323 = vld [vmem:[#allocation7 + $0x5f0] sm:$0xff]
    %v324 = vld [vmem:[#allocation7 + $0x5f8] sm:$0xff]
    %v325 = vld [vmem:[#allocation7 + $0x600] sm:$0xff]
    %v326 = vld [vmem:[#allocation7 + $0x608] sm:$0xff]
    %v327 = vld [vmem:[#allocation7 + $0x610] sm:$0xff]
    %v328 = vld [vmem:[#allocation7 + $0x618] sm:$0xff]
    %v329 = vld [vmem:[#allocation7 + $0x620] sm:$0xff]
    %v330 = vld [vmem:[#allocation7 + $0x628] sm:$0xff]
    %v331 = vld [vmem:[#allocation7 + $0x630] sm:$0xff]
    %v332 = vld [vmem:[#allocation7 + $0x638] sm:$0xff]
    %v333 = vld [vmem:[#allocation7 + $0x640] sm:$0xff]
    %v334 = vld [vmem:[#allocation7 + $0x648] sm:$0xff]
    %v335 = vld [vmem:[#allocation7 + $0x650] sm:$0xff]
    %v336 = vld [vmem:[#allocation7 + $0x658] sm:$0xff]
    %v337 = vld [vmem:[#allocation7 + $0x660] sm:$0xff]
    %v338 = vld [vmem:[#allocation7 + $0x668] sm:$0xff]
    %v339 = vld [vmem:[#allocation7 + $0x670] sm:$0xff]
    %v340 = vld [vmem:[#allocation7 + $0x678] sm:$0xff]
    %v341 = vld [vmem:[#allocation7 + $0x680] sm:$0xff]
    %v342 = vld [vmem:[#allocation7 + $0x688] sm:$0xff]
    %v343 = vld [vmem:[#allocation7 + $0x690] sm:$0xff]
    %v344 = vld [vmem:[#allocation7 + $0x698] sm:$0xff]
    %v345 = vld [vmem:[#allocation7 + $0x6a0] sm:$0xff]
    %v346 = vld [vmem:[#allocation7 + $0x6a8] sm:$0xff]
    %v347 = vld [vmem:[#allocation7 + $0x6b0] sm:$0xff]
    %v348 = vld [vmem:[#allocation7 + $0x6b8] sm:$0xff]
    %v349 = vld [vmem:[#allocation7 + $0x6c0] sm:$0xff]
    %v350 = vld [vmem:[#allocation7 + $0x6c8] sm:$0xff]
    %v351 = vld [vmem:[#allocation7 + $0x6d0] sm:$0xff]
    %v352 = vld [vmem:[#allocation7 + $0x6d8] sm:$0xff]
    %v353 = vld [vmem:[#allocation7 + $0x6e0] sm:$0xff]
    %v354 = vld [vmem:[#allocation7 + $0x6e8] sm:$0xff]
    %v355 = vld [vmem:[#allocation7 + $0x6f0] sm:$0xff]
    %v356 = vld [vmem:[#allocation7 + $0x6f8] sm:$0xff]
    %v357 = vld [vmem:[#allocation7 + $0x700] sm:$0xff]
    %v358 = vld [vmem:[#allocation7 + $0x708] sm:$0xff]
    %v359 = vld [vmem:[#allocation7 + $0x710] sm:$0xff]
    %v360 = vld [vmem:[#allocation7 + $0x718] sm:$0xff]
    %v361 = vld [vmem:[#allocation7 + $0x720] sm:$0xff]
    %v362 = vld [vmem:[#allocation7 + $0x728] sm:$0xff]
    %v363 = vld [vmem:[#allocation7 + $0x730] sm:$0xff]
    %v364 = vld [vmem:[#allocation7 + $0x738] sm:$0xff]
    %v365 = vld [vmem:[#allocation7 + $0x740] sm:$0xff]
    %v366 = vld [vmem:[#allocation7 + $0x748] sm:$0xff]
    %v367 = vld [vmem:[#allocation7 + $0x750] sm:$0xff]
    %v368 = vld [vmem:[#allocation7 + $0x758] sm:$0xff]
    %v369 = vld [vmem:[#allocation7 + $0x760] sm:$0xff]
    %v370 = vld [vmem:[#allocation7 + $0x768] sm:$0xff]
    %v371 = vld [vmem:[#allocation7 + $0x770] sm:$0xff]
    %v372 = vld [vmem:[#allocation7 + $0x778] sm:$0xff]
    %v373 = vld [vmem:[#allocation7 + $0x780] sm:$0xff]
    %v374 = vld [vmem:[#allocation7 + $0x788] sm:$0xff]
    %v375 = vld [vmem:[#allocation7 + $0x790] sm:$0xff]
    %v376 = vld [vmem:[#allocation7 + $0x798] sm:$0xff]
    %v377 = vld [vmem:[#allocation7 + $0x7a0] sm:$0xff]
    %v378 = vld [vmem:[#allocation7 + $0x7a8] sm:$0xff]
    %v379 = vld [vmem:[#allocation7 + $0x7b0] sm:$0xff]
    %v380 = vld [vmem:[#allocation7 + $0x7b8] sm:$0xff]
    %v381 = vld [vmem:[#allocation7 + $0x7c0] sm:$0xff]
    %v382 = vld [vmem:[#allocation7 + $0x7c8] sm:$0xff]
    %v383 = vld [vmem:[#allocation7 + $0x7d0] sm:$0xff]
    %v384 = vld [vmem:[#allocation7 + $0x7d8] sm:$0xff]
    %v385 = vld [vmem:[#allocation7 + $0x7e0] sm:$0xff]
    %v386 = vld [vmem:[#allocation7 + $0x7e8] sm:$0xff]
    %v387 = vld [vmem:[#allocation7 + $0x7f0] sm:$0xff]
    %v388 = vld [vmem:[#allocation7 + $0x7f8] sm:$0xff]
    %v389 = vld [vmem:[%s4] sm:$0xf]
    %v391 = vlaneseq
    %v392 = vshrl.u32 %v391, 7
    %v393 = vsub.s32 0, %v392
    %v394 = vrot.slane %v389, %v393
    %v395 = vlaneseq
    %v396 = vshrl.u32 %v395, 7
    %v397 = vsub.s32 1, %v396
    %v398 = vrot.slane %v389, %v397
    %v399 = vlaneseq
    %v400 = vshrl.u32 %v399, 7
    %v401 = vsub.s32 2, %v400
    %v402 = vrot.slane %v389, %v401
    %v403 = vlaneseq
    %v404 = vshrl.u32 %v403, 7
    %v405 = vsub.s32 3, %v404
    %v406 = vrot.slane %v389, %v405
    %411 = vmatprep.subr.mxu0 %v194
    %412 = vmatpush1.msra.mxu0 %v193
    %413 = vmatprep.subr.mxu0 %v190
    %414 = vmatpush1.msra.mxu0 %v189
    %415 = vmatprep.subr.mxu0 %v186
    %416 = vmatpush1.msra.mxu0 %v185
    %417 = vmatprep.subr.mxu0 %v182
    %418 = vmatpush1.msra.mxu0 %v181
    %419 = vmatprep.subr.mxu0 %v178
    %420 = vmatpush1.msra.mxu0 %v177
    %421 = vmatprep.subr.mxu0 %v174
    %422 = vmatpush1.msra.mxu0 %v173
    %423 = vmatprep.subr.mxu0 %v170
    %424 = vmatpush1.msra.mxu0 %v169
    %425 = vmatprep.subr.mxu0 %v166
    %426 = vmatpush1.msra.mxu0 %v165
    %427 = vmatprep.subr.mxu0 %v162
    %428 = vmatpush1.msra.mxu0 %v161
    %429 = vmatprep.subr.mxu0 %v158
    %430 = vmatpush1.msra.mxu0 %v157
    %431 = vmatprep.subr.mxu0 %v154
    %432 = vmatpush1.msra.mxu0 %v153
    %433 = vmatprep.subr.mxu0 %v150
    %434 = vmatpush1.msra.mxu0 %v149
    %435 = vmatprep.subr.mxu0 %v146
    %436 = vmatpush1.msra.mxu0 %v145
    %437 = vmatprep.subr.mxu0 %v142
    %438 = vmatpush1.msra.mxu0 %v141
    %439 = vmatprep.subr.mxu0 %v138
    %440 = vmatpush1.msra.mxu0 %v137
    %441 = vmatprep.subr.mxu0 %v134
    %442 = vmatpush1.msra.mxu0 %v133
    %443 = vmatprep.subr.mxu0 %v258
    %444 = vmatpush2.msra.mxu0 %v257
    %445 = vmatprep.subr.mxu0 %v254
    %446 = vmatpush2.msra.mxu0 %v253
    %447 = vmatprep.subr.mxu0 %v250
    %448 = vmatpush2.msra.mxu0 %v249
    %449 = vmatprep.subr.mxu0 %v246
    %450 = vmatpush2.msra.mxu0 %v245
    %451 = vmatprep.subr.mxu0 %v242
    %452 = vmatpush2.msra.mxu0 %v241
    %453 = vmatprep.subr.mxu0 %v238
    %454 = vmatpush2.msra.mxu0 %v237
    %455 = vmatprep.subr.mxu0 %v234
    %456 = vmatpush2.msra.mxu0 %v233
    %457 = vmatprep.subr.mxu0 %v230
    %458 = vmatpush2.msra.mxu0 %v229
    %459 = vmatprep.subr.mxu0 %v226
    %460 = vmatpush2.msra.mxu0 %v225
    %461 = vmatprep.subr.mxu0 %v222
    %462 = vmatpush2.msra.mxu0 %v221
    %463 = vmatprep.subr.mxu0 %v218
    %464 = vmatpush2.msra.mxu0 %v217
    %465 = vmatprep.subr.mxu0 %v214
    %466 = vmatpush2.msra.mxu0 %v213
    %467 = vmatprep.subr.mxu0 %v210
    %468 = vmatpush2.msra.mxu0 %v209
    %469 = vmatprep.subr.mxu0 %v206
    %470 = vmatpush2.msra.mxu0 %v205
    %471 = vmatprep.subr.mxu0 %v202
    %472 = vmatpush2.msra.mxu0 %v201
    %473 = vmatprep.subr.mxu0 %v198
    %474 = vmatpush2.msra.mxu0 %v197
    %475 = vmatprep.mubr.f32.mxu0 %v118
    %476 = vmatmul.mubr.f32.gmra.mxu0 %v117
    %v477 = vpop.f32.mrf.mxu0
    %v478 = vadd.f32 %v394, %v477
    %v479 = vpop.f32.mrf.mxu0
    %v480 = vadd.f32 %v398, %v479
    %481 = vmatprep.mubr.f32.mxu0 %v122
    %482 = vmatmul.mubr.f32.gmra.mxu0 %v121
    %v483 = vpop.f32.mrf.mxu0
    %v484 = vadd.f32 %v394, %v483
    %v485 = vpop.f32.mrf.mxu0
    %v486 = vadd.f32 %v398, %v485
    %487 = vdwg.mxu0
    %488 = vmatprep.subr.mxu0 %v322
    %489 = vmatpush1.msra.mxu0 %v321
    %490 = vmatprep.subr.mxu0 %v318
    %491 = vmatpush1.msra.mxu0 %v317
    %492 = vmatprep.subr.mxu0 %v314
    %493 = vmatpush1.msra.mxu0 %v313
    %494 = vmatprep.subr.mxu0 %v310
    %495 = vmatpush1.msra.mxu0 %v309
    %496 = vmatprep.subr.mxu0 %v306
    %497 = vmatpush1.msra.mxu0 %v305
    %498 = vmatprep.subr.mxu0 %v302
    %499 = vmatpush1.msra.mxu0 %v301
    %500 = vmatprep.subr.mxu0 %v298
    %501 = vmatpush1.msra.mxu0 %v297
    %502 = vmatprep.subr.mxu0 %v294
    %503 = vmatpush1.msra.mxu0 %v293
    %504 = vmatprep.subr.mxu0 %v290
    %505 = vmatpush1.msra.mxu0 %v289
    %506 = vmatprep.subr.mxu0 %v286
    %507 = vmatpush1.msra.mxu0 %v285
    %508 = vmatprep.subr.mxu0 %v282
    %509 = vmatpush1.msra.mxu0 %v281
    %510 = vmatprep.subr.mxu0 %v278
    %511 = vmatpush1.msra.mxu0 %v277
    %512 = vmatprep.subr.mxu0 %v274
    %513 = vmatpush1.msra.mxu0 %v273
    %514 = vmatprep.subr.mxu0 %v270
    %515 = vmatpush1.msra.mxu0 %v269
    %516 = vmatprep.subr.mxu0 %v266
    %517 = vmatpush1.msra.mxu0 %v265
    %518 = vmatprep.subr.mxu0 %v262
    %519 = vmatpush1.msra.mxu0 %v261
    %520 = vmatprep.subr.mxu0 %v386
    %521 = vmatpush2.msra.mxu0 %v385
    %522 = vmatprep.subr.mxu0 %v382
    %523 = vmatpush2.msra.mxu0 %v381
    %524 = vmatprep.subr.mxu0 %v378
    %525 = vmatpush2.msra.mxu0 %v377
    %526 = vmatprep.subr.mxu0 %v374
    %527 = vmatpush2.msra.mxu0 %v373
    %528 = vmatprep.subr.mxu0 %v370
    %529 = vmatpush2.msra.mxu0 %v369
    %530 = vmatprep.subr.mxu0 %v366
    %531 = vmatpush2.msra.mxu0 %v365
    %532 = vmatprep.subr.mxu0 %v362
    %533 = vmatpush2.msra.mxu0 %v361
    %534 = vmatprep.subr.mxu0 %v358
    %535 = vmatpush2.msra.mxu0 %v357
    %536 = vmatprep.subr.mxu0 %v354
    %537 = vmatpush2.msra.mxu0 %v353
    %538 = vmatprep.subr.mxu0 %v350
    %539 = vmatpush2.msra.mxu0 %v349
    %540 = vmatprep.subr.mxu0 %v346
    %541 = vmatpush2.msra.mxu0 %v345
    %542 = vmatprep.subr.mxu0 %v342
    %543 = vmatpush2.msra.mxu0 %v341
    %544 = vmatprep.subr.mxu0 %v338
    %545 = vmatpush2.msra.mxu0 %v337
    %546 = vmatprep.subr.mxu0 %v334
    %547 = vmatpush2.msra.mxu0 %v333
    %548 = vmatprep.subr.mxu0 %v330
    %549 = vmatpush2.msra.mxu0 %v329
    %550 = vmatprep.subr.mxu0 %v326
    %551 = vmatpush2.msra.mxu0 %v325
    %552 = vmatprep.mubr.f32.mxu0 %v120
    %553 = vmatmul.mubr.f32.gmra.mxu0 %v119
    %v554 = vpop.f32.mrf.mxu0
    %v555 = vadd.f32 %v478, %v554
    %v556 = vpop.f32.mrf.mxu0
    %v557 = vadd.f32 %v480, %v556
    %558 = vmatprep.mubr.f32.mxu0 %v124
    %559 = vmatmul.mubr.f32.gmra.mxu0 %v123
    %v560 = vpop.f32.mrf.mxu0
    %v561 = vadd.f32 %v484, %v560
    %v562 = vpop.f32.mrf.mxu0
    %v563 = vadd.f32 %v486, %v562
    %564 = vdwg.mxu0
    %565 = vmatprep.subr.mxu0 %v196
    %566 = vmatpush1.msra.mxu0 %v195
    %567 = vmatprep.subr.mxu0 %v192
    %568 = vmatpush1.msra.mxu0 %v191
    %569 = vmatprep.subr.mxu0 %v188
    %570 = vmatpush1.msra.mxu0 %v187
    %571 = vmatprep.subr.mxu0 %v184
    %572 = vmatpush1.msra.mxu0 %v183
    %573 = vmatprep.subr.mxu0 %v180
    %574 = vmatpush1.msra.mxu0 %v179
    %575 = vmatprep.subr.mxu0 %v176
    %576 = vmatpush1.msra.mxu0 %v175
    %577 = vmatprep.subr.mxu0 %v172
    %578 = vmatpush1.msra.mxu0 %v171
    %579 = vmatprep.subr.mxu0 %v168
    %580 = vmatpush1.msra.mxu0 %v167
    %581 = vmatprep.subr.mxu0 %v164
    %582 = vmatpush1.msra.mxu0 %v163
    %583 = vmatprep.subr.mxu0 %v160
    %584 = vmatpush1.msra.mxu0 %v159
    %585 = vmatprep.subr.mxu0 %v156
    %586 = vmatpush1.msra.mxu0 %v155
    %587 = vmatprep.subr.mxu0 %v152
    %588 = vmatpush1.msra.mxu0 %v151
    %589 = vmatprep.subr.mxu0 %v148
    %590 = vmatpush1.msra.mxu0 %v147
    %591 = vmatprep.subr.mxu0 %v144
    %592 = vmatpush1.msra.mxu0 %v143
    %593 = vmatprep.subr.mxu0 %v140
    %594 = vmatpush1.msra.mxu0 %v139
    %595 = vmatprep.subr.mxu0 %v136
    %596 = vmatpush1.msra.mxu0 %v135
    %597 = vmatprep.subr.mxu0 %v260
    %598 = vmatpush2.msra.mxu0 %v259
    %599 = vmatprep.subr.mxu0 %v256
    %600 = vmatpush2.msra.mxu0 %v255
    %601 = vmatprep.subr.mxu0 %v252
    %602 = vmatpush2.msra.mxu0 %v251
    %603 = vmatprep.subr.mxu0 %v248
    %604 = vmatpush2.msra.mxu0 %v247
    %605 = vmatprep.subr.mxu0 %v244
    %606 = vmatpush2.msra.mxu0 %v243
    %607 = vmatprep.subr.mxu0 %v240
    %608 = vmatpush2.msra.mxu0 %v239
    %609 = vmatprep.subr.mxu0 %v236
    %610 = vmatpush2.msra.mxu0 %v235
    %611 = vmatprep.subr.mxu0 %v232
    %612 = vmatpush2.msra.mxu0 %v231
    %613 = vmatprep.subr.mxu0 %v228
    %614 = vmatpush2.msra.mxu0 %v227
    %615 = vmatprep.subr.mxu0 %v224
    %616 = vmatpush2.msra.mxu0 %v223
    %617 = vmatprep.subr.mxu0 %v220
    %618 = vmatpush2.msra.mxu0 %v219
    %619 = vmatprep.subr.mxu0 %v216
    %620 = vmatpush2.msra.mxu0 %v215
    %621 = vmatprep.subr.mxu0 %v212
    %622 = vmatpush2.msra.mxu0 %v211
    %623 = vmatprep.subr.mxu0 %v208
    %624 = vmatpush2.msra.mxu0 %v207
    %625 = vmatprep.subr.mxu0 %v204
    %626 = vmatpush2.msra.mxu0 %v203
    %627 = vmatprep.subr.mxu0 %v200
    %628 = vmatpush2.msra.mxu0 %v199
    %629 = vmatprep.mubr.f32.mxu0 %v118
    %630 = vmatmul.mubr.f32.gmra.mxu0 %v117
    %v631 = vpop.f32.mrf.mxu0
    %v632 = vadd.f32 %v402, %v631
    %v633 = vpop.f32.mrf.mxu0
    %v634 = vadd.f32 %v406, %v633
    %635 = vmatprep.mubr.f32.mxu0 %v122
    %636 = vmatmul.mubr.f32.gmra.mxu0 %v121
    %v637 = vpop.f32.mrf.mxu0
    %v638 = vadd.f32 %v402, %v637
    %v639 = vpop.f32.mrf.mxu0
    %v640 = vadd.f32 %v406, %v639
    %641 = vdwg.mxu0
    %642 = vmatprep.subr.mxu0 %v324
    %643 = vmatpush1.msra.mxu0 %v323
    %644 = vmatprep.subr.mxu0 %v320
    %645 = vmatpush1.msra.mxu0 %v319
    %646 = vmatprep.subr.mxu0 %v316
    %647 = vmatpush1.msra.mxu0 %v315
    %648 = vmatprep.subr.mxu0 %v312
    %649 = vmatpush1.msra.mxu0 %v311
    %650 = vmatprep.subr.mxu0 %v308
    %651 = vmatpush1.msra.mxu0 %v307
    %652 = vmatprep.subr.mxu0 %v304
    %653 = vmatpush1.msra.mxu0 %v303
    %654 = vmatprep.subr.mxu0 %v300
    %655 = vmatpush1.msra.mxu0 %v299
    %656 = vmatprep.subr.mxu0 %v296
    %657 = vmatpush1.msra.mxu0 %v295
    %658 = vmatprep.subr.mxu0 %v292
    %659 = vmatpush1.msra.mxu0 %v291
    %660 = vmatprep.subr.mxu0 %v288
    %661 = vmatpush1.msra.mxu0 %v287
    %662 = vmatprep.subr.mxu0 %v284
    %663 = vmatpush1.msra.mxu0 %v283
    %664 = vmatprep.subr.mxu0 %v280
    %665 = vmatpush1.msra.mxu0 %v279
    %666 = vmatprep.subr.mxu0 %v276
    %667 = vmatpush1.msra.mxu0 %v275
    %668 = vmatprep.subr.mxu0 %v272
    %669 = vmatpush1.msra.mxu0 %v271
    %670 = vmatprep.subr.mxu0 %v268
    %671 = vmatpush1.msra.mxu0 %v267
    %672 = vmatprep.subr.mxu0 %v264
    %673 = vmatpush1.msra.mxu0 %v263
    %674 = vmatprep.subr.mxu0 %v388
    %675 = vmatpush2.msra.mxu0 %v387
    %676 = vmatprep.subr.mxu0 %v384
    %677 = vmatpush2.msra.mxu0 %v383
    %678 = vmatprep.subr.mxu0 %v380
    %679 = vmatpush2.msra.mxu0 %v379
    %680 = vmatprep.subr.mxu0 %v376
    %681 = vmatpush2.msra.mxu0 %v375
    %682 = vmatprep.subr.mxu0 %v372
    %683 = vmatpush2.msra.mxu0 %v371
    %684 = vmatprep.subr.mxu0 %v368
    %685 = vmatpush2.msra.mxu0 %v367
    %686 = vmatprep.subr.mxu0 %v364
    %687 = vmatpush2.msra.mxu0 %v363
    %688 = vmatprep.subr.mxu0 %v360
    %689 = vmatpush2.msra.mxu0 %v359
    %690 = vmatprep.subr.mxu0 %v356
    %691 = vmatpush2.msra.mxu0 %v355
    %692 = vmatprep.subr.mxu0 %v352
    %693 = vmatpush2.msra.mxu0 %v351
    %694 = vmatprep.subr.mxu0 %v348
    %695 = vmatpush2.msra.mxu0 %v347
    %696 = vmatprep.subr.mxu0 %v344
    %697 = vmatpush2.msra.mxu0 %v343
    %698 = vmatprep.subr.mxu0 %v340
    %699 = vmatpush2.msra.mxu0 %v339
    %700 = vmatprep.subr.mxu0 %v336
    %701 = vmatpush2.msra.mxu0 %v335
    %702 = vmatprep.subr.mxu0 %v332
    %703 = vmatpush2.msra.mxu0 %v331
    %704 = vmatprep.subr.mxu0 %v328
    %705 = vmatpush2.msra.mxu0 %v327
    %706 = vmatprep.mubr.f32.mxu0 %v120
    %707 = vmatmul.mubr.f32.gmra.mxu0 %v119
    %v708 = vpop.f32.mrf.mxu0
    %v709 = vadd.f32 %v632, %v708
    %v710 = vpop.f32.mrf.mxu0
    %v711 = vadd.f32 %v634, %v710
    %712 = vmatprep.mubr.f32.mxu0 %v124
    %713 = vmatmul.mubr.f32.gmra.mxu0 %v123
    %v714 = vpop.f32.mrf.mxu0
    %v715 = vadd.f32 %v638, %v714
    %v716 = vpop.f32.mrf.mxu0
    %v717 = vadd.f32 %v640, %v716
    %718 = vdwg.mxu0
    %v719 = vld [vmem:[#allocation8] sm:$0xff]
    %v720 = vld [vmem:[#allocation8 + $0x8] sm:$0xff]
    %v721 = vld [vmem:[#allocation8 + $0x10] sm:$0xff]
    %v722 = vld [vmem:[#allocation8 + $0x18] sm:$0xff]
    %v723 = vld [vmem:[#allocation8 + $0x20] sm:$0xff]
    %v724 = vld [vmem:[#allocation8 + $0x28] sm:$0xff]
    %v725 = vld [vmem:[#allocation8 + $0x30] sm:$0xff]
    %v726 = vld [vmem:[#allocation8 + $0x38] sm:$0xff]
    %v727 = vld [vmem:[#allocation8 + $0x40] sm:$0xff]
    %v728 = vld [vmem:[#allocation8 + $0x48] sm:$0xff]
    %v729 = vld [vmem:[#allocation8 + $0x50] sm:$0xff]
    %v730 = vld [vmem:[#allocation8 + $0x58] sm:$0xff]
    %v731 = vld [vmem:[#allocation8 + $0x60] sm:$0xff]
    %v732 = vld [vmem:[#allocation8 + $0x68] sm:$0xff]
    %v733 = vld [vmem:[#allocation8 + $0x70] sm:$0xff]
    %v734 = vld [vmem:[#allocation8 + $0x78] sm:$0xff]
    %v735 = vld [vmem:[#allocation8 + $0x80] sm:$0xff]
    %v736 = vld [vmem:[#allocation8 + $0x88] sm:$0xff]
    %v737 = vld [vmem:[#allocation8 + $0x90] sm:$0xff]
    %v738 = vld [vmem:[#allocation8 + $0x98] sm:$0xff]
    %v739 = vld [vmem:[#allocation8 + $0xa0] sm:$0xff]
    %v740 = vld [vmem:[#allocation8 + $0xa8] sm:$0xff]
    %v741 = vld [vmem:[#allocation8 + $0xb0] sm:$0xff]
    %v742 = vld [vmem:[#allocation8 + $0xb8] sm:$0xff]
    %v743 = vld [vmem:[#allocation8 + $0xc0] sm:$0xff]
    %v744 = vld [vmem:[#allocation8 + $0xc8] sm:$0xff]
    %v745 = vld [vmem:[#allocation8 + $0xd0] sm:$0xff]
    %v746 = vld [vmem:[#allocation8 + $0xd8] sm:$0xff]
    %v747 = vld [vmem:[#allocation8 + $0xe0] sm:$0xff]
    %v748 = vld [vmem:[#allocation8 + $0xe8] sm:$0xff]
    %v749 = vld [vmem:[#allocation8 + $0xf0] sm:$0xff]
    %v750 = vld [vmem:[#allocation8 + $0xf8] sm:$0xff]
    %v751 = vld [vmem:[#allocation8 + $0x100] sm:$0xff]
    %v752 = vld [vmem:[#allocation8 + $0x108] sm:$0xff]
    %v753 = vld [vmem:[#allocation8 + $0x110] sm:$0xff]
    %v754 = vld [vmem:[#allocation8 + $0x118] sm:$0xff]
    %v755 = vld [vmem:[#allocation8 + $0x120] sm:$0xff]
    %v756 = vld [vmem:[#allocation8 + $0x128] sm:$0xff]
    %v757 = vld [vmem:[#allocation8 + $0x130] sm:$0xff]
    %v758 = vld [vmem:[#allocation8 + $0x138] sm:$0xff]
    %v759 = vld [vmem:[#allocation8 + $0x140] sm:$0xff]
    %v760 = vld [vmem:[#allocation8 + $0x148] sm:$0xff]
    %v761 = vld [vmem:[#allocation8 + $0x150] sm:$0xff]
    %v762 = vld [vmem:[#allocation8 + $0x158] sm:$0xff]
    %v763 = vld [vmem:[#allocation8 + $0x160] sm:$0xff]
    %v764 = vld [vmem:[#allocation8 + $0x168] sm:$0xff]
    %v765 = vld [vmem:[#allocation8 + $0x170] sm:$0xff]
    %v766 = vld [vmem:[#allocation8 + $0x178] sm:$0xff]
    %v767 = vld [vmem:[#allocation8 + $0x180] sm:$0xff]
    %v768 = vld [vmem:[#allocation8 + $0x188] sm:$0xff]
    %v769 = vld [vmem:[#allocation8 + $0x190] sm:$0xff]
    %v770 = vld [vmem:[#allocation8 + $0x198] sm:$0xff]
    %v771 = vld [vmem:[#allocation8 + $0x1a0] sm:$0xff]
    %v772 = vld [vmem:[#allocation8 + $0x1a8] sm:$0xff]
    %v773 = vld [vmem:[#allocation8 + $0x1b0] sm:$0xff]
    %v774 = vld [vmem:[#allocation8 + $0x1b8] sm:$0xff]
    %v775 = vld [vmem:[#allocation8 + $0x1c0] sm:$0xff]
    %v776 = vld [vmem:[#allocation8 + $0x1c8] sm:$0xff]
    %v777 = vld [vmem:[#allocation8 + $0x1d0] sm:$0xff]
    %v778 = vld [vmem:[#allocation8 + $0x1d8] sm:$0xff]
    %v779 = vld [vmem:[#allocation8 + $0x1e0] sm:$0xff]
    %v780 = vld [vmem:[#allocation8 + $0x1e8] sm:$0xff]
    %v781 = vld [vmem:[#allocation8 + $0x1f0] sm:$0xff]
    %v782 = vld [vmem:[#allocation8 + $0x1f8] sm:$0xff]
    %v783 = vld [vmem:[#allocation8 + $0x200] sm:$0xff]
    %v784 = vld [vmem:[#allocation8 + $0x208] sm:$0xff]
    %v785 = vld [vmem:[#allocation8 + $0x210] sm:$0xff]
    %v786 = vld [vmem:[#allocation8 + $0x218] sm:$0xff]
    %v787 = vld [vmem:[#allocation8 + $0x220] sm:$0xff]
    %v788 = vld [vmem:[#allocation8 + $0x228] sm:$0xff]
    %v789 = vld [vmem:[#allocation8 + $0x230] sm:$0xff]
    %v790 = vld [vmem:[#allocation8 + $0x238] sm:$0xff]
    %v791 = vld [vmem:[#allocation8 + $0x240] sm:$0xff]
    %v792 = vld [vmem:[#allocation8 + $0x248] sm:$0xff]
    %v793 = vld [vmem:[#allocation8 + $0x250] sm:$0xff]
    %v794 = vld [vmem:[#allocation8 + $0x258] sm:$0xff]
    %v795 = vld [vmem:[#allocation8 + $0x260] sm:$0xff]
    %v796 = vld [vmem:[#allocation8 + $0x268] sm:$0xff]
    %v797 = vld [vmem:[#allocation8 + $0x270] sm:$0xff]
    %v798 = vld [vmem:[#allocation8 + $0x278] sm:$0xff]
    %v799 = vld [vmem:[#allocation8 + $0x280] sm:$0xff]
    %v800 = vld [vmem:[#allocation8 + $0x288] sm:$0xff]
    %v801 = vld [vmem:[#allocation8 + $0x290] sm:$0xff]
    %v802 = vld [vmem:[#allocation8 + $0x298] sm:$0xff]
    %v803 = vld [vmem:[#allocation8 + $0x2a0] sm:$0xff]
    %v804 = vld [vmem:[#allocation8 + $0x2a8] sm:$0xff]
    %v805 = vld [vmem:[#allocation8 + $0x2b0] sm:$0xff]
    %v806 = vld [vmem:[#allocation8 + $0x2b8] sm:$0xff]
    %v807 = vld [vmem:[#allocation8 + $0x2c0] sm:$0xff]
    %v808 = vld [vmem:[#allocation8 + $0x2c8] sm:$0xff]
    %v809 = vld [vmem:[#allocation8 + $0x2d0] sm:$0xff]
    %v810 = vld [vmem:[#allocation8 + $0x2d8] sm:$0xff]
    %v811 = vld [vmem:[#allocation8 + $0x2e0] sm:$0xff]
    %v812 = vld [vmem:[#allocation8 + $0x2e8] sm:$0xff]
    %v813 = vld [vmem:[#allocation8 + $0x2f0] sm:$0xff]
    %v814 = vld [vmem:[#allocation8 + $0x2f8] sm:$0xff]
    %v815 = vld [vmem:[#allocation8 + $0x300] sm:$0xff]
    %v816 = vld [vmem:[#allocation8 + $0x308] sm:$0xff]
    %v817 = vld [vmem:[#allocation8 + $0x310] sm:$0xff]
    %v818 = vld [vmem:[#allocation8 + $0x318] sm:$0xff]
    %v819 = vld [vmem:[#allocation8 + $0x320] sm:$0xff]
    %v820 = vld [vmem:[#allocation8 + $0x328] sm:$0xff]
    %v821 = vld [vmem:[#allocation8 + $0x330] sm:$0xff]
    %v822 = vld [vmem:[#allocation8 + $0x338] sm:$0xff]
    %v823 = vld [vmem:[#allocation8 + $0x340] sm:$0xff]
    %v824 = vld [vmem:[#allocation8 + $0x348] sm:$0xff]
    %v825 = vld [vmem:[#allocation8 + $0x350] sm:$0xff]
    %v826 = vld [vmem:[#allocation8 + $0x358] sm:$0xff]
    %v827 = vld [vmem:[#allocation8 + $0x360] sm:$0xff]
    %v828 = vld [vmem:[#allocation8 + $0x368] sm:$0xff]
    %v829 = vld [vmem:[#allocation8 + $0x370] sm:$0xff]
    %v830 = vld [vmem:[#allocation8 + $0x378] sm:$0xff]
    %v831 = vld [vmem:[#allocation8 + $0x380] sm:$0xff]
    %v832 = vld [vmem:[#allocation8 + $0x388] sm:$0xff]
    %v833 = vld [vmem:[#allocation8 + $0x390] sm:$0xff]
    %v834 = vld [vmem:[#allocation8 + $0x398] sm:$0xff]
    %v835 = vld [vmem:[#allocation8 + $0x3a0] sm:$0xff]
    %v836 = vld [vmem:[#allocation8 + $0x3a8] sm:$0xff]
    %v837 = vld [vmem:[#allocation8 + $0x3b0] sm:$0xff]
    %v838 = vld [vmem:[#allocation8 + $0x3b8] sm:$0xff]
    %v839 = vld [vmem:[#allocation8 + $0x3c0] sm:$0xff]
    %v840 = vld [vmem:[#allocation8 + $0x3c8] sm:$0xff]
    %v841 = vld [vmem:[#allocation8 + $0x3d0] sm:$0xff]
    %v842 = vld [vmem:[#allocation8 + $0x3d8] sm:$0xff]
    %v843 = vld [vmem:[#allocation8 + $0x3e0] sm:$0xff]
    %v844 = vld [vmem:[#allocation8 + $0x3e8] sm:$0xff]
    %v845 = vld [vmem:[#allocation8 + $0x3f0] sm:$0xff]
    %v846 = vld [vmem:[#allocation8 + $0x3f8] sm:$0xff]
    %v847 = vld [vmem:[#allocation8 + $0x400] sm:$0xff]
    %v848 = vld [vmem:[#allocation8 + $0x408] sm:$0xff]
    %v849 = vld [vmem:[#allocation8 + $0x410] sm:$0xff]
    %v850 = vld [vmem:[#allocation8 + $0x418] sm:$0xff]
    %v851 = vld [vmem:[#allocation8 + $0x420] sm:$0xff]
    %v852 = vld [vmem:[#allocation8 + $0x428] sm:$0xff]
    %v853 = vld [vmem:[#allocation8 + $0x430] sm:$0xff]
    %v854 = vld [vmem:[#allocation8 + $0x438] sm:$0xff]
    %v855 = vld [vmem:[#allocation8 + $0x440] sm:$0xff]
    %v856 = vld [vmem:[#allocation8 + $0x448] sm:$0xff]
    %v857 = vld [vmem:[#allocation8 + $0x450] sm:$0xff]
    %v858 = vld [vmem:[#allocation8 + $0x458] sm:$0xff]
    %v859 = vld [vmem:[#allocation8 + $0x460] sm:$0xff]
    %v860 = vld [vmem:[#allocation8 + $0x468] sm:$0xff]
    %v861 = vld [vmem:[#allocation8 + $0x470] sm:$0xff]
    %v862 = vld [vmem:[#allocation8 + $0x478] sm:$0xff]
    %v863 = vld [vmem:[#allocation8 + $0x480] sm:$0xff]
    %v864 = vld [vmem:[#allocation8 + $0x488] sm:$0xff]
    %v865 = vld [vmem:[#allocation8 + $0x490] sm:$0xff]
    %v866 = vld [vmem:[#allocation8 + $0x498] sm:$0xff]
    %v867 = vld [vmem:[#allocation8 + $0x4a0] sm:$0xff]
    %v868 = vld [vmem:[#allocation8 + $0x4a8] sm:$0xff]
    %v869 = vld [vmem:[#allocation8 + $0x4b0] sm:$0xff]
    %v870 = vld [vmem:[#allocation8 + $0x4b8] sm:$0xff]
    %v871 = vld [vmem:[#allocation8 + $0x4c0] sm:$0xff]
    %v872 = vld [vmem:[#allocation8 + $0x4c8] sm:$0xff]
    %v873 = vld [vmem:[#allocation8 + $0x4d0] sm:$0xff]
    %v874 = vld [vmem:[#allocation8 + $0x4d8] sm:$0xff]
    %v875 = vld [vmem:[#allocation8 + $0x4e0] sm:$0xff]
    %v876 = vld [vmem:[#allocation8 + $0x4e8] sm:$0xff]
    %v877 = vld [vmem:[#allocation8 + $0x4f0] sm:$0xff]
    %v878 = vld [vmem:[#allocation8 + $0x4f8] sm:$0xff]
    %v879 = vld [vmem:[#allocation8 + $0x500] sm:$0xff]
    %v880 = vld [vmem:[#allocation8 + $0x508] sm:$0xff]
    %v881 = vld [vmem:[#allocation8 + $0x510] sm:$0xff]
    %v882 = vld [vmem:[#allocation8 + $0x518] sm:$0xff]
    %v883 = vld [vmem:[#allocation8 + $0x520] sm:$0xff]
    %v884 = vld [vmem:[#allocation8 + $0x528] sm:$0xff]
    %v885 = vld [vmem:[#allocation8 + $0x530] sm:$0xff]
    %v886 = vld [vmem:[#allocation8 + $0x538] sm:$0xff]
    %v887 = vld [vmem:[#allocation8 + $0x540] sm:$0xff]
    %v888 = vld [vmem:[#allocation8 + $0x548] sm:$0xff]
    %v889 = vld [vmem:[#allocation8 + $0x550] sm:$0xff]
    %v890 = vld [vmem:[#allocation8 + $0x558] sm:$0xff]
    %v891 = vld [vmem:[#allocation8 + $0x560] sm:$0xff]
    %v892 = vld [vmem:[#allocation8 + $0x568] sm:$0xff]
    %v893 = vld [vmem:[#allocation8 + $0x570] sm:$0xff]
    %v894 = vld [vmem:[#allocation8 + $0x578] sm:$0xff]
    %v895 = vld [vmem:[#allocation8 + $0x580] sm:$0xff]
    %v896 = vld [vmem:[#allocation8 + $0x588] sm:$0xff]
    %v897 = vld [vmem:[#allocation8 + $0x590] sm:$0xff]
    %v898 = vld [vmem:[#allocation8 + $0x598] sm:$0xff]
    %v899 = vld [vmem:[#allocation8 + $0x5a0] sm:$0xff]
    %v900 = vld [vmem:[#allocation8 + $0x5a8] sm:$0xff]
    %v901 = vld [vmem:[#allocation8 + $0x5b0] sm:$0xff]
    %v902 = vld [vmem:[#allocation8 + $0x5b8] sm:$0xff]
    %v903 = vld [vmem:[#allocation8 + $0x5c0] sm:$0xff]
    %v904 = vld [vmem:[#allocation8 + $0x5c8] sm:$0xff]
    %v905 = vld [vmem:[#allocation8 + $0x5d0] sm:$0xff]
    %v906 = vld [vmem:[#allocation8 + $0x5d8] sm:$0xff]
    %v907 = vld [vmem:[#allocation8 + $0x5e0] sm:$0xff]
    %v908 = vld [vmem:[#allocation8 + $0x5e8] sm:$0xff]
    %v909 = vld [vmem:[#allocation8 + $0x5f0] sm:$0xff]
    %v910 = vld [vmem:[#allocation8 + $0x5f8] sm:$0xff]
    %v911 = vld [vmem:[#allocation8 + $0x600] sm:$0xff]
    %v912 = vld [vmem:[#allocation8 + $0x608] sm:$0xff]
    %v913 = vld [vmem:[#allocation8 + $0x610] sm:$0xff]
    %v914 = vld [vmem:[#allocation8 + $0x618] sm:$0xff]
    %v915 = vld [vmem:[#allocation8 + $0x620] sm:$0xff]
    %v916 = vld [vmem:[#allocation8 + $0x628] sm:$0xff]
    %v917 = vld [vmem:[#allocation8 + $0x630] sm:$0xff]
    %v918 = vld [vmem:[#allocation8 + $0x638] sm:$0xff]
    %v919 = vld [vmem:[#allocation8 + $0x640] sm:$0xff]
    %v920 = vld [vmem:[#allocation8 + $0x648] sm:$0xff]
    %v921 = vld [vmem:[#allocation8 + $0x650] sm:$0xff]
    %v922 = vld [vmem:[#allocation8 + $0x658] sm:$0xff]
    %v923 = vld [vmem:[#allocation8 + $0x660] sm:$0xff]
    %v924 = vld [vmem:[#allocation8 + $0x668] sm:$0xff]
    %v925 = vld [vmem:[#allocation8 + $0x670] sm:$0xff]
    %v926 = vld [vmem:[#allocation8 + $0x678] sm:$0xff]
    %v927 = vld [vmem:[#allocation8 + $0x680] sm:$0xff]
    %v928 = vld [vmem:[#allocation8 + $0x688] sm:$0xff]
    %v929 = vld [vmem:[#allocation8 + $0x690] sm:$0xff]
    %v930 = vld [vmem:[#allocation8 + $0x698] sm:$0xff]
    %v931 = vld [vmem:[#allocation8 + $0x6a0] sm:$0xff]
    %v932 = vld [vmem:[#allocation8 + $0x6a8] sm:$0xff]
    %v933 = vld [vmem:[#allocation8 + $0x6b0] sm:$0xff]
    %v934 = vld [vmem:[#allocation8 + $0x6b8] sm:$0xff]
    %v935 = vld [vmem:[#allocation8 + $0x6c0] sm:$0xff]
    %v936 = vld [vmem:[#allocation8 + $0x6c8] sm:$0xff]
    %v937 = vld [vmem:[#allocation8 + $0x6d0] sm:$0xff]
    %v938 = vld [vmem:[#allocation8 + $0x6d8] sm:$0xff]
    %v939 = vld [vmem:[#allocation8 + $0x6e0] sm:$0xff]
    %v940 = vld [vmem:[#allocation8 + $0x6e8] sm:$0xff]
    %v941 = vld [vmem:[#allocation8 + $0x6f0] sm:$0xff]
    %v942 = vld [vmem:[#allocation8 + $0x6f8] sm:$0xff]
    %v943 = vld [vmem:[#allocation8 + $0x700] sm:$0xff]
    %v944 = vld [vmem:[#allocation8 + $0x708] sm:$0xff]
    %v945 = vld [vmem:[#allocation8 + $0x710] sm:$0xff]
    %v946 = vld [vmem:[#allocation8 + $0x718] sm:$0xff]
    %v947 = vld [vmem:[#allocation8 + $0x720] sm:$0xff]
    %v948 = vld [vmem:[#allocation8 + $0x728] sm:$0xff]
    %v949 = vld [vmem:[#allocation8 + $0x730] sm:$0xff]
    %v950 = vld [vmem:[#allocation8 + $0x738] sm:$0xff]
    %v951 = vld [vmem:[#allocation8 + $0x740] sm:$0xff]
    %v952 = vld [vmem:[#allocation8 + $0x748] sm:$0xff]
    %v953 = vld [vmem:[#allocation8 + $0x750] sm:$0xff]
    %v954 = vld [vmem:[#allocation8 + $0x758] sm:$0xff]
    %v955 = vld [vmem:[#allocation8 + $0x760] sm:$0xff]
    %v956 = vld [vmem:[#allocation8 + $0x768] sm:$0xff]
    %v957 = vld [vmem:[#allocation8 + $0x770] sm:$0xff]
    %v958 = vld [vmem:[#allocation8 + $0x778] sm:$0xff]
    %v959 = vld [vmem:[#allocation8 + $0x780] sm:$0xff]
    %v960 = vld [vmem:[#allocation8 + $0x788] sm:$0xff]
    %v961 = vld [vmem:[#allocation8 + $0x790] sm:$0xff]
    %v962 = vld [vmem:[#allocation8 + $0x798] sm:$0xff]
    %v963 = vld [vmem:[#allocation8 + $0x7a0] sm:$0xff]
    %v964 = vld [vmem:[#allocation8 + $0x7a8] sm:$0xff]
    %v965 = vld [vmem:[#allocation8 + $0x7b0] sm:$0xff]
    %v966 = vld [vmem:[#allocation8 + $0x7b8] sm:$0xff]
    %v967 = vld [vmem:[#allocation8 + $0x7c0] sm:$0xff]
    %v968 = vld [vmem:[#allocation8 + $0x7c8] sm:$0xff]
    %v969 = vld [vmem:[#allocation8 + $0x7d0] sm:$0xff]
    %v970 = vld [vmem:[#allocation8 + $0x7d8] sm:$0xff]
    %v971 = vld [vmem:[#allocation8 + $0x7e0] sm:$0xff]
    %v972 = vld [vmem:[#allocation8 + $0x7e8] sm:$0xff]
    %v973 = vld [vmem:[#allocation8 + $0x7f0] sm:$0xff]
    %v974 = vld [vmem:[#allocation8 + $0x7f8] sm:$0xff]
    %v975 = vld [vmem:[%s6] sm:$0xf]
    %v977 = vlaneseq
    %v978 = vshrl.u32 %v977, 7
    %v979 = vsub.s32 0, %v978
    %v980 = vrot.slane %v975, %v979
    %v981 = vlaneseq
    %v982 = vshrl.u32 %v981, 7
    %v983 = vsub.s32 1, %v982
    %v984 = vrot.slane %v975, %v983
    %v985 = vlaneseq
    %v986 = vshrl.u32 %v985, 7
    %v987 = vsub.s32 2, %v986
    %v988 = vrot.slane %v975, %v987
    %v989 = vlaneseq
    %v990 = vshrl.u32 %v989, 7
    %v991 = vsub.s32 3, %v990
    %v992 = vrot.slane %v975, %v991
    %997 = vmatprep.subr.mxu0 %v780
    %998 = vmatpush1.msra.mxu0 %v779
    %999 = vmatprep.subr.mxu0 %v776
    %1000 = vmatpush1.msra.mxu0 %v775
    %1001 = vmatprep.subr.mxu0 %v772
    %1002 = vmatpush1.msra.mxu0 %v771
    %1003 = vmatprep.subr.mxu0 %v768
    %1004 = vmatpush1.msra.mxu0 %v767
    %1005 = vmatprep.subr.mxu0 %v764
    %1006 = vmatpush1.msra.mxu0 %v763
    %1007 = vmatprep.subr.mxu0 %v760
    %1008 = vmatpush1.msra.mxu0 %v759
    %1009 = vmatprep.subr.mxu0 %v756
    %1010 = vmatpush1.msra.mxu0 %v755
    %1011 = vmatprep.subr.mxu0 %v752
    %1012 = vmatpush1.msra.mxu0 %v751
    %1013 = vmatprep.subr.mxu0 %v748
    %1014 = vmatpush1.msra.mxu0 %v747
    %1015 = vmatprep.subr.mxu0 %v744
    %1016 = vmatpush1.msra.mxu0 %v743
    %1017 = vmatprep.subr.mxu0 %v740
    %1018 = vmatpush1.msra.mxu0 %v739
    %1019 = vmatprep.subr.mxu0 %v736
    %1020 = vmatpush1.msra.mxu0 %v735
    %1021 = vmatprep.subr.mxu0 %v732
    %1022 = vmatpush1.msra.mxu0 %v731
    %1023 = vmatprep.subr.mxu0 %v728
    %1024 = vmatpush1.msra.mxu0 %v727
    %1025 = vmatprep.subr.mxu0 %v724
    %1026 = vmatpush1.msra.mxu0 %v723
    %1027 = vmatprep.subr.mxu0 %v720
    %1028 = vmatpush1.msra.mxu0 %v719
    %1029 = vmatprep.subr.mxu0 %v844
    %1030 = vmatpush2.msra.mxu0 %v843
    %1031 = vmatprep.subr.mxu0 %v840
    %1032 = vmatpush2.msra.mxu0 %v839
    %1033 = vmatprep.subr.mxu0 %v836
    %1034 = vmatpush2.msra.mxu0 %v835
    %1035 = vmatprep.subr.mxu0 %v832
    %1036 = vmatpush2.msra.mxu0 %v831
    %1037 = vmatprep.subr.mxu0 %v828
    %1038 = vmatpush2.msra.mxu0 %v827
    %1039 = vmatprep.subr.mxu0 %v824
    %1040 = vmatpush2.msra.mxu0 %v823
    %1041 = vmatprep.subr.mxu0 %v820
    %1042 = vmatpush2.msra.mxu0 %v819
    %1043 = vmatprep.subr.mxu0 %v816
    %1044 = vmatpush2.msra.mxu0 %v815
    %1045 = vmatprep.subr.mxu0 %v812
    %1046 = vmatpush2.msra.mxu0 %v811
    %1047 = vmatprep.subr.mxu0 %v808
    %1048 = vmatpush2.msra.mxu0 %v807
    %1049 = vmatprep.subr.mxu0 %v804
    %1050 = vmatpush2.msra.mxu0 %v803
    %1051 = vmatprep.subr.mxu0 %v800
    %1052 = vmatpush2.msra.mxu0 %v799
    %1053 = vmatprep.subr.mxu0 %v796
    %1054 = vmatpush2.msra.mxu0 %v795
    %1055 = vmatprep.subr.mxu0 %v792
    %1056 = vmatpush2.msra.mxu0 %v791
    %1057 = vmatprep.subr.mxu0 %v788
    %1058 = vmatpush2.msra.mxu0 %v787
    %1059 = vmatprep.subr.mxu0 %v784
    %1060 = vmatpush2.msra.mxu0 %v783
    %1061 = vmatprep.mubr.f32.mxu0 %v102
    %1062 = vmatmul.mubr.f32.gmra.mxu0 %v101
    %v1063 = vpop.f32.mrf.mxu0
    %v1064 = vadd.f32 %v980, %v1063
    %v1065 = vpop.f32.mrf.mxu0
    %v1066 = vadd.f32 %v984, %v1065
    %1067 = vmatprep.mubr.f32.mxu0 %v106
    %1068 = vmatmul.mubr.f32.gmra.mxu0 %v105
    %v1069 = vpop.f32.mrf.mxu0
    %v1070 = vadd.f32 %v980, %v1069
    %v1071 = vpop.f32.mrf.mxu0
    %v1072 = vadd.f32 %v984, %v1071
    %1073 = vmatprep.mubr.f32.mxu0 %v110
    %1074 = vmatmul.mubr.f32.gmra.mxu0 %v109
    %v1075 = vpop.f32.mrf.mxu0
    %v1076 = vadd.f32 %v980, %v1075
    %v1077 = vpop.f32.mrf.mxu0
    %v1078 = vadd.f32 %v984, %v1077
    %1079 = vmatprep.mubr.f32.mxu0 %v114
    %1080 = vmatmul.mubr.f32.gmra.mxu0 %v113
    %v1081 = vpop.f32.mrf.mxu0
    %v1082 = vadd.f32 %v980, %v1081
    %v1083 = vpop.f32.mrf.mxu0
    %v1084 = vadd.f32 %v984, %v1083
    %1085 = vdwg.mxu0
    %1086 = vmatprep.subr.mxu0 %v908
    %1087 = vmatpush1.msra.mxu0 %v907
    %1088 = vmatprep.subr.mxu0 %v904
    %1089 = vmatpush1.msra.mxu0 %v903
    %1090 = vmatprep.subr.mxu0 %v900
    %1091 = vmatpush1.msra.mxu0 %v899
    %1092 = vmatprep.subr.mxu0 %v896
    %1093 = vmatpush1.msra.mxu0 %v895
    %1094 = vmatprep.subr.mxu0 %v892
    %1095 = vmatpush1.msra.mxu0 %v891
    %1096 = vmatprep.subr.mxu0 %v888
    %1097 = vmatpush1.msra.mxu0 %v887
    %1098 = vmatprep.subr.mxu0 %v884
    %1099 = vmatpush1.msra.mxu0 %v883
    %1100 = vmatprep.subr.mxu0 %v880
    %1101 = vmatpush1.msra.mxu0 %v879
    %1102 = vmatprep.subr.mxu0 %v876
    %1103 = vmatpush1.msra.mxu0 %v875
    %1104 = vmatprep.subr.mxu0 %v872
    %1105 = vmatpush1.msra.mxu0 %v871
    %1106 = vmatprep.subr.mxu0 %v868
    %1107 = vmatpush1.msra.mxu0 %v867
    %1108 = vmatprep.subr.mxu0 %v864
    %1109 = vmatpush1.msra.mxu0 %v863
    %1110 = vmatprep.subr.mxu0 %v860
    %1111 = vmatpush1.msra.mxu0 %v859
    %1112 = vmatprep.subr.mxu0 %v856
    %1113 = vmatpush1.msra.mxu0 %v855
    %1114 = vmatprep.subr.mxu0 %v852
    %1115 = vmatpush1.msra.mxu0 %v851
    %1116 = vmatprep.subr.mxu0 %v848
    %1117 = vmatpush1.msra.mxu0 %v847
    %1118 = vmatprep.subr.mxu0 %v972
    %1119 = vmatpush2.msra.mxu0 %v971
    %1120 = vmatprep.subr.mxu0 %v968
    %1121 = vmatpush2.msra.mxu0 %v967
    %1122 = vmatprep.subr.mxu0 %v964
    %1123 = vmatpush2.msra.mxu0 %v963
    %1124 = vmatprep.subr.mxu0 %v960
    %1125 = vmatpush2.msra.mxu0 %v959
    %1126 = vmatprep.subr.mxu0 %v956
    %1127 = vmatpush2.msra.mxu0 %v955
    %1128 = vmatprep.subr.mxu0 %v952
    %1129 = vmatpush2.msra.mxu0 %v951
    %1130 = vmatprep.subr.mxu0 %v948
    %1131 = vmatpush2.msra.mxu0 %v947
    %1132 = vmatprep.subr.mxu0 %v944
    %1133 = vmatpush2.msra.mxu0 %v943
    %1134 = vmatprep.subr.mxu0 %v940
    %1135 = vmatpush2.msra.mxu0 %v939
    %1136 = vmatprep.subr.mxu0 %v936
    %1137 = vmatpush2.msra.mxu0 %v935
    %1138 = vmatprep.subr.mxu0 %v932
    %1139 = vmatpush2.msra.mxu0 %v931
    %1140 = vmatprep.subr.mxu0 %v928
    %1141 = vmatpush2.msra.mxu0 %v927
    %1142 = vmatprep.subr.mxu0 %v924
    %1143 = vmatpush2.msra.mxu0 %v923
    %1144 = vmatprep.subr.mxu0 %v920
    %1145 = vmatpush2.msra.mxu0 %v919
    %1146 = vmatprep.subr.mxu0 %v916
    %1147 = vmatpush2.msra.mxu0 %v915
    %1148 = vmatprep.subr.mxu0 %v912
    %1149 = vmatpush2.msra.mxu0 %v911
    %1150 = vmatprep.mubr.f32.mxu0 %v104
    %1151 = vmatmul.mubr.f32.gmra.mxu0 %v103
    %v1152 = vpop.f32.mrf.mxu0
    %v1153 = vadd.f32 %v1064, %v1152
    %v1154 = vpop.f32.mrf.mxu0
    %v1155 = vadd.f32 %v1066, %v1154
    %1156 = vmatprep.mubr.f32.mxu0 %v108
    %1157 = vmatmul.mubr.f32.gmra.mxu0 %v107
    %v1158 = vpop.f32.mrf.mxu0
    %v1159 = vadd.f32 %v1070, %v1158
    %v1160 = vpop.f32.mrf.mxu0
    %v1161 = vadd.f32 %v1072, %v1160
    %1162 = vmatprep.mubr.f32.mxu0 %v112
    %1163 = vmatmul.mubr.f32.gmra.mxu0 %v111
    %v1164 = vpop.f32.mrf.mxu0
    %v1165 = vadd.f32 %v1076, %v1164
    %v1166 = vpop.f32.mrf.mxu0
    %v1167 = vadd.f32 %v1078, %v1166
    %1168 = vmatprep.mubr.f32.mxu0 %v116
    %1169 = vmatmul.mubr.f32.gmra.mxu0 %v115
    %v1170 = vpop.f32.mrf.mxu0
    %v1171 = vadd.f32 %v1082, %v1170
    %v1172 = vpop.f32.mrf.mxu0
    %v1173 = vadd.f32 %v1084, %v1172
    %1174 = vdwg.mxu0
    %1175 = vmatprep.subr.mxu0 %v782
    %1176 = vmatpush1.msra.mxu0 %v781
    %1177 = vmatprep.subr.mxu0 %v778
    %1178 = vmatpush1.msra.mxu0 %v777
    %1179 = vmatprep.subr.mxu0 %v774
    %1180 = vmatpush1.msra.mxu0 %v773
    %1181 = vmatprep.subr.mxu0 %v770
    %1182 = vmatpush1.msra.mxu0 %v769
    %1183 = vmatprep.subr.mxu0 %v766
    %1184 = vmatpush1.msra.mxu0 %v765
    %1185 = vmatprep.subr.mxu0 %v762
    %1186 = vmatpush1.msra.mxu0 %v761
    %1187 = vmatprep.subr.mxu0 %v758
    %1188 = vmatpush1.msra.mxu0 %v757
    %1189 = vmatprep.subr.mxu0 %v754
    %1190 = vmatpush1.msra.mxu0 %v753
    %1191 = vmatprep.subr.mxu0 %v750
    %1192 = vmatpush1.msra.mxu0 %v749
    %1193 = vmatprep.subr.mxu0 %v746
    %1194 = vmatpush1.msra.mxu0 %v745
    %1195 = vmatprep.subr.mxu0 %v742
    %1196 = vmatpush1.msra.mxu0 %v741
    %1197 = vmatprep.subr.mxu0 %v738
    %1198 = vmatpush1.msra.mxu0 %v737
    %1199 = vmatprep.subr.mxu0 %v734
    %1200 = vmatpush1.msra.mxu0 %v733
    %1201 = vmatprep.subr.mxu0 %v730
    %1202 = vmatpush1.msra.mxu0 %v729
    %1203 = vmatprep.subr.mxu0 %v726
    %1204 = vmatpush1.msra.mxu0 %v725
    %1205 = vmatprep.subr.mxu0 %v722
    %1206 = vmatpush1.msra.mxu0 %v721
    %1207 = vmatprep.subr.mxu0 %v846
    %1208 = vmatpush2.msra.mxu0 %v845
    %1209 = vmatprep.subr.mxu0 %v842
    %1210 = vmatpush2.msra.mxu0 %v841
    %1211 = vmatprep.subr.mxu0 %v838
    %1212 = vmatpush2.msra.mxu0 %v837
    %1213 = vmatprep.subr.mxu0 %v834
    %1214 = vmatpush2.msra.mxu0 %v833
    %1215 = vmatprep.subr.mxu0 %v830
    %1216 = vmatpush2.msra.mxu0 %v829
    %1217 = vmatprep.subr.mxu0 %v826
    %1218 = vmatpush2.msra.mxu0 %v825
    %1219 = vmatprep.subr.mxu0 %v822
    %1220 = vmatpush2.msra.mxu0 %v821
    %1221 = vmatprep.subr.mxu0 %v818
    %1222 = vmatpush2.msra.mxu0 %v817
    %1223 = vmatprep.subr.mxu0 %v814
    %1224 = vmatpush2.msra.mxu0 %v813
    %1225 = vmatprep.subr.mxu0 %v810
    %1226 = vmatpush2.msra.mxu0 %v809
    %1227 = vmatprep.subr.mxu0 %v806
    %1228 = vmatpush2.msra.mxu0 %v805
    %1229 = vmatprep.subr.mxu0 %v802
    %1230 = vmatpush2.msra.mxu0 %v801
    %1231 = vmatprep.subr.mxu0 %v798
    %1232 = vmatpush2.msra.mxu0 %v797
    %1233 = vmatprep.subr.mxu0 %v794
    %1234 = vmatpush2.msra.mxu0 %v793
    %1235 = vmatprep.subr.mxu0 %v790
    %1236 = vmatpush2.msra.mxu0 %v789
    %1237 = vmatprep.subr.mxu0 %v786
    %1238 = vmatpush2.msra.mxu0 %v785
    %1239 = vmatprep.mubr.f32.mxu0 %v102
    %1240 = vmatmul.mubr.f32.gmra.mxu0 %v101
    %v1241 = vpop.f32.mrf.mxu0
    %v1242 = vadd.f32 %v988, %v1241
    %v1243 = vpop.f32.mrf.mxu0
    %v1244 = vadd.f32 %v992, %v1243
    %1245 = vmatprep.mubr.f32.mxu0 %v106
    %1246 = vmatmul.mubr.f32.gmra.mxu0 %v105
    %v1247 = vpop.f32.mrf.mxu0
    %v1248 = vadd.f32 %v988, %v1247
    %v1249 = vpop.f32.mrf.mxu0
    %v1250 = vadd.f32 %v992, %v1249
    %1251 = vmatprep.mubr.f32.mxu0 %v110
    %1252 = vmatmul.mubr.f32.gmra.mxu0 %v109
    %v1253 = vpop.f32.mrf.mxu0
    %v1254 = vadd.f32 %v988, %v1253
    %v1255 = vpop.f32.mrf.mxu0
    %v1256 = vadd.f32 %v992, %v1255
    %1257 = vmatprep.mubr.f32.mxu0 %v114
    %1258 = vmatmul.mubr.f32.gmra.mxu0 %v113
    %v1259 = vpop.f32.mrf.mxu0
    %v1260 = vadd.f32 %v988, %v1259
    %v1261 = vpop.f32.mrf.mxu0
    %v1262 = vadd.f32 %v992, %v1261
    %1263 = vdwg.mxu0
    %1264 = vmatprep.subr.mxu0 %v910
    %1265 = vmatpush1.msra.mxu0 %v909
    %1266 = vmatprep.subr.mxu0 %v906
    %1267 = vmatpush1.msra.mxu0 %v905
    %1268 = vmatprep.subr.mxu0 %v902
    %1269 = vmatpush1.msra.mxu0 %v901
    %1270 = vmatprep.subr.mxu0 %v898
    %1271 = vmatpush1.msra.mxu0 %v897
    %1272 = vmatprep.subr.mxu0 %v894
    %1273 = vmatpush1.msra.mxu0 %v893
    %1274 = vmatprep.subr.mxu0 %v890
    %1275 = vmatpush1.msra.mxu0 %v889
    %1276 = vmatprep.subr.mxu0 %v886
    %1277 = vmatpush1.msra.mxu0 %v885
    %1278 = vmatprep.subr.mxu0 %v882
    %1279 = vmatpush1.msra.mxu0 %v881
    %1280 = vmatprep.subr.mxu0 %v878
    %1281 = vmatpush1.msra.mxu0 %v877
    %1282 = vmatprep.subr.mxu0 %v874
    %1283 = vmatpush1.msra.mxu0 %v873
    %1284 = vmatprep.subr.mxu0 %v870
    %1285 = vmatpush1.msra.mxu0 %v869
    %1286 = vmatprep.subr.mxu0 %v866
    %1287 = vmatpush1.msra.mxu0 %v865
    %1288 = vmatprep.subr.mxu0 %v862
    %1289 = vmatpush1.msra.mxu0 %v861
    %1290 = vmatprep.subr.mxu0 %v858
    %1291 = vmatpush1.msra.mxu0 %v857
    %1292 = vmatprep.subr.mxu0 %v854
    %1293 = vmatpush1.msra.mxu0 %v853
    %1294 = vmatprep.subr.mxu0 %v850
    %1295 = vmatpush1.msra.mxu0 %v849
    %1296 = vmatprep.subr.mxu0 %v974
    %1297 = vmatpush2.msra.mxu0 %v973
    %1298 = vmatprep.subr.mxu0 %v970
    %1299 = vmatpush2.msra.mxu0 %v969
    %1300 = vmatprep.subr.mxu0 %v966
    %1301 = vmatpush2.msra.mxu0 %v965
    %1302 = vmatprep.subr.mxu0 %v962
    %1303 = vmatpush2.msra.mxu0 %v961
    %1304 = vmatprep.subr.mxu0 %v958
    %1305 = vmatpush2.msra.mxu0 %v957
    %1306 = vmatprep.subr.mxu0 %v954
    %1307 = vmatpush2.msra.mxu0 %v953
    %1308 = vmatprep.subr.mxu0 %v950
    %1309 = vmatpush2.msra.mxu0 %v949
    %1310 = vmatprep.subr.mxu0 %v946
    %1311 = vmatpush2.msra.mxu0 %v945
    %1312 = vmatprep.subr.mxu0 %v942
    %1313 = vmatpush2.msra.mxu0 %v941
    %1314 = vmatprep.subr.mxu0 %v938
    %1315 = vmatpush2.msra.mxu0 %v937
    %1316 = vmatprep.subr.mxu0 %v934
    %1317 = vmatpush2.msra.mxu0 %v933
    %1318 = vmatprep.subr.mxu0 %v930
    %1319 = vmatpush2.msra.mxu0 %v929
    %1320 = vmatprep.subr.mxu0 %v926
    %1321 = vmatpush2.msra.mxu0 %v925
    %1322 = vmatprep.subr.mxu0 %v922
    %1323 = vmatpush2.msra.mxu0 %v921
    %1324 = vmatprep.subr.mxu0 %v918
    %1325 = vmatpush2.msra.mxu0 %v917
    %1326 = vmatprep.subr.mxu0 %v914
    %1327 = vmatpush2.msra.mxu0 %v913
    %1328 = vmatprep.mubr.f32.mxu0 %v104
    %1329 = vmatmul.mubr.f32.gmra.mxu0 %v103
    %v1330 = vpop.f32.mrf.mxu0
    %v1331 = vadd.f32 %v1242, %v1330
    %v1332 = vpop.f32.mrf.mxu0
    %v1333 = vadd.f32 %v1244, %v1332
    %1334 = vmatprep.mubr.f32.mxu0 %v108
    %1335 = vmatmul.mubr.f32.gmra.mxu0 %v107
    %v1336 = vpop.f32.mrf.mxu0
    %v1337 = vadd.f32 %v1248, %v1336
    %v1338 = vpop.f32.mrf.mxu0
    %v1339 = vadd.f32 %v1250, %v1338
    %1340 = vmatprep.mubr.f32.mxu0 %v112
    %1341 = vmatmul.mubr.f32.gmra.mxu0 %v111
    %v1342 = vpop.f32.mrf.mxu0
    %v1343 = vadd.f32 %v1254, %v1342
    %v1344 = vpop.f32.mrf.mxu0
    %v1345 = vadd.f32 %v1256, %v1344
    %1346 = vmatprep.mubr.f32.mxu0 %v116
    %1347 = vmatmul.mubr.f32.gmra.mxu0 %v115
    %v1348 = vpop.f32.mrf.mxu0
    %v1349 = vadd.f32 %v1260, %v1348
    %v1350 = vpop.f32.mrf.mxu0
    %v1351 = vadd.f32 %v1262, %v1350
    %1352 = vdwg.mxu0
    %v1353 = vrcp.pop 22.627417
    %v1354 = vmul.f32 %v555, %v1353
    %v1355 = vmul.f32 %v557, %v1353
    %v1356 = vmul.f32 %v709, %v1353
    %v1357 = vmul.f32 %v711, %v1353
    %v1358 = vmul.f32 %v561, %v1353
    %v1359 = vmul.f32 %v563, %v1353
    %v1360 = vmul.f32 %v715, %v1353
    %v1361 = vmul.f32 %v717, %v1353
    %vm1362 = vcmp.ge.f32.partialorder %v1354, 0.0
    %vm1363 = vcmp.ge.f32.partialorder %v1355, 0.0
    %vm1364 = vcmp.ge.f32.partialorder %v1356, 0.0
    %vm1365 = vcmp.ge.f32.partialorder %v1357, 0.0
    %vm1366 = vcmp.ge.f32.partialorder %v1358, 0.0
    %vm1367 = vcmp.ge.f32.partialorder %v1359, 0.0
    %vm1368 = vcmp.ge.f32.partialorder %v1360, 0.0
    %vm1369 = vcmp.ge.f32.partialorder %v1361, 0.0
    %v1370 = vfloor.f32 %v1354
    %v1371 = vfloor.f32 %v1355
    %v1372 = vfloor.f32 %v1356
    %v1373 = vfloor.f32 %v1357
    %v1374 = vfloor.f32 %v1358
    %v1375 = vfloor.f32 %v1359
    %v1376 = vfloor.f32 %v1360
    %v1377 = vfloor.f32 %v1361
    %v1378 = vceil.f32 %v1354
    %v1379 = vceil.f32 %v1355
    %v1380 = vceil.f32 %v1356
    %v1381 = vceil.f32 %v1357
    %v1382 = vceil.f32 %v1358
    %v1383 = vceil.f32 %v1359
    %v1384 = vceil.f32 %v1360
    %v1385 = vceil.f32 %v1361
    %v1386 = vsel %vm1362, %v1370, %v1378
    %v1387 = vsel %vm1363, %v1371, %v1379
    %v1388 = vsel %vm1364, %v1372, %v1380
    %v1389 = vsel %vm1365, %v1373, %v1381
    %v1390 = vsel %vm1366, %v1374, %v1382
    %v1391 = vsel %vm1367, %v1375, %v1383
    %v1392 = vsel %vm1368, %v1376, %v1384
    %v1393 = vsel %vm1369, %v1377, %v1385
    %1394 = vmatprep.subr.mxu0 0.0
    %1395 = vmatpush1.xpose.msra.mxu0 0.0
    %1396 = vmatprep.subr.mxu0 0.0
    %1397 = vmatpush1.xpose.msra.mxu0 0.0
    %1398 = vmatprep.subr.mxu0 0.0
    %1399 = vmatpush1.xpose.msra.mxu0 0.0
    %1400 = vmatprep.subr.mxu0 0.0
    %1401 = vmatpush1.xpose.msra.mxu0 0.0
    %1402 = vmatprep.subr.mxu0 0.0
    %1403 = vmatpush1.xpose.msra.mxu0 0.0
    %1404 = vmatprep.subr.mxu0 0.0
    %1405 = vmatpush1.xpose.msra.mxu0 0.0
    %1406 = vmatprep.subr.mxu0 0.0
    %1407 = vmatpush1.xpose.msra.mxu0 0.0
    %1408 = vmatprep.subr.mxu0 0.0
    %1409 = vmatpush1.xpose.msra.mxu0 0.0
    %1410 = vmatprep.subr.mxu0 0.0
    %1411 = vmatpush1.xpose.msra.mxu0 0.0
    %1412 = vmatprep.subr.mxu0 0.0
    %1413 = vmatpush1.xpose.msra.mxu0 0.0
    %1414 = vmatprep.subr.mxu0 0.0
    %1415 = vmatpush1.xpose.msra.mxu0 0.0
    %1416 = vmatprep.subr.mxu0 0.0
    %1417 = vmatpush1.xpose.msra.mxu0 0.0
    %1418 = vmatprep.subr.mxu0 0.0
    %1419 = vmatpush1.xpose.msra.mxu0 0.0
    %1420 = vmatprep.subr.mxu0 0.0
    %1421 = vmatpush1.xpose.msra.mxu0 0.0
    %1422 = vmatprep.subr.mxu0 0.0
    %1423 = vmatpush1.xpose.msra.mxu0 0.0
    %1424 = vmatprep.subr.mxu0 %v1387
    %1425 = vmatpush1.xpose.msra.mxu0 %v1386
    %1426 = vmatprep.subr.mxu0 0.0
    %1427 = vmatpush2.xpose.msra.mxu0 0.0
    %1428 = vmatprep.subr.mxu0 0.0
    %1429 = vmatpush2.xpose.msra.mxu0 0.0
    %1430 = vmatprep.subr.mxu0 0.0
    %1431 = vmatpush2.xpose.msra.mxu0 0.0
    %1432 = vmatprep.subr.mxu0 0.0
    %1433 = vmatpush2.xpose.msra.mxu0 0.0
    %1434 = vmatprep.subr.mxu0 0.0
    %1435 = vmatpush2.xpose.msra.mxu0 0.0
    %1436 = vmatprep.subr.mxu0 0.0
    %1437 = vmatpush2.xpose.msra.mxu0 0.0
    %1438 = vmatprep.subr.mxu0 0.0
    %1439 = vmatpush2.xpose.msra.mxu0 0.0
    %1440 = vmatprep.subr.mxu0 0.0
    %1441 = vmatpush2.xpose.msra.mxu0 0.0
    %1442 = vmatprep.subr.mxu0 0.0
    %1443 = vmatpush2.xpose.msra.mxu0 0.0
    %1444 = vmatprep.subr.mxu0 0.0
    %1445 = vmatpush2.xpose.msra.mxu0 0.0
    %1446 = vmatprep.subr.mxu0 0.0
    %1447 = vmatpush2.xpose.msra.mxu0 0.0
    %1448 = vmatprep.subr.mxu0 0.0
    %1449 = vmatpush2.xpose.msra.mxu0 0.0
    %1450 = vmatprep.subr.mxu0 0.0
    %1451 = vmatpush2.xpose.msra.mxu0 0.0
    %1452 = vmatprep.subr.mxu0 0.0
    %1453 = vmatpush2.xpose.msra.mxu0 0.0
    %1454 = vmatprep.subr.mxu0 0.0
    %1455 = vmatpush2.xpose.msra.mxu0 0.0
    %1456 = vmatprep.subr.mxu0 0.0
    %1457 = vmatpush2.xpose.msra.mxu0 0.0
    %1458 = vmatprep.mubr.f32.mxu0 %v1155
    %1459 = vmatmul.mubr.f32.gmra.mxu0 %v1153
    %v1460 = vpop.f32.mrf.mxu0
    %v1461 = vadd.f32 0.0, %v1460
    %v1462 = vpop.f32.mrf.mxu0
    %1463 = vmatprep.mubr.f32.mxu0 %v1161
    %1464 = vmatmul.mubr.f32.gmra.mxu0 %v1159
    %v1465 = vpop.f32.mrf.mxu0
    %v1466 = vadd.f32 0.0, %v1465
    %v1467 = vpop.f32.mrf.mxu0
    %1468 = vdwg.mxu0
    %1469 = vmatprep.subr.mxu0 0.0
    %1470 = vmatpush1.xpose.msra.mxu0 0.0
    %1471 = vmatprep.subr.mxu0 0.0
    %1472 = vmatpush1.xpose.msra.mxu0 0.0
    %1473 = vmatprep.subr.mxu0 0.0
    %1474 = vmatpush1.xpose.msra.mxu0 0.0
    %1475 = vmatprep.subr.mxu0 0.0
    %1476 = vmatpush1.xpose.msra.mxu0 0.0
    %1477 = vmatprep.subr.mxu0 0.0
    %1478 = vmatpush1.xpose.msra.mxu0 0.0
    %1479 = vmatprep.subr.mxu0 0.0
    %1480 = vmatpush1.xpose.msra.mxu0 0.0
    %1481 = vmatprep.subr.mxu0 0.0
    %1482 = vmatpush1.xpose.msra.mxu0 0.0
    %1483 = vmatprep.subr.mxu0 0.0
    %1484 = vmatpush1.xpose.msra.mxu0 0.0
    %1485 = vmatprep.subr.mxu0 0.0
    %1486 = vmatpush1.xpose.msra.mxu0 0.0
    %1487 = vmatprep.subr.mxu0 0.0
    %1488 = vmatpush1.xpose.msra.mxu0 0.0
    %1489 = vmatprep.subr.mxu0 0.0
    %1490 = vmatpush1.xpose.msra.mxu0 0.0
    %1491 = vmatprep.subr.mxu0 0.0
    %1492 = vmatpush1.xpose.msra.mxu0 0.0
    %1493 = vmatprep.subr.mxu0 0.0
    %1494 = vmatpush1.xpose.msra.mxu0 0.0
    %1495 = vmatprep.subr.mxu0 0.0
    %1496 = vmatpush1.xpose.msra.mxu0 0.0
    %1497 = vmatprep.subr.mxu0 0.0
    %1498 = vmatpush1.xpose.msra.mxu0 0.0
    %1499 = vmatprep.subr.mxu0 %v1389
    %1500 = vmatpush1.xpose.msra.mxu0 %v1388
    %1501 = vmatprep.subr.mxu0 0.0
    %1502 = vmatpush2.xpose.msra.mxu0 0.0
    %1503 = vmatprep.subr.mxu0 0.0
    %1504 = vmatpush2.xpose.msra.mxu0 0.0
    %1505 = vmatprep.subr.mxu0 0.0
    %1506 = vmatpush2.xpose.msra.mxu0 0.0
    %1507 = vmatprep.subr.mxu0 0.0
    %1508 = vmatpush2.xpose.msra.mxu0 0.0
    %1509 = vmatprep.subr.mxu0 0.0
    %1510 = vmatpush2.xpose.msra.mxu0 0.0
    %1511 = vmatprep.subr.mxu0 0.0
    %1512 = vmatpush2.xpose.msra.mxu0 0.0
    %1513 = vmatprep.subr.mxu0 0.0
    %1514 = vmatpush2.xpose.msra.mxu0 0.0
    %1515 = vmatprep.subr.mxu0 0.0
    %1516 = vmatpush2.xpose.msra.mxu0 0.0
    %1517 = vmatprep.subr.mxu0 0.0
    %1518 = vmatpush2.xpose.msra.mxu0 0.0
    %1519 = vmatprep.subr.mxu0 0.0
    %1520 = vmatpush2.xpose.msra.mxu0 0.0
    %1521 = vmatprep.subr.mxu0 0.0
    %1522 = vmatpush2.xpose.msra.mxu0 0.0
    %1523 = vmatprep.subr.mxu0 0.0
    %1524 = vmatpush2.xpose.msra.mxu0 0.0
    %1525 = vmatprep.subr.mxu0 0.0
    %1526 = vmatpush2.xpose.msra.mxu0 0.0
    %1527 = vmatprep.subr.mxu0 0.0
    %1528 = vmatpush2.xpose.msra.mxu0 0.0
    %1529 = vmatprep.subr.mxu0 0.0
    %1530 = vmatpush2.xpose.msra.mxu0 0.0
    %1531 = vmatprep.subr.mxu0 0.0
    %1532 = vmatpush2.xpose.msra.mxu0 0.0
    %1533 = vmatprep.mubr.f32.mxu0 %v1333
    %1534 = vmatmul.mubr.f32.gmra.mxu0 %v1331
    %v1535 = vpop.f32.mrf.mxu0
    %v1536 = vadd.f32 %v1461, %v1535
    %v1537 = vpop.f32.mrf.mxu0
    %1538 = vmatprep.mubr.f32.mxu0 %v1339
    %1539 = vmatmul.mubr.f32.gmra.mxu0 %v1337
    %v1540 = vpop.f32.mrf.mxu0
    %v1541 = vadd.f32 %v1466, %v1540
    %v1542 = vpop.f32.mrf.mxu0
    %1543 = vdwg.mxu0
    %1544 = vmatprep.subr.mxu0 0.0
    %1545 = vmatpush1.xpose.msra.mxu0 0.0
    %1546 = vmatprep.subr.mxu0 0.0
    %1547 = vmatpush1.xpose.msra.mxu0 0.0
    %1548 = vmatprep.subr.mxu0 0.0
    %1549 = vmatpush1.xpose.msra.mxu0 0.0
    %1550 = vmatprep.subr.mxu0 0.0
    %1551 = vmatpush1.xpose.msra.mxu0 0.0
    %1552 = vmatprep.subr.mxu0 0.0
    %1553 = vmatpush1.xpose.msra.mxu0 0.0
    %1554 = vmatprep.subr.mxu0 0.0
    %1555 = vmatpush1.xpose.msra.mxu0 0.0
    %1556 = vmatprep.subr.mxu0 0.0
    %1557 = vmatpush1.xpose.msra.mxu0 0.0
    %1558 = vmatprep.subr.mxu0 0.0
    %1559 = vmatpush1.xpose.msra.mxu0 0.0
    %1560 = vmatprep.subr.mxu0 0.0
    %1561 = vmatpush1.xpose.msra.mxu0 0.0
    %1562 = vmatprep.subr.mxu0 0.0
    %1563 = vmatpush1.xpose.msra.mxu0 0.0
    %1564 = vmatprep.subr.mxu0 0.0
    %1565 = vmatpush1.xpose.msra.mxu0 0.0
    %1566 = vmatprep.subr.mxu0 0.0
    %1567 = vmatpush1.xpose.msra.mxu0 0.0
    %1568 = vmatprep.subr.mxu0 0.0
    %1569 = vmatpush1.xpose.msra.mxu0 0.0
    %1570 = vmatprep.subr.mxu0 0.0
    %1571 = vmatpush1.xpose.msra.mxu0 0.0
    %1572 = vmatprep.subr.mxu0 0.0
    %1573 = vmatpush1.xpose.msra.mxu0 0.0
    %1574 = vmatprep.subr.mxu0 %v1391
    %1575 = vmatpush1.xpose.msra.mxu0 %v1390
    %1576 = vmatprep.subr.mxu0 0.0
    %1577 = vmatpush2.xpose.msra.mxu0 0.0
    %1578 = vmatprep.subr.mxu0 0.0
    %1579 = vmatpush2.xpose.msra.mxu0 0.0
    %1580 = vmatprep.subr.mxu0 0.0
    %1581 = vmatpush2.xpose.msra.mxu0 0.0
    %1582 = vmatprep.subr.mxu0 0.0
    %1583 = vmatpush2.xpose.msra.mxu0 0.0
    %1584 = vmatprep.subr.mxu0 0.0
    %1585 = vmatpush2.xpose.msra.mxu0 0.0
    %1586 = vmatprep.subr.mxu0 0.0
    %1587 = vmatpush2.xpose.msra.mxu0 0.0
    %1588 = vmatprep.subr.mxu0 0.0
    %1589 = vmatpush2.xpose.msra.mxu0 0.0
    %1590 = vmatprep.subr.mxu0 0.0
    %1591 = vmatpush2.xpose.msra.mxu0 0.0
    %1592 = vmatprep.subr.mxu0 0.0
    %1593 = vmatpush2.xpose.msra.mxu0 0.0
    %1594 = vmatprep.subr.mxu0 0.0
    %1595 = vmatpush2.xpose.msra.mxu0 0.0
    %1596 = vmatprep.subr.mxu0 0.0
    %1597 = vmatpush2.xpose.msra.mxu0 0.0
    %1598 = vmatprep.subr.mxu0 0.0
    %1599 = vmatpush2.xpose.msra.mxu0 0.0
    %1600 = vmatprep.subr.mxu0 0.0
    %1601 = vmatpush2.xpose.msra.mxu0 0.0
    %1602 = vmatprep.subr.mxu0 0.0
    %1603 = vmatpush2.xpose.msra.mxu0 0.0
    %1604 = vmatprep.subr.mxu0 0.0
    %1605 = vmatpush2.xpose.msra.mxu0 0.0
    %1606 = vmatprep.subr.mxu0 0.0
    %1607 = vmatpush2.xpose.msra.mxu0 0.0
    %1608 = vmatprep.mubr.f32.mxu0 %v1167
    %1609 = vmatmul.mubr.f32.gmra.mxu0 %v1165
    %v1610 = vpop.f32.mrf.mxu0
    %v1611 = vadd.f32 0.0, %v1610
    %v1612 = vpop.f32.mrf.mxu0
    %1613 = vmatprep.mubr.f32.mxu0 %v1173
    %1614 = vmatmul.mubr.f32.gmra.mxu0 %v1171
    %v1615 = vpop.f32.mrf.mxu0
    %v1616 = vadd.f32 0.0, %v1615
    %v1617 = vpop.f32.mrf.mxu0
    %1618 = vdwg.mxu0
    %1619 = vmatprep.subr.mxu0 0.0
    %1620 = vmatpush1.xpose.msra.mxu0 0.0
    %1621 = vmatprep.subr.mxu0 0.0
    %1622 = vmatpush1.xpose.msra.mxu0 0.0
    %1623 = vmatprep.subr.mxu0 0.0
    %1624 = vmatpush1.xpose.msra.mxu0 0.0
    %1625 = vmatprep.subr.mxu0 0.0
    %1626 = vmatpush1.xpose.msra.mxu0 0.0
    %1627 = vmatprep.subr.mxu0 0.0
    %1628 = vmatpush1.xpose.msra.mxu0 0.0
    %1629 = vmatprep.subr.mxu0 0.0
    %1630 = vmatpush1.xpose.msra.mxu0 0.0
    %1631 = vmatprep.subr.mxu0 0.0
    %1632 = vmatpush1.xpose.msra.mxu0 0.0
    %1633 = vmatprep.subr.mxu0 0.0
    %1634 = vmatpush1.xpose.msra.mxu0 0.0
    %1635 = vmatprep.subr.mxu0 0.0
    %1636 = vmatpush1.xpose.msra.mxu0 0.0
    %1637 = vmatprep.subr.mxu0 0.0
    %1638 = vmatpush1.xpose.msra.mxu0 0.0
    %1639 = vmatprep.subr.mxu0 0.0
    %1640 = vmatpush1.xpose.msra.mxu0 0.0
    %1641 = vmatprep.subr.mxu0 0.0
    %1642 = vmatpush1.xpose.msra.mxu0 0.0
    %1643 = vmatprep.subr.mxu0 0.0
    %1644 = vmatpush1.xpose.msra.mxu0 0.0
    %1645 = vmatprep.subr.mxu0 0.0
    %1646 = vmatpush1.xpose.msra.mxu0 0.0
    %1647 = vmatprep.subr.mxu0 0.0
    %1648 = vmatpush1.xpose.msra.mxu0 0.0
    %1649 = vmatprep.subr.mxu0 %v1393
    %1650 = vmatpush1.xpose.msra.mxu0 %v1392
    %1651 = vmatprep.subr.mxu0 0.0
    %1652 = vmatpush2.xpose.msra.mxu0 0.0
    %1653 = vmatprep.subr.mxu0 0.0
    %1654 = vmatpush2.xpose.msra.mxu0 0.0
    %1655 = vmatprep.subr.mxu0 0.0
    %1656 = vmatpush2.xpose.msra.mxu0 0.0
    %1657 = vmatprep.subr.mxu0 0.0
    %1658 = vmatpush2.xpose.msra.mxu0 0.0
    %1659 = vmatprep.subr.mxu0 0.0
    %1660 = vmatpush2.xpose.msra.mxu0 0.0
    %1661 = vmatprep.subr.mxu0 0.0
    %1662 = vmatpush2.xpose.msra.mxu0 0.0
    %1663 = vmatprep.subr.mxu0 0.0
    %1664 = vmatpush2.xpose.msra.mxu0 0.0
    %1665 = vmatprep.subr.mxu0 0.0
    %1666 = vmatpush2.xpose.msra.mxu0 0.0
    %1667 = vmatprep.subr.mxu0 0.0
    %1668 = vmatpush2.xpose.msra.mxu0 0.0
    %1669 = vmatprep.subr.mxu0 0.0
    %1670 = vmatpush2.xpose.msra.mxu0 0.0
    %1671 = vmatprep.subr.mxu0 0.0
    %1672 = vmatpush2.xpose.msra.mxu0 0.0
    %1673 = vmatprep.subr.mxu0 0.0
    %1674 = vmatpush2.xpose.msra.mxu0 0.0
    %1675 = vmatprep.subr.mxu0 0.0
    %1676 = vmatpush2.xpose.msra.mxu0 0.0
    %1677 = vmatprep.subr.mxu0 0.0
    %1678 = vmatpush2.xpose.msra.mxu0 0.0
    %1679 = vmatprep.subr.mxu0 0.0
    %1680 = vmatpush2.xpose.msra.mxu0 0.0
    %1681 = vmatprep.subr.mxu0 0.0
    %1682 = vmatpush2.xpose.msra.mxu0 0.0
    %1683 = vmatprep.mubr.f32.mxu0 %v1345
    %1684 = vmatmul.mubr.f32.gmra.mxu0 %v1343
    %v1685 = vpop.f32.mrf.mxu0
    %v1686 = vadd.f32 %v1611, %v1685
    %v1687 = vpop.f32.mrf.mxu0
    %1688 = vmatprep.mubr.f32.mxu0 %v1351
    %1689 = vmatmul.mubr.f32.gmra.mxu0 %v1349
    %v1690 = vpop.f32.mrf.mxu0
    %v1691 = vadd.f32 %v1616, %v1690
    %v1692 = vpop.f32.mrf.mxu0
    %1693 = vdwg.mxu0
    %v1694 = vsel %vm129, 1, 0
    %v1695 = vsel %vm130, 1, 0
    %v1696 = vsel %vm131, 1, 0
    %v1697 = vsel %vm132, 1, 0
    %1698 = vset.pattern.permute.xlu0 0
    %1699 = vperm.xlu0 %1698, %v1694
    %v1700 = vpop.permute.xlu0 %1699
    %1701 = vset.pattern.permute.xlu0 0
    %1702 = vperm.xlu0 %1701, %v1695
    %v1703 = vpop.permute.xlu0 %1702
    %1704 = vset.pattern.permute.xlu0 0
    %1705 = vperm.xlu0 %1704, %v1696
    %v1706 = vpop.permute.xlu0 %1705
    %1707 = vset.pattern.permute.xlu0 0
    %1708 = vperm.xlu0 %1707, %v1697
    %v1709 = vpop.permute.xlu0 %1708
    %vm1710 = vcmp.eq.s32.totalorder %v1700, 1
    %vm1711 = vcmp.eq.s32.totalorder %v1703, 1
    %vm1712 = vcmp.eq.s32.totalorder %v1706, 1
    %vm1713 = vcmp.eq.s32.totalorder %v1709, 1
    %v1714 = vsel %vm1710, %v1536, -1e+30
    %v1715 = vsel %vm1711, %v1541, -1e+30
    %v1716 = vsel %vm1712, %v1686, -1e+30
    %v1717 = vsel %vm1713, %v1691, -1e+30
    %vm1718 = vcmask 64512
    %v1719 = vsel %vm1718, %v1714, -inf
    %v1720 = vsel %vm1718, %v1715, -inf
    %v1721 = vmax.f32 %v1719, %v1720
    %v1722 = vrot.slane %v1721, 4
    %v1723 = vmax.f32 %v1721, %v1722
    %v1724 = vrot.slane %v1723, 2
    %v1725 = vmax.f32 %v1723, %v1724
    %v1726 = vrot.slane %v1725, 1
    %v1727 = vmax.f32 %v1725, %v1726
    %v1728 = vsel %vm1718, %v1716, -inf
    %v1729 = vsel %vm1718, %v1717, -inf
    %v1730 = vmax.f32 %v1728, %v1729
    %v1731 = vrot.slane %v1730, 4
    %v1732 = vmax.f32 %v1730, %v1731
    %v1733 = vrot.slane %v1732, 2
    %v1734 = vmax.f32 %v1732, %v1733
    %v1735 = vrot.slane %v1734, 1
    %v1736 = vmax.f32 %v1734, %v1735
    %v1737 = vsub.f32 %v1714, %v1727
    %v1738 = vsub.f32 %v1715, %v1727
    %v1739 = vsub.f32 %v1716, %v1736
    %v1740 = vsub.f32 %v1717, %v1736
    %v1741 = vmul.f32 %v1737, 1.442695
    %v1742 = vpow.pop %v1741
    %v1743 = vmul.f32 %v1738, 1.442695
    %v1744 = vpow.pop %v1743
    %v1745 = vmul.f32 %v1739, 1.442695
    %v1746 = vpow.pop %v1745
    %v1747 = vmul.f32 %v1740, 1.442695
    %v1748 = vpow.pop %v1747
    %v1749 = vsel %vm1710, %v1742, 0.0
    %v1750 = vsel %vm1711, %v1744, 0.0
    %v1751 = vsel %vm1712, %v1746, 0.0
    %v1752 = vsel %vm1713, %v1748, 0.0
    %v1753 = vsel %vm1718, %v1749, 0.0
    %v1754 = vsel %vm1718, %v1750, 0.0
    %v1755 = vadd.f32 %v1753, %v1754
    %v1756 = vrot.slane %v1755, 4
    %v1757 = vadd.f32 %v1755, %v1756
    %v1758 = vrot.slane %v1757, 2
    %v1759 = vadd.f32 %v1757, %v1758
    %v1760 = vrot.slane %v1759, 1
    %v1761 = vadd.f32 %v1759, %v1760
    %v1762 = vsel %vm1718, %v1751, 0.0
    %v1763 = vsel %vm1718, %v1752, 0.0
    %v1764 = vadd.f32 %v1762, %v1763
    %v1765 = vrot.slane %v1764, 4
    %v1766 = vadd.f32 %v1764, %v1765
    %v1767 = vrot.slane %v1766, 2
    %v1768 = vadd.f32 %v1766, %v1767
    %v1769 = vrot.slane %v1768, 1
    %v1770 = vadd.f32 %v1768, %v1769
    %vm1771 = vcmp.eq.f32.partialorder %v1761, 0.0
    %vm1772 = vcmp.eq.f32.partialorder %v1770, 0.0
    %v1773 = vsel %vm1771, 1.0, %v1761
    %v1774 = vsel %vm1772, 1.0, %v1770
    %v1775 = vrcp.pop %v1773
    %v1776 = vmul.f32 %v1749, %v1775
    %v1777 = vmul.f32 %v1750, %v1775
    %v1778 = vrcp.pop %v1774
    %v1779 = vmul.f32 %v1751, %v1778
    %v1780 = vmul.f32 %v1752, %v1778
    %v1782 = vsel %vm1718, %v1776, 0
    %v1785 = vsel %vm1718, %v1777, 0
    %1787 = vmatprep.subr.mxu0 0.0
    %1788 = vmatpush1.msra.mxu0 0.0
    %1789 = vmatprep.subr.mxu0 0.0
    %1790 = vmatpush1.msra.mxu0 0.0
    %1791 = vmatprep.subr.mxu0 0.0
    %1792 = vmatpush1.msra.mxu0 0.0
    %1793 = vmatprep.subr.mxu0 0.0
    %1794 = vmatpush1.msra.mxu0 0.0
    %1795 = vmatprep.subr.mxu0 0.0
    %1796 = vmatpush1.msra.mxu0 0.0
    %1797 = vmatprep.subr.mxu0 0.0
    %1798 = vmatpush1.msra.mxu0 0.0
    %1799 = vmatprep.subr.mxu0 0.0
    %1800 = vmatpush1.msra.mxu0 0.0
    %1801 = vmatprep.subr.mxu0 0.0
    %1802 = vmatpush1.msra.mxu0 0.0
    %1803 = vmatprep.subr.mxu0 0.0
    %1804 = vmatpush1.msra.mxu0 0.0
    %1805 = vmatprep.subr.mxu0 0.0
    %1806 = vmatpush1.msra.mxu0 0.0
    %1807 = vmatprep.subr.mxu0 0.0
    %1808 = vmatpush1.msra.mxu0 0.0
    %1809 = vmatprep.subr.mxu0 0.0
    %1810 = vmatpush1.msra.mxu0 0.0
    %1811 = vmatprep.subr.mxu0 0.0
    %1812 = vmatpush1.msra.mxu0 0.0
    %1813 = vmatprep.subr.mxu0 0.0
    %1814 = vmatpush1.msra.mxu0 0.0
    %1815 = vmatprep.subr.mxu0 0.0
    %1816 = vmatpush1.msra.mxu0 0.0
    %1817 = vmatprep.subr.mxu0 %v118
    %1818 = vmatpush1.msra.mxu0 %v117
    %1819 = vmatprep.subr.mxu0 0.0
    %1820 = vmatpush2.msra.mxu0 0.0
    %1821 = vmatprep.subr.mxu0 0.0
    %1822 = vmatpush2.msra.mxu0 0.0
    %1823 = vmatprep.subr.mxu0 0.0
    %1824 = vmatpush2.msra.mxu0 0.0
    %1825 = vmatprep.subr.mxu0 0.0
    %1826 = vmatpush2.msra.mxu0 0.0
    %1827 = vmatprep.subr.mxu0 0.0
    %1828 = vmatpush2.msra.mxu0 0.0
    %1829 = vmatprep.subr.mxu0 0.0
    %1830 = vmatpush2.msra.mxu0 0.0
    %1831 = vmatprep.subr.mxu0 0.0
    %1832 = vmatpush2.msra.mxu0 0.0
    %1833 = vmatprep.subr.mxu0 0.0
    %1834 = vmatpush2.msra.mxu0 0.0
    %1835 = vmatprep.subr.mxu0 0.0
    %1836 = vmatpush2.msra.mxu0 0.0
    %1837 = vmatprep.subr.mxu0 0.0
    %1838 = vmatpush2.msra.mxu0 0.0
    %1839 = vmatprep.subr.mxu0 0.0
    %1840 = vmatpush2.msra.mxu0 0.0
    %1841 = vmatprep.subr.mxu0 0.0
    %1842 = vmatpush2.msra.mxu0 0.0
    %1843 = vmatprep.subr.mxu0 0.0
    %1844 = vmatpush2.msra.mxu0 0.0
    %1845 = vmatprep.subr.mxu0 0.0
    %1846 = vmatpush2.msra.mxu0 0.0
    %1847 = vmatprep.subr.mxu0 0.0
    %1848 = vmatpush2.msra.mxu0 0.0
    %1849 = vmatprep.subr.mxu0 0.0
    %1850 = vmatpush2.msra.mxu0 0.0
    %1851 = vmatprep.mubr.f32.mxu0 0.0
    %1852 = vmatmul.mubr.f32.gmra.mxu0 %v1782
    %v1853 = vpop.f32.mrf.mxu0
    %v1854 = vadd.f32 0.0, %v1853
    %v1855 = vpop.f32.mrf.mxu0
    %v1856 = vadd.f32 0.0, %v1855
    %1857 = vmatprep.mubr.f32.mxu0 0.0
    %1858 = vmatmul.mubr.f32.gmra.mxu0 %v1785
    %v1859 = vpop.f32.mrf.mxu0
    %v1860 = vadd.f32 0.0, %v1859
    %v1861 = vpop.f32.mrf.mxu0
    %v1862 = vadd.f32 0.0, %v1861
    %1863 = vdwg.mxu0
    %1864 = vmatprep.subr.mxu0 0.0
    %1865 = vmatpush1.msra.mxu0 0.0
    %1866 = vmatprep.subr.mxu0 0.0
    %1867 = vmatpush1.msra.mxu0 0.0
    %1868 = vmatprep.subr.mxu0 0.0
    %1869 = vmatpush1.msra.mxu0 0.0
    %1870 = vmatprep.subr.mxu0 0.0
    %1871 = vmatpush1.msra.mxu0 0.0
    %1872 = vmatprep.subr.mxu0 0.0
    %1873 = vmatpush1.msra.mxu0 0.0
    %1874 = vmatprep.subr.mxu0 0.0
    %1875 = vmatpush1.msra.mxu0 0.0
    %1876 = vmatprep.subr.mxu0 0.0
    %1877 = vmatpush1.msra.mxu0 0.0
    %1878 = vmatprep.subr.mxu0 0.0
    %1879 = vmatpush1.msra.mxu0 0.0
    %1880 = vmatprep.subr.mxu0 0.0
    %1881 = vmatpush1.msra.mxu0 0.0
    %1882 = vmatprep.subr.mxu0 0.0
    %1883 = vmatpush1.msra.mxu0 0.0
    %1884 = vmatprep.subr.mxu0 0.0
    %1885 = vmatpush1.msra.mxu0 0.0
    %1886 = vmatprep.subr.mxu0 0.0
    %1887 = vmatpush1.msra.mxu0 0.0
    %1888 = vmatprep.subr.mxu0 0.0
    %1889 = vmatpush1.msra.mxu0 0.0
    %1890 = vmatprep.subr.mxu0 0.0
    %1891 = vmatpush1.msra.mxu0 0.0
    %1892 = vmatprep.subr.mxu0 0.0
    %1893 = vmatpush1.msra.mxu0 0.0
    %1894 = vmatprep.subr.mxu0 %v120
    %1895 = vmatpush1.msra.mxu0 %v119
    %1896 = vmatprep.subr.mxu0 0.0
    %1897 = vmatpush2.msra.mxu0 0.0
    %1898 = vmatprep.subr.mxu0 0.0
    %1899 = vmatpush2.msra.mxu0 0.0
    %1900 = vmatprep.subr.mxu0 0.0
    %1901 = vmatpush2.msra.mxu0 0.0
    %1902 = vmatprep.subr.mxu0 0.0
    %1903 = vmatpush2.msra.mxu0 0.0
    %1904 = vmatprep.subr.mxu0 0.0
    %1905 = vmatpush2.msra.mxu0 0.0
    %1906 = vmatprep.subr.mxu0 0.0
    %1907 = vmatpush2.msra.mxu0 0.0
    %1908 = vmatprep.subr.mxu0 0.0
    %1909 = vmatpush2.msra.mxu0 0.0
    %1910 = vmatprep.subr.mxu0 0.0
    %1911 = vmatpush2.msra.mxu0 0.0
    %1912 = vmatprep.subr.mxu0 0.0
    %1913 = vmatpush2.msra.mxu0 0.0
    %1914 = vmatprep.subr.mxu0 0.0
    %1915 = vmatpush2.msra.mxu0 0.0
    %1916 = vmatprep.subr.mxu0 0.0
    %1917 = vmatpush2.msra.mxu0 0.0
    %1918 = vmatprep.subr.mxu0 0.0
    %1919 = vmatpush2.msra.mxu0 0.0
    %1920 = vmatprep.subr.mxu0 0.0
    %1921 = vmatpush2.msra.mxu0 0.0
    %1922 = vmatprep.subr.mxu0 0.0
    %1923 = vmatpush2.msra.mxu0 0.0
    %1924 = vmatprep.subr.mxu0 0.0
    %1925 = vmatpush2.msra.mxu0 0.0
    %1926 = vmatprep.subr.mxu0 0.0
    %1927 = vmatpush2.msra.mxu0 0.0
    %1928 = vmatprep.mubr.f32.mxu0 0.0
    %1929 = vmatmul.mubr.f32.gmra.mxu0 %v1782
    %v1930 = vpop.f32.mrf.mxu0
    %v1931 = vadd.f32 0.0, %v1930
    %v1932 = vpop.f32.mrf.mxu0
    %v1933 = vadd.f32 0.0, %v1932
    %1934 = vmatprep.mubr.f32.mxu0 0.0
    %1935 = vmatmul.mubr.f32.gmra.mxu0 %v1785
    %v1936 = vpop.f32.mrf.mxu0
    %v1937 = vadd.f32 0.0, %v1936
    %v1938 = vpop.f32.mrf.mxu0
    %v1939 = vadd.f32 0.0, %v1938
    %1940 = vdwg.mxu0
    %v1942 = vsel %vm1718, %v1779, 0
    %v1945 = vsel %vm1718, %v1780, 0
    %1947 = vmatprep.subr.mxu0 0.0
    %1948 = vmatpush1.msra.mxu0 0.0
    %1949 = vmatprep.subr.mxu0 0.0
    %1950 = vmatpush1.msra.mxu0 0.0
    %1951 = vmatprep.subr.mxu0 0.0
    %1952 = vmatpush1.msra.mxu0 0.0
    %1953 = vmatprep.subr.mxu0 0.0
    %1954 = vmatpush1.msra.mxu0 0.0
    %1955 = vmatprep.subr.mxu0 0.0
    %1956 = vmatpush1.msra.mxu0 0.0
    %1957 = vmatprep.subr.mxu0 0.0
    %1958 = vmatpush1.msra.mxu0 0.0
    %1959 = vmatprep.subr.mxu0 0.0
    %1960 = vmatpush1.msra.mxu0 0.0
    %1961 = vmatprep.subr.mxu0 0.0
    %1962 = vmatpush1.msra.mxu0 0.0
    %1963 = vmatprep.subr.mxu0 0.0
    %1964 = vmatpush1.msra.mxu0 0.0
    %1965 = vmatprep.subr.mxu0 0.0
    %1966 = vmatpush1.msra.mxu0 0.0
    %1967 = vmatprep.subr.mxu0 0.0
    %1968 = vmatpush1.msra.mxu0 0.0
    %1969 = vmatprep.subr.mxu0 0.0
    %1970 = vmatpush1.msra.mxu0 0.0
    %1971 = vmatprep.subr.mxu0 0.0
    %1972 = vmatpush1.msra.mxu0 0.0
    %1973 = vmatprep.subr.mxu0 0.0
    %1974 = vmatpush1.msra.mxu0 0.0
    %1975 = vmatprep.subr.mxu0 0.0
    %1976 = vmatpush1.msra.mxu0 0.0
    %1977 = vmatprep.subr.mxu0 %v122
    %1978 = vmatpush1.msra.mxu0 %v121
    %1979 = vmatprep.subr.mxu0 0.0
    %1980 = vmatpush2.msra.mxu0 0.0
    %1981 = vmatprep.subr.mxu0 0.0
    %1982 = vmatpush2.msra.mxu0 0.0
    %1983 = vmatprep.subr.mxu0 0.0
    %1984 = vmatpush2.msra.mxu0 0.0
    %1985 = vmatprep.subr.mxu0 0.0
    %1986 = vmatpush2.msra.mxu0 0.0
    %1987 = vmatprep.subr.mxu0 0.0
    %1988 = vmatpush2.msra.mxu0 0.0
    %1989 = vmatprep.subr.mxu0 0.0
    %1990 = vmatpush2.msra.mxu0 0.0
    %1991 = vmatprep.subr.mxu0 0.0
    %1992 = vmatpush2.msra.mxu0 0.0
    %1993 = vmatprep.subr.mxu0 0.0
    %1994 = vmatpush2.msra.mxu0 0.0
    %1995 = vmatprep.subr.mxu0 0.0
    %1996 = vmatpush2.msra.mxu0 0.0
    %1997 = vmatprep.subr.mxu0 0.0
    %1998 = vmatpush2.msra.mxu0 0.0
    %1999 = vmatprep.subr.mxu0 0.0
    %2000 = vmatpush2.msra.mxu0 0.0
    %2001 = vmatprep.subr.mxu0 0.0
    %2002 = vmatpush2.msra.mxu0 0.0
    %2003 = vmatprep.subr.mxu0 0.0
    %2004 = vmatpush2.msra.mxu0 0.0
    %2005 = vmatprep.subr.mxu0 0.0
    %2006 = vmatpush2.msra.mxu0 0.0
    %2007 = vmatprep.subr.mxu0 0.0
    %2008 = vmatpush2.msra.mxu0 0.0
    %2009 = vmatprep.subr.mxu0 0.0
    %2010 = vmatpush2.msra.mxu0 0.0
    %2011 = vmatprep.mubr.f32.mxu0 0.0
    %2012 = vmatmul.mubr.f32.gmra.mxu0 %v1942
    %v2013 = vpop.f32.mrf.mxu0
    %v2014 = vadd.f32 0.0, %v2013
    %v2015 = vpop.f32.mrf.mxu0
    %v2016 = vadd.f32 0.0, %v2015
    %2017 = vmatprep.mubr.f32.mxu0 0.0
    %2018 = vmatmul.mubr.f32.gmra.mxu0 %v1945
    %v2019 = vpop.f32.mrf.mxu0
    %v2020 = vadd.f32 0.0, %v2019
    %v2021 = vpop.f32.mrf.mxu0
    %v2022 = vadd.f32 0.0, %v2021
    %2023 = vdwg.mxu0
    %2024 = vmatprep.subr.mxu0 0.0
    %2025 = vmatpush1.msra.mxu0 0.0
    %2026 = vmatprep.subr.mxu0 0.0
    %2027 = vmatpush1.msra.mxu0 0.0
    %2028 = vmatprep.subr.mxu0 0.0
    %2029 = vmatpush1.msra.mxu0 0.0
    %2030 = vmatprep.subr.mxu0 0.0
    %2031 = vmatpush1.msra.mxu0 0.0
    %2032 = vmatprep.subr.mxu0 0.0
    %2033 = vmatpush1.msra.mxu0 0.0
    %2034 = vmatprep.subr.mxu0 0.0
    %2035 = vmatpush1.msra.mxu0 0.0
    %2036 = vmatprep.subr.mxu0 0.0
    %2037 = vmatpush1.msra.mxu0 0.0
    %2038 = vmatprep.subr.mxu0 0.0
    %2039 = vmatpush1.msra.mxu0 0.0
    %2040 = vmatprep.subr.mxu0 0.0
    %2041 = vmatpush1.msra.mxu0 0.0
    %2042 = vmatprep.subr.mxu0 0.0
    %2043 = vmatpush1.msra.mxu0 0.0
    %2044 = vmatprep.subr.mxu0 0.0
    %2045 = vmatpush1.msra.mxu0 0.0
    %2046 = vmatprep.subr.mxu0 0.0
    %2047 = vmatpush1.msra.mxu0 0.0
    %2048 = vmatprep.subr.mxu0 0.0
    %2049 = vmatpush1.msra.mxu0 0.0
    %2050 = vmatprep.subr.mxu0 0.0
    %2051 = vmatpush1.msra.mxu0 0.0
    %2052 = vmatprep.subr.mxu0 0.0
    %2053 = vmatpush1.msra.mxu0 0.0
    %2054 = vmatprep.subr.mxu0 %v124
    %2055 = vmatpush1.msra.mxu0 %v123
    %2056 = vmatprep.subr.mxu0 0.0
    %2057 = vmatpush2.msra.mxu0 0.0
    %2058 = vmatprep.subr.mxu0 0.0
    %2059 = vmatpush2.msra.mxu0 0.0
    %2060 = vmatprep.subr.mxu0 0.0
    %2061 = vmatpush2.msra.mxu0 0.0
    %2062 = vmatprep.subr.mxu0 0.0
    %2063 = vmatpush2.msra.mxu0 0.0
    %2064 = vmatprep.subr.mxu0 0.0
    %2065 = vmatpush2.msra.mxu0 0.0
    %2066 = vmatprep.subr.mxu0 0.0
    %2067 = vmatpush2.msra.mxu0 0.0
    %2068 = vmatprep.subr.mxu0 0.0
    %2069 = vmatpush2.msra.mxu0 0.0
    %2070 = vmatprep.subr.mxu0 0.0
    %2071 = vmatpush2.msra.mxu0 0.0
    %2072 = vmatprep.subr.mxu0 0.0
    %2073 = vmatpush2.msra.mxu0 0.0
    %2074 = vmatprep.subr.mxu0 0.0
    %2075 = vmatpush2.msra.mxu0 0.0
    %2076 = vmatprep.subr.mxu0 0.0
    %2077 = vmatpush2.msra.mxu0 0.0
    %2078 = vmatprep.subr.mxu0 0.0
    %2079 = vmatpush2.msra.mxu0 0.0
    %2080 = vmatprep.subr.mxu0 0.0
    %2081 = vmatpush2.msra.mxu0 0.0
    %2082 = vmatprep.subr.mxu0 0.0
    %2083 = vmatpush2.msra.mxu0 0.0
    %2084 = vmatprep.subr.mxu0 0.0
    %2085 = vmatpush2.msra.mxu0 0.0
    %2086 = vmatprep.subr.mxu0 0.0
    %2087 = vmatpush2.msra.mxu0 0.0
    %2088 = vmatprep.mubr.f32.mxu0 0.0
    %2089 = vmatmul.mubr.f32.gmra.mxu0 %v1942
    %v2090 = vpop.f32.mrf.mxu0
    %v2091 = vadd.f32 0.0, %v2090
    %v2092 = vpop.f32.mrf.mxu0
    %v2093 = vadd.f32 0.0, %v2092
    %2094 = vmatprep.mubr.f32.mxu0 0.0
    %2095 = vmatmul.mubr.f32.gmra.mxu0 %v1945
    %v2096 = vpop.f32.mrf.mxu0
    %v2097 = vadd.f32 0.0, %v2096
    %v2098 = vpop.f32.mrf.mxu0
    %v2099 = vadd.f32 0.0, %v2098
    %2100 = vdwg.mxu0
    %v2101 = vmul.f32 %v101, 0.5
    %v2102 = vmul.f32 %v102, 0.5
    %v2103 = vmul.f32 %v103, 0.5
    %v2104 = vmul.f32 %v104, 0.5
    %v2105 = vmul.f32 %v105, 0.5
    %v2106 = vmul.f32 %v106, 0.5
    %v2107 = vmul.f32 %v107, 0.5
    %v2108 = vmul.f32 %v108, 0.5
    %v2109 = vmul.f32 %v109, 0.5
    %v2110 = vmul.f32 %v110, 0.5
    %v2111 = vmul.f32 %v111, 0.5
    %v2112 = vmul.f32 %v112, 0.5
    %v2113 = vmul.f32 %v113, 0.5
    %v2114 = vmul.f32 %v114, 0.5
    %v2115 = vmul.f32 %v115, 0.5
    %v2116 = vmul.f32 %v116, 0.5
    %v2117 = vmul.f32 %v1854, 0.5
    %v2118 = vmul.f32 %v1856, 0.5
    %v2119 = vmul.f32 %v1931, 0.5
    %v2120 = vmul.f32 %v1933, 0.5
    %v2121 = vmul.f32 %v1860, 0.5
    %v2122 = vmul.f32 %v1862, 0.5
    %v2123 = vmul.f32 %v1937, 0.5
    %v2124 = vmul.f32 %v1939, 0.5
    %v2125 = vmul.f32 %v2014, 0.5
    %v2126 = vmul.f32 %v2016, 0.5
    %v2127 = vmul.f32 %v2091, 0.5
    %v2128 = vmul.f32 %v2093, 0.5
    %v2129 = vmul.f32 %v2020, 0.5
    %v2130 = vmul.f32 %v2022, 0.5
    %v2131 = vmul.f32 %v2097, 0.5
    %v2132 = vmul.f32 %v2099, 0.5
    %v2133 = vadd.f32 %v2101, %v2117
    %v2134 = vadd.f32 %v2102, %v2118
    %v2135 = vadd.f32 %v2103, %v2119
    %v2136 = vadd.f32 %v2104, %v2120
    %v2137 = vadd.f32 %v2105, %v2121
    %v2138 = vadd.f32 %v2106, %v2122
    %v2139 = vadd.f32 %v2107, %v2123
    %v2140 = vadd.f32 %v2108, %v2124
    %v2141 = vadd.f32 %v2109, %v2125
    %v2142 = vadd.f32 %v2110, %v2126
    %v2143 = vadd.f32 %v2111, %v2127
    %v2144 = vadd.f32 %v2112, %v2128
    %v2145 = vadd.f32 %v2113, %v2129
    %v2146 = vadd.f32 %v2114, %v2130
    %v2147 = vadd.f32 %v2115, %v2131
    %v2148 = vadd.f32 %v2116, %v2132
    %v2149 = vld [vmem:[#allocation10] sm:$0xff]
    %v2150 = vld [vmem:[#allocation10 + $0x8] sm:$0xff]
    %v2151 = vld [vmem:[#allocation10 + $0x10] sm:$0xff]
    %v2152 = vld [vmem:[#allocation10 + $0x18] sm:$0xff]
    %v2153 = vld [vmem:[#allocation10 + $0x20] sm:$0xff]
    %v2154 = vld [vmem:[#allocation10 + $0x28] sm:$0xff]
    %v2155 = vld [vmem:[#allocation10 + $0x30] sm:$0xff]
    %v2156 = vld [vmem:[#allocation10 + $0x38] sm:$0xff]
    %v2157 = vld [vmem:[#allocation10 + $0x40] sm:$0xff]
    %v2158 = vld [vmem:[#allocation10 + $0x48] sm:$0xff]
    %v2159 = vld [vmem:[#allocation10 + $0x50] sm:$0xff]
    %v2160 = vld [vmem:[#allocation10 + $0x58] sm:$0xff]
    %v2161 = vld [vmem:[#allocation10 + $0x60] sm:$0xff]
    %v2162 = vld [vmem:[#allocation10 + $0x68] sm:$0xff]
    %v2163 = vld [vmem:[#allocation10 + $0x70] sm:$0xff]
    %v2164 = vld [vmem:[#allocation10 + $0x78] sm:$0xff]
    %v2165 = vld [vmem:[#allocation10 + $0x80] sm:$0xff]
    %v2166 = vld [vmem:[#allocation10 + $0x88] sm:$0xff]
    %v2167 = vld [vmem:[#allocation10 + $0x90] sm:$0xff]
    %v2168 = vld [vmem:[#allocation10 + $0x98] sm:$0xff]
    %v2169 = vld [vmem:[#allocation10 + $0xa0] sm:$0xff]
    %v2170 = vld [vmem:[#allocation10 + $0xa8] sm:$0xff]
    %v2171 = vld [vmem:[#allocation10 + $0xb0] sm:$0xff]
    %v2172 = vld [vmem:[#allocation10 + $0xb8] sm:$0xff]
    %v2173 = vld [vmem:[#allocation10 + $0xc0] sm:$0xff]
    %v2174 = vld [vmem:[#allocation10 + $0xc8] sm:$0xff]
    %v2175 = vld [vmem:[#allocation10 + $0xd0] sm:$0xff]
    %v2176 = vld [vmem:[#allocation10 + $0xd8] sm:$0xff]
    %v2177 = vld [vmem:[#allocation10 + $0xe0] sm:$0xff]
    %v2178 = vld [vmem:[#allocation10 + $0xe8] sm:$0xff]
    %v2179 = vld [vmem:[#allocation10 + $0xf0] sm:$0xff]
    %v2180 = vld [vmem:[#allocation10 + $0xf8] sm:$0xff]
    %v2181 = vld [vmem:[#allocation10 + $0x100] sm:$0xff]
    %v2182 = vld [vmem:[#allocation10 + $0x108] sm:$0xff]
    %v2183 = vld [vmem:[#allocation10 + $0x110] sm:$0xff]
    %v2184 = vld [vmem:[#allocation10 + $0x118] sm:$0xff]
    %v2185 = vld [vmem:[#allocation10 + $0x120] sm:$0xff]
    %v2186 = vld [vmem:[#allocation10 + $0x128] sm:$0xff]
    %v2187 = vld [vmem:[#allocation10 + $0x130] sm:$0xff]
    %v2188 = vld [vmem:[#allocation10 + $0x138] sm:$0xff]
    %v2189 = vld [vmem:[#allocation10 + $0x140] sm:$0xff]
    %v2190 = vld [vmem:[#allocation10 + $0x148] sm:$0xff]
    %v2191 = vld [vmem:[#allocation10 + $0x150] sm:$0xff]
    %v2192 = vld [vmem:[#allocation10 + $0x158] sm:$0xff]
    %v2193 = vld [vmem:[#allocation10 + $0x160] sm:$0xff]
    %v2194 = vld [vmem:[#allocation10 + $0x168] sm:$0xff]
    %v2195 = vld [vmem:[#allocation10 + $0x170] sm:$0xff]
    %v2196 = vld [vmem:[#allocation10 + $0x178] sm:$0xff]
    %v2197 = vld [vmem:[#allocation10 + $0x180] sm:$0xff]
    %v2198 = vld [vmem:[#allocation10 + $0x188] sm:$0xff]
    %v2199 = vld [vmem:[#allocation10 + $0x190] sm:$0xff]
    %v2200 = vld [vmem:[#allocation10 + $0x198] sm:$0xff]
    %v2201 = vld [vmem:[#allocation10 + $0x1a0] sm:$0xff]
    %v2202 = vld [vmem:[#allocation10 + $0x1a8] sm:$0xff]
    %v2203 = vld [vmem:[#allocation10 + $0x1b0] sm:$0xff]
    %v2204 = vld [vmem:[#allocation10 + $0x1b8] sm:$0xff]
    %v2205 = vld [vmem:[#allocation10 + $0x1c0] sm:$0xff]
    %v2206 = vld [vmem:[#allocation10 + $0x1c8] sm:$0xff]
    %v2207 = vld [vmem:[#allocation10 + $0x1d0] sm:$0xff]
    %v2208 = vld [vmem:[#allocation10 + $0x1d8] sm:$0xff]
    %v2209 = vld [vmem:[#allocation10 + $0x1e0] sm:$0xff]
    %v2210 = vld [vmem:[#allocation10 + $0x1e8] sm:$0xff]
    %v2211 = vld [vmem:[#allocation10 + $0x1f0] sm:$0xff]
    %v2212 = vld [vmem:[#allocation10 + $0x1f8] sm:$0xff]
    %v2213 = vld [vmem:[#allocation10 + $0x200] sm:$0xff]
    %v2214 = vld [vmem:[#allocation10 + $0x208] sm:$0xff]
    %v2215 = vld [vmem:[#allocation10 + $0x210] sm:$0xff]
    %v2216 = vld [vmem:[#allocation10 + $0x218] sm:$0xff]
    %v2217 = vld [vmem:[#allocation10 + $0x220] sm:$0xff]
    %v2218 = vld [vmem:[#allocation10 + $0x228] sm:$0xff]
    %v2219 = vld [vmem:[#allocation10 + $0x230] sm:$0xff]
    %v2220 = vld [vmem:[#allocation10 + $0x238] sm:$0xff]
    %v2221 = vld [vmem:[#allocation10 + $0x240] sm:$0xff]
    %v2222 = vld [vmem:[#allocation10 + $0x248] sm:$0xff]
    %v2223 = vld [vmem:[#allocation10 + $0x250] sm:$0xff]
    %v2224 = vld [vmem:[#allocation10 + $0x258] sm:$0xff]
    %v2225 = vld [vmem:[#allocation10 + $0x260] sm:$0xff]
    %v2226 = vld [vmem:[#allocation10 + $0x268] sm:$0xff]
    %v2227 = vld [vmem:[#allocation10 + $0x270] sm:$0xff]
    %v2228 = vld [vmem:[#allocation10 + $0x278] sm:$0xff]
    %v2229 = vld [vmem:[#allocation10 + $0x280] sm:$0xff]
    %v2230 = vld [vmem:[#allocation10 + $0x288] sm:$0xff]
    %v2231 = vld [vmem:[#allocation10 + $0x290] sm:$0xff]
    %v2232 = vld [vmem:[#allocation10 + $0x298] sm:$0xff]
    %v2233 = vld [vmem:[#allocation10 + $0x2a0] sm:$0xff]
    %v2234 = vld [vmem:[#allocation10 + $0x2a8] sm:$0xff]
    %v2235 = vld [vmem:[#allocation10 + $0x2b0] sm:$0xff]
    %v2236 = vld [vmem:[#allocation10 + $0x2b8] sm:$0xff]
    %v2237 = vld [vmem:[#allocation10 + $0x2c0] sm:$0xff]
    %v2238 = vld [vmem:[#allocation10 + $0x2c8] sm:$0xff]
    %v2239 = vld [vmem:[#allocation10 + $0x2d0] sm:$0xff]
    %v2240 = vld [vmem:[#allocation10 + $0x2d8] sm:$0xff]
    %v2241 = vld [vmem:[#allocation10 + $0x2e0] sm:$0xff]
    %v2242 = vld [vmem:[#allocation10 + $0x2e8] sm:$0xff]
    %v2243 = vld [vmem:[#allocation10 + $0x2f0] sm:$0xff]
    %v2244 = vld [vmem:[#allocation10 + $0x2f8] sm:$0xff]
    %v2245 = vld [vmem:[#allocation10 + $0x300] sm:$0xff]
    %v2246 = vld [vmem:[#allocation10 + $0x308] sm:$0xff]
    %v2247 = vld [vmem:[#allocation10 + $0x310] sm:$0xff]
    %v2248 = vld [vmem:[#allocation10 + $0x318] sm:$0xff]
    %v2249 = vld [vmem:[#allocation10 + $0x320] sm:$0xff]
    %v2250 = vld [vmem:[#allocation10 + $0x328] sm:$0xff]
    %v2251 = vld [vmem:[#allocation10 + $0x330] sm:$0xff]
    %v2252 = vld [vmem:[#allocation10 + $0x338] sm:$0xff]
    %v2253 = vld [vmem:[#allocation10 + $0x340] sm:$0xff]
    %v2254 = vld [vmem:[#allocation10 + $0x348] sm:$0xff]
    %v2255 = vld [vmem:[#allocation10 + $0x350] sm:$0xff]
    %v2256 = vld [vmem:[#allocation10 + $0x358] sm:$0xff]
    %v2257 = vld [vmem:[#allocation10 + $0x360] sm:$0xff]
    %v2258 = vld [vmem:[#allocation10 + $0x368] sm:$0xff]
    %v2259 = vld [vmem:[#allocation10 + $0x370] sm:$0xff]
    %v2260 = vld [vmem:[#allocation10 + $0x378] sm:$0xff]
    %v2261 = vld [vmem:[#allocation10 + $0x380] sm:$0xff]
    %v2262 = vld [vmem:[#allocation10 + $0x388] sm:$0xff]
    %v2263 = vld [vmem:[#allocation10 + $0x390] sm:$0xff]
    %v2264 = vld [vmem:[#allocation10 + $0x398] sm:$0xff]
    %v2265 = vld [vmem:[#allocation10 + $0x3a0] sm:$0xff]
    %v2266 = vld [vmem:[#allocation10 + $0x3a8] sm:$0xff]
    %v2267 = vld [vmem:[#allocation10 + $0x3b0] sm:$0xff]
    %v2268 = vld [vmem:[#allocation10 + $0x3b8] sm:$0xff]
    %v2269 = vld [vmem:[#allocation10 + $0x3c0] sm:$0xff]
    %v2270 = vld [vmem:[#allocation10 + $0x3c8] sm:$0xff]
    %v2271 = vld [vmem:[#allocation10 + $0x3d0] sm:$0xff]
    %v2272 = vld [vmem:[#allocation10 + $0x3d8] sm:$0xff]
    %v2273 = vld [vmem:[#allocation10 + $0x3e0] sm:$0xff]
    %v2274 = vld [vmem:[#allocation10 + $0x3e8] sm:$0xff]
    %v2275 = vld [vmem:[#allocation10 + $0x3f0] sm:$0xff]
    %v2276 = vld [vmem:[#allocation10 + $0x3f8] sm:$0xff]
    %v2277 = vld [vmem:[#allocation10 + $0x400] sm:$0xff]
    %v2278 = vld [vmem:[#allocation10 + $0x408] sm:$0xff]
    %v2279 = vld [vmem:[#allocation10 + $0x410] sm:$0xff]
    %v2280 = vld [vmem:[#allocation10 + $0x418] sm:$0xff]
    %v2281 = vld [vmem:[#allocation10 + $0x420] sm:$0xff]
    %v2282 = vld [vmem:[#allocation10 + $0x428] sm:$0xff]
    %v2283 = vld [vmem:[#allocation10 + $0x430] sm:$0xff]
    %v2284 = vld [vmem:[#allocation10 + $0x438] sm:$0xff]
    %v2285 = vld [vmem:[#allocation10 + $0x440] sm:$0xff]
    %v2286 = vld [vmem:[#allocation10 + $0x448] sm:$0xff]
    %v2287 = vld [vmem:[#allocation10 + $0x450] sm:$0xff]
    %v2288 = vld [vmem:[#allocation10 + $0x458] sm:$0xff]
    %v2289 = vld [vmem:[#allocation10 + $0x460] sm:$0xff]
    %v2290 = vld [vmem:[#allocation10 + $0x468] sm:$0xff]
    %v2291 = vld [vmem:[#allocation10 + $0x470] sm:$0xff]
    %v2292 = vld [vmem:[#allocation10 + $0x478] sm:$0xff]
    %v2293 = vld [vmem:[#allocation10 + $0x480] sm:$0xff]
    %v2294 = vld [vmem:[#allocation10 + $0x488] sm:$0xff]
    %v2295 = vld [vmem:[#allocation10 + $0x490] sm:$0xff]
    %v2296 = vld [vmem:[#allocation10 + $0x498] sm:$0xff]
    %v2297 = vld [vmem:[#allocation10 + $0x4a0] sm:$0xff]
    %v2298 = vld [vmem:[#allocation10 + $0x4a8] sm:$0xff]
    %v2299 = vld [vmem:[#allocation10 + $0x4b0] sm:$0xff]
    %v2300 = vld [vmem:[#allocation10 + $0x4b8] sm:$0xff]
    %v2301 = vld [vmem:[#allocation10 + $0x4c0] sm:$0xff]
    %v2302 = vld [vmem:[#allocation10 + $0x4c8] sm:$0xff]
    %v2303 = vld [vmem:[#allocation10 + $0x4d0] sm:$0xff]
    %v2304 = vld [vmem:[#allocation10 + $0x4d8] sm:$0xff]
    %v2305 = vld [vmem:[#allocation10 + $0x4e0] sm:$0xff]
    %v2306 = vld [vmem:[#allocation10 + $0x4e8] sm:$0xff]
    %v2307 = vld [vmem:[#allocation10 + $0x4f0] sm:$0xff]
    %v2308 = vld [vmem:[#allocation10 + $0x4f8] sm:$0xff]
    %v2309 = vld [vmem:[#allocation10 + $0x500] sm:$0xff]
    %v2310 = vld [vmem:[#allocation10 + $0x508] sm:$0xff]
    %v2311 = vld [vmem:[#allocation10 + $0x510] sm:$0xff]
    %v2312 = vld [vmem:[#allocation10 + $0x518] sm:$0xff]
    %v2313 = vld [vmem:[#allocation10 + $0x520] sm:$0xff]
    %v2314 = vld [vmem:[#allocation10 + $0x528] sm:$0xff]
    %v2315 = vld [vmem:[#allocation10 + $0x530] sm:$0xff]
    %v2316 = vld [vmem:[#allocation10 + $0x538] sm:$0xff]
    %v2317 = vld [vmem:[#allocation10 + $0x540] sm:$0xff]
    %v2318 = vld [vmem:[#allocation10 + $0x548] sm:$0xff]
    %v2319 = vld [vmem:[#allocation10 + $0x550] sm:$0xff]
    %v2320 = vld [vmem:[#allocation10 + $0x558] sm:$0xff]
    %v2321 = vld [vmem:[#allocation10 + $0x560] sm:$0xff]
    %v2322 = vld [vmem:[#allocation10 + $0x568] sm:$0xff]
    %v2323 = vld [vmem:[#allocation10 + $0x570] sm:$0xff]
    %v2324 = vld [vmem:[#allocation10 + $0x578] sm:$0xff]
    %v2325 = vld [vmem:[#allocation10 + $0x580] sm:$0xff]
    %v2326 = vld [vmem:[#allocation10 + $0x588] sm:$0xff]
    %v2327 = vld [vmem:[#allocation10 + $0x590] sm:$0xff]
    %v2328 = vld [vmem:[#allocation10 + $0x598] sm:$0xff]
    %v2329 = vld [vmem:[#allocation10 + $0x5a0] sm:$0xff]
    %v2330 = vld [vmem:[#allocation10 + $0x5a8] sm:$0xff]
    %v2331 = vld [vmem:[#allocation10 + $0x5b0] sm:$0xff]
    %v2332 = vld [vmem:[#allocation10 + $0x5b8] sm:$0xff]
    %v2333 = vld [vmem:[#allocation10 + $0x5c0] sm:$0xff]
    %v2334 = vld [vmem:[#allocation10 + $0x5c8] sm:$0xff]
    %v2335 = vld [vmem:[#allocation10 + $0x5d0] sm:$0xff]
    %v2336 = vld [vmem:[#allocation10 + $0x5d8] sm:$0xff]
    %v2337 = vld [vmem:[#allocation10 + $0x5e0] sm:$0xff]
    %v2338 = vld [vmem:[#allocation10 + $0x5e8] sm:$0xff]
    %v2339 = vld [vmem:[#allocation10 + $0x5f0] sm:$0xff]
    %v2340 = vld [vmem:[#allocation10 + $0x5f8] sm:$0xff]
    %v2341 = vld [vmem:[#allocation10 + $0x600] sm:$0xff]
    %v2342 = vld [vmem:[#allocation10 + $0x608] sm:$0xff]
    %v2343 = vld [vmem:[#allocation10 + $0x610] sm:$0xff]
    %v2344 = vld [vmem:[#allocation10 + $0x618] sm:$0xff]
    %v2345 = vld [vmem:[#allocation10 + $0x620] sm:$0xff]
    %v2346 = vld [vmem:[#allocation10 + $0x628] sm:$0xff]
    %v2347 = vld [vmem:[#allocation10 + $0x630] sm:$0xff]
    %v2348 = vld [vmem:[#allocation10 + $0x638] sm:$0xff]
    %v2349 = vld [vmem:[#allocation10 + $0x640] sm:$0xff]
    %v2350 = vld [vmem:[#allocation10 + $0x648] sm:$0xff]
    %v2351 = vld [vmem:[#allocation10 + $0x650] sm:$0xff]
    %v2352 = vld [vmem:[#allocation10 + $0x658] sm:$0xff]
    %v2353 = vld [vmem:[#allocation10 + $0x660] sm:$0xff]
    %v2354 = vld [vmem:[#allocation10 + $0x668] sm:$0xff]
    %v2355 = vld [vmem:[#allocation10 + $0x670] sm:$0xff]
    %v2356 = vld [vmem:[#allocation10 + $0x678] sm:$0xff]
    %v2357 = vld [vmem:[#allocation10 + $0x680] sm:$0xff]
    %v2358 = vld [vmem:[#allocation10 + $0x688] sm:$0xff]
    %v2359 = vld [vmem:[#allocation10 + $0x690] sm:$0xff]
    %v2360 = vld [vmem:[#allocation10 + $0x698] sm:$0xff]
    %v2361 = vld [vmem:[#allocation10 + $0x6a0] sm:$0xff]
    %v2362 = vld [vmem:[#allocation10 + $0x6a8] sm:$0xff]
    %v2363 = vld [vmem:[#allocation10 + $0x6b0] sm:$0xff]
    %v2364 = vld [vmem:[#allocation10 + $0x6b8] sm:$0xff]
    %v2365 = vld [vmem:[#allocation10 + $0x6c0] sm:$0xff]
    %v2366 = vld [vmem:[#allocation10 + $0x6c8] sm:$0xff]
    %v2367 = vld [vmem:[#allocation10 + $0x6d0] sm:$0xff]
    %v2368 = vld [vmem:[#allocation10 + $0x6d8] sm:$0xff]
    %v2369 = vld [vmem:[#allocation10 + $0x6e0] sm:$0xff]
    %v2370 = vld [vmem:[#allocation10 + $0x6e8] sm:$0xff]
    %v2371 = vld [vmem:[#allocation10 + $0x6f0] sm:$0xff]
    %v2372 = vld [vmem:[#allocation10 + $0x6f8] sm:$0xff]
    %v2373 = vld [vmem:[#allocation10 + $0x700] sm:$0xff]
    %v2374 = vld [vmem:[#allocation10 + $0x708] sm:$0xff]
    %v2375 = vld [vmem:[#allocation10 + $0x710] sm:$0xff]
    %v2376 = vld [vmem:[#allocation10 + $0x718] sm:$0xff]
    %v2377 = vld [vmem:[#allocation10 + $0x720] sm:$0xff]
    %v2378 = vld [vmem:[#allocation10 + $0x728] sm:$0xff]
    %v2379 = vld [vmem:[#allocation10 + $0x730] sm:$0xff]
    %v2380 = vld [vmem:[#allocation10 + $0x738] sm:$0xff]
    %v2381 = vld [vmem:[#allocation10 + $0x740] sm:$0xff]
    %v2382 = vld [vmem:[#allocation10 + $0x748] sm:$0xff]
    %v2383 = vld [vmem:[#allocation10 + $0x750] sm:$0xff]
    %v2384 = vld [vmem:[#allocation10 + $0x758] sm:$0xff]
    %v2385 = vld [vmem:[#allocation10 + $0x760] sm:$0xff]
    %v2386 = vld [vmem:[#allocation10 + $0x768] sm:$0xff]
    %v2387 = vld [vmem:[#allocation10 + $0x770] sm:$0xff]
    %v2388 = vld [vmem:[#allocation10 + $0x778] sm:$0xff]
    %v2389 = vld [vmem:[#allocation10 + $0x780] sm:$0xff]
    %v2390 = vld [vmem:[#allocation10 + $0x788] sm:$0xff]
    %v2391 = vld [vmem:[#allocation10 + $0x790] sm:$0xff]
    %v2392 = vld [vmem:[#allocation10 + $0x798] sm:$0xff]
    %v2393 = vld [vmem:[#allocation10 + $0x7a0] sm:$0xff]
    %v2394 = vld [vmem:[#allocation10 + $0x7a8] sm:$0xff]
    %v2395 = vld [vmem:[#allocation10 + $0x7b0] sm:$0xff]
    %v2396 = vld [vmem:[#allocation10 + $0x7b8] sm:$0xff]
    %v2397 = vld [vmem:[#allocation10 + $0x7c0] sm:$0xff]
    %v2398 = vld [vmem:[#allocation10 + $0x7c8] sm:$0xff]
    %v2399 = vld [vmem:[#allocation10 + $0x7d0] sm:$0xff]
    %v2400 = vld [vmem:[#allocation10 + $0x7d8] sm:$0xff]
    %v2401 = vld [vmem:[#allocation10 + $0x7e0] sm:$0xff]
    %v2402 = vld [vmem:[#allocation10 + $0x7e8] sm:$0xff]
    %v2403 = vld [vmem:[#allocation10 + $0x7f0] sm:$0xff]
    %v2404 = vld [vmem:[#allocation10 + $0x7f8] sm:$0xff]
    %v2405 = vld [vmem:[%s8] sm:$0xf]
    %v2407 = vlaneseq
    %v2408 = vshrl.u32 %v2407, 7
    %v2409 = vsub.s32 0, %v2408
    %v2410 = vrot.slane %v2405, %v2409
    %v2411 = vlaneseq
    %v2412 = vshrl.u32 %v2411, 7
    %v2413 = vsub.s32 1, %v2412
    %v2414 = vrot.slane %v2405, %v2413
    %v2415 = vlaneseq
    %v2416 = vshrl.u32 %v2415, 7
    %v2417 = vsub.s32 2, %v2416
    %v2418 = vrot.slane %v2405, %v2417
    %v2419 = vlaneseq
    %v2420 = vshrl.u32 %v2419, 7
    %v2421 = vsub.s32 3, %v2420
    %v2422 = vrot.slane %v2405, %v2421
    %2427 = vmatprep.subr.mxu0 %v2210
    %2428 = vmatpush1.msra.mxu0 %v2209
    %2429 = vmatprep.subr.mxu0 %v2206
    %2430 = vmatpush1.msra.mxu0 %v2205
    %2431 = vmatprep.subr.mxu0 %v2202
    %2432 = vmatpush1.msra.mxu0 %v2201
    %2433 = vmatprep.subr.mxu0 %v2198
    %2434 = vmatpush1.msra.mxu0 %v2197
    %2435 = vmatprep.subr.mxu0 %v2194
    %2436 = vmatpush1.msra.mxu0 %v2193
    %2437 = vmatprep.subr.mxu0 %v2190
    %2438 = vmatpush1.msra.mxu0 %v2189
    %2439 = vmatprep.subr.mxu0 %v2186
    %2440 = vmatpush1.msra.mxu0 %v2185
    %2441 = vmatprep.subr.mxu0 %v2182
    %2442 = vmatpush1.msra.mxu0 %v2181
    %2443 = vmatprep.subr.mxu0 %v2178
    %2444 = vmatpush1.msra.mxu0 %v2177
    %2445 = vmatprep.subr.mxu0 %v2174
    %2446 = vmatpush1.msra.mxu0 %v2173
    %2447 = vmatprep.subr.mxu0 %v2170
    %2448 = vmatpush1.msra.mxu0 %v2169
    %2449 = vmatprep.subr.mxu0 %v2166
    %2450 = vmatpush1.msra.mxu0 %v2165
    %2451 = vmatprep.subr.mxu0 %v2162
    %2452 = vmatpush1.msra.mxu0 %v2161
    %2453 = vmatprep.subr.mxu0 %v2158
    %2454 = vmatpush1.msra.mxu0 %v2157
    %2455 = vmatprep.subr.mxu0 %v2154
    %2456 = vmatpush1.msra.mxu0 %v2153
    %2457 = vmatprep.subr.mxu0 %v2150
    %2458 = vmatpush1.msra.mxu0 %v2149
    %2459 = vmatprep.subr.mxu0 %v2274
    %2460 = vmatpush2.msra.mxu0 %v2273
    %2461 = vmatprep.subr.mxu0 %v2270
    %2462 = vmatpush2.msra.mxu0 %v2269
    %2463 = vmatprep.subr.mxu0 %v2266
    %2464 = vmatpush2.msra.mxu0 %v2265
    %2465 = vmatprep.subr.mxu0 %v2262
    %2466 = vmatpush2.msra.mxu0 %v2261
    %2467 = vmatprep.subr.mxu0 %v2258
    %2468 = vmatpush2.msra.mxu0 %v2257
    %2469 = vmatprep.subr.mxu0 %v2254
    %2470 = vmatpush2.msra.mxu0 %v2253
    %2471 = vmatprep.subr.mxu0 %v2250
    %2472 = vmatpush2.msra.mxu0 %v2249
    %2473 = vmatprep.subr.mxu0 %v2246
    %2474 = vmatpush2.msra.mxu0 %v2245
    %2475 = vmatprep.subr.mxu0 %v2242
    %2476 = vmatpush2.msra.mxu0 %v2241
    %2477 = vmatprep.subr.mxu0 %v2238
    %2478 = vmatpush2.msra.mxu0 %v2237
    %2479 = vmatprep.subr.mxu0 %v2234
    %2480 = vmatpush2.msra.mxu0 %v2233
    %2481 = vmatprep.subr.mxu0 %v2230
    %2482 = vmatpush2.msra.mxu0 %v2229
    %2483 = vmatprep.subr.mxu0 %v2226
    %2484 = vmatpush2.msra.mxu0 %v2225
    %2485 = vmatprep.subr.mxu0 %v2222
    %2486 = vmatpush2.msra.mxu0 %v2221
    %2487 = vmatprep.subr.mxu0 %v2218
    %2488 = vmatpush2.msra.mxu0 %v2217
    %2489 = vmatprep.subr.mxu0 %v2214
    %2490 = vmatpush2.msra.mxu0 %v2213
    %2491 = vmatprep.mubr.f32.mxu0 %v2134
    %2492 = vmatmul.mubr.f32.gmra.mxu0 %v2133
    %v2493 = vpop.f32.mrf.mxu0
    %v2494 = vadd.f32 %v2410, %v2493
    %v2495 = vpop.f32.mrf.mxu0
    %v2496 = vadd.f32 %v2414, %v2495
    %2497 = vmatprep.mubr.f32.mxu0 %v2138
    %2498 = vmatmul.mubr.f32.gmra.mxu0 %v2137
    %v2499 = vpop.f32.mrf.mxu0
    %v2500 = vadd.f32 %v2410, %v2499
    %v2501 = vpop.f32.mrf.mxu0
    %v2502 = vadd.f32 %v2414, %v2501
    %2503 = vmatprep.mubr.f32.mxu0 %v2142
    %2504 = vmatmul.mubr.f32.gmra.mxu0 %v2141
    %v2505 = vpop.f32.mrf.mxu0
    %v2506 = vadd.f32 %v2410, %v2505
    %v2507 = vpop.f32.mrf.mxu0
    %v2508 = vadd.f32 %v2414, %v2507
    %2509 = vmatprep.mubr.f32.mxu0 %v2146
    %2510 = vmatmul.mubr.f32.gmra.mxu0 %v2145
    %v2511 = vpop.f32.mrf.mxu0
    %v2512 = vadd.f32 %v2410, %v2511
    %v2513 = vpop.f32.mrf.mxu0
    %v2514 = vadd.f32 %v2414, %v2513
    %2515 = vdwg.mxu0
    %2516 = vmatprep.subr.mxu0 %v2338
    %2517 = vmatpush1.msra.mxu0 %v2337
    %2518 = vmatprep.subr.mxu0 %v2334
    %2519 = vmatpush1.msra.mxu0 %v2333
    %2520 = vmatprep.subr.mxu0 %v2330
    %2521 = vmatpush1.msra.mxu0 %v2329
    %2522 = vmatprep.subr.mxu0 %v2326
    %2523 = vmatpush1.msra.mxu0 %v2325
    %2524 = vmatprep.subr.mxu0 %v2322
    %2525 = vmatpush1.msra.mxu0 %v2321
    %2526 = vmatprep.subr.mxu0 %v2318
    %2527 = vmatpush1.msra.mxu0 %v2317
    %2528 = vmatprep.subr.mxu0 %v2314
    %2529 = vmatpush1.msra.mxu0 %v2313
    %2530 = vmatprep.subr.mxu0 %v2310
    %2531 = vmatpush1.msra.mxu0 %v2309
    %2532 = vmatprep.subr.mxu0 %v2306
    %2533 = vmatpush1.msra.mxu0 %v2305
    %2534 = vmatprep.subr.mxu0 %v2302
    %2535 = vmatpush1.msra.mxu0 %v2301
    %2536 = vmatprep.subr.mxu0 %v2298
    %2537 = vmatpush1.msra.mxu0 %v2297
    %2538 = vmatprep.subr.mxu0 %v2294
    %2539 = vmatpush1.msra.mxu0 %v2293
    %2540 = vmatprep.subr.mxu0 %v2290
    %2541 = vmatpush1.msra.mxu0 %v2289
    %2542 = vmatprep.subr.mxu0 %v2286
    %2543 = vmatpush1.msra.mxu0 %v2285
    %2544 = vmatprep.subr.mxu0 %v2282
    %2545 = vmatpush1.msra.mxu0 %v2281
    %2546 = vmatprep.subr.mxu0 %v2278
    %2547 = vmatpush1.msra.mxu0 %v2277
    %2548 = vmatprep.subr.mxu0 %v2402
    %2549 = vmatpush2.msra.mxu0 %v2401
    %2550 = vmatprep.subr.mxu0 %v2398
    %2551 = vmatpush2.msra.mxu0 %v2397
    %2552 = vmatprep.subr.mxu0 %v2394
    %2553 = vmatpush2.msra.mxu0 %v2393
    %2554 = vmatprep.subr.mxu0 %v2390
    %2555 = vmatpush2.msra.mxu0 %v2389
    %2556 = vmatprep.subr.mxu0 %v2386
    %2557 = vmatpush2.msra.mxu0 %v2385
    %2558 = vmatprep.subr.mxu0 %v2382
    %2559 = vmatpush2.msra.mxu0 %v2381
    %2560 = vmatprep.subr.mxu0 %v2378
    %2561 = vmatpush2.msra.mxu0 %v2377
    %2562 = vmatprep.subr.mxu0 %v2374
    %2563 = vmatpush2.msra.mxu0 %v2373
    %2564 = vmatprep.subr.mxu0 %v2370
    %2565 = vmatpush2.msra.mxu0 %v2369
    %2566 = vmatprep.subr.mxu0 %v2366
    %2567 = vmatpush2.msra.mxu0 %v2365
    %2568 = vmatprep.subr.mxu0 %v2362
    %2569 = vmatpush2.msra.mxu0 %v2361
    %2570 = vmatprep.subr.mxu0 %v2358
    %2571 = vmatpush2.msra.mxu0 %v2357
    %2572 = vmatprep.subr.mxu0 %v2354
    %2573 = vmatpush2.msra.mxu0 %v2353
    %2574 = vmatprep.subr.mxu0 %v2350
    %2575 = vmatpush2.msra.mxu0 %v2349
    %2576 = vmatprep.subr.mxu0 %v2346
    %2577 = vmatpush2.msra.mxu0 %v2345
    %2578 = vmatprep.subr.mxu0 %v2342
    %2579 = vmatpush2.msra.mxu0 %v2341
    %2580 = vmatprep.mubr.f32.mxu0 %v2136
    %2581 = vmatmul.mubr.f32.gmra.mxu0 %v2135
    %v2582 = vpop.f32.mrf.mxu0
    %v2583 = vadd.f32 %v2494, %v2582
    %v2584 = vpop.f32.mrf.mxu0
    %v2585 = vadd.f32 %v2496, %v2584
    %2586 = vmatprep.mubr.f32.mxu0 %v2140
    %2587 = vmatmul.mubr.f32.gmra.mxu0 %v2139
    %v2588 = vpop.f32.mrf.mxu0
    %v2589 = vadd.f32 %v2500, %v2588
    %v2590 = vpop.f32.mrf.mxu0
    %v2591 = vadd.f32 %v2502, %v2590
    %2592 = vmatprep.mubr.f32.mxu0 %v2144
    %2593 = vmatmul.mubr.f32.gmra.mxu0 %v2143
    %v2594 = vpop.f32.mrf.mxu0
    %v2595 = vadd.f32 %v2506, %v2594
    %v2596 = vpop.f32.mrf.mxu0
    %v2597 = vadd.f32 %v2508, %v2596
    %2598 = vmatprep.mubr.f32.mxu0 %v2148
    %2599 = vmatmul.mubr.f32.gmra.mxu0 %v2147
    %v2600 = vpop.f32.mrf.mxu0
    %v2601 = vadd.f32 %v2512, %v2600
    %v2602 = vpop.f32.mrf.mxu0
    %v2603 = vadd.f32 %v2514, %v2602
    %2604 = vdwg.mxu0
    %2605 = vmatprep.subr.mxu0 %v2212
    %2606 = vmatpush1.msra.mxu0 %v2211
    %2607 = vmatprep.subr.mxu0 %v2208
    %2608 = vmatpush1.msra.mxu0 %v2207
    %2609 = vmatprep.subr.mxu0 %v2204
    %2610 = vmatpush1.msra.mxu0 %v2203
    %2611 = vmatprep.subr.mxu0 %v2200
    %2612 = vmatpush1.msra.mxu0 %v2199
    %2613 = vmatprep.subr.mxu0 %v2196
    %2614 = vmatpush1.msra.mxu0 %v2195
    %2615 = vmatprep.subr.mxu0 %v2192
    %2616 = vmatpush1.msra.mxu0 %v2191
    %2617 = vmatprep.subr.mxu0 %v2188
    %2618 = vmatpush1.msra.mxu0 %v2187
    %2619 = vmatprep.subr.mxu0 %v2184
    %2620 = vmatpush1.msra.mxu0 %v2183
    %2621 = vmatprep.subr.mxu0 %v2180
    %2622 = vmatpush1.msra.mxu0 %v2179
    %2623 = vmatprep.subr.mxu0 %v2176
    %2624 = vmatpush1.msra.mxu0 %v2175
    %2625 = vmatprep.subr.mxu0 %v2172
    %2626 = vmatpush1.msra.mxu0 %v2171
    %2627 = vmatprep.subr.mxu0 %v2168
    %2628 = vmatpush1.msra.mxu0 %v2167
    %2629 = vmatprep.subr.mxu0 %v2164
    %2630 = vmatpush1.msra.mxu0 %v2163
    %2631 = vmatprep.subr.mxu0 %v2160
    %2632 = vmatpush1.msra.mxu0 %v2159
    %2633 = vmatprep.subr.mxu0 %v2156
    %2634 = vmatpush1.msra.mxu0 %v2155
    %2635 = vmatprep.subr.mxu0 %v2152
    %2636 = vmatpush1.msra.mxu0 %v2151
    %2637 = vmatprep.subr.mxu0 %v2276
    %2638 = vmatpush2.msra.mxu0 %v2275
    %2639 = vmatprep.subr.mxu0 %v2272
    %2640 = vmatpush2.msra.mxu0 %v2271
    %2641 = vmatprep.subr.mxu0 %v2268
    %2642 = vmatpush2.msra.mxu0 %v2267
    %2643 = vmatprep.subr.mxu0 %v2264
    %2644 = vmatpush2.msra.mxu0 %v2263
    %2645 = vmatprep.subr.mxu0 %v2260
    %2646 = vmatpush2.msra.mxu0 %v2259
    %2647 = vmatprep.subr.mxu0 %v2256
    %2648 = vmatpush2.msra.mxu0 %v2255
    %2649 = vmatprep.subr.mxu0 %v2252
    %2650 = vmatpush2.msra.mxu0 %v2251
    %2651 = vmatprep.subr.mxu0 %v2248
    %2652 = vmatpush2.msra.mxu0 %v2247
    %2653 = vmatprep.subr.mxu0 %v2244
    %2654 = vmatpush2.msra.mxu0 %v2243
    %2655 = vmatprep.subr.mxu0 %v2240
    %2656 = vmatpush2.msra.mxu0 %v2239
    %2657 = vmatprep.subr.mxu0 %v2236
    %2658 = vmatpush2.msra.mxu0 %v2235
    %2659 = vmatprep.subr.mxu0 %v2232
    %2660 = vmatpush2.msra.mxu0 %v2231
    %2661 = vmatprep.subr.mxu0 %v2228
    %2662 = vmatpush2.msra.mxu0 %v2227
    %2663 = vmatprep.subr.mxu0 %v2224
    %2664 = vmatpush2.msra.mxu0 %v2223
    %2665 = vmatprep.subr.mxu0 %v2220
    %2666 = vmatpush2.msra.mxu0 %v2219
    %2667 = vmatprep.subr.mxu0 %v2216
    %2668 = vmatpush2.msra.mxu0 %v2215
    %2669 = vmatprep.mubr.f32.mxu0 %v2134
    %2670 = vmatmul.mubr.f32.gmra.mxu0 %v2133
    %v2671 = vpop.f32.mrf.mxu0
    %v2672 = vadd.f32 %v2418, %v2671
    %v2673 = vpop.f32.mrf.mxu0
    %v2674 = vadd.f32 %v2422, %v2673
    %2675 = vmatprep.mubr.f32.mxu0 %v2138
    %2676 = vmatmul.mubr.f32.gmra.mxu0 %v2137
    %v2677 = vpop.f32.mrf.mxu0
    %v2678 = vadd.f32 %v2418, %v2677
    %v2679 = vpop.f32.mrf.mxu0
    %v2680 = vadd.f32 %v2422, %v2679
    %2681 = vmatprep.mubr.f32.mxu0 %v2142
    %2682 = vmatmul.mubr.f32.gmra.mxu0 %v2141
    %v2683 = vpop.f32.mrf.mxu0
    %v2684 = vadd.f32 %v2418, %v2683
    %v2685 = vpop.f32.mrf.mxu0
    %v2686 = vadd.f32 %v2422, %v2685
    %2687 = vmatprep.mubr.f32.mxu0 %v2146
    %2688 = vmatmul.mubr.f32.gmra.mxu0 %v2145
    %v2689 = vpop.f32.mrf.mxu0
    %v2690 = vadd.f32 %v2418, %v2689
    %v2691 = vpop.f32.mrf.mxu0
    %v2692 = vadd.f32 %v2422, %v2691
    %2693 = vdwg.mxu0
    %2694 = vmatprep.subr.mxu0 %v2340
    %2695 = vmatpush1.msra.mxu0 %v2339
    %2696 = vmatprep.subr.mxu0 %v2336
    %2697 = vmatpush1.msra.mxu0 %v2335
    %2698 = vmatprep.subr.mxu0 %v2332
    %2699 = vmatpush1.msra.mxu0 %v2331
    %2700 = vmatprep.subr.mxu0 %v2328
    %2701 = vmatpush1.msra.mxu0 %v2327
    %2702 = vmatprep.subr.mxu0 %v2324
    %2703 = vmatpush1.msra.mxu0 %v2323
    %2704 = vmatprep.subr.mxu0 %v2320
    %2705 = vmatpush1.msra.mxu0 %v2319
    %2706 = vmatprep.subr.mxu0 %v2316
    %2707 = vmatpush1.msra.mxu0 %v2315
    %2708 = vmatprep.subr.mxu0 %v2312
    %2709 = vmatpush1.msra.mxu0 %v2311
    %2710 = vmatprep.subr.mxu0 %v2308
    %2711 = vmatpush1.msra.mxu0 %v2307
    %2712 = vmatprep.subr.mxu0 %v2304
    %2713 = vmatpush1.msra.mxu0 %v2303
    %2714 = vmatprep.subr.mxu0 %v2300
    %2715 = vmatpush1.msra.mxu0 %v2299
    %2716 = vmatprep.subr.mxu0 %v2296
    %2717 = vmatpush1.msra.mxu0 %v2295
    %2718 = vmatprep.subr.mxu0 %v2292
    %2719 = vmatpush1.msra.mxu0 %v2291
    %2720 = vmatprep.subr.mxu0 %v2288
    %2721 = vmatpush1.msra.mxu0 %v2287
    %2722 = vmatprep.subr.mxu0 %v2284
    %2723 = vmatpush1.msra.mxu0 %v2283
    %2724 = vmatprep.subr.mxu0 %v2280
    %2725 = vmatpush1.msra.mxu0 %v2279
    %2726 = vmatprep.subr.mxu0 %v2404
    %2727 = vmatpush2.msra.mxu0 %v2403
    %2728 = vmatprep.subr.mxu0 %v2400
    %2729 = vmatpush2.msra.mxu0 %v2399
    %2730 = vmatprep.subr.mxu0 %v2396
    %2731 = vmatpush2.msra.mxu0 %v2395
    %2732 = vmatprep.subr.mxu0 %v2392
    %2733 = vmatpush2.msra.mxu0 %v2391
    %2734 = vmatprep.subr.mxu0 %v2388
    %2735 = vmatpush2.msra.mxu0 %v2387
    %2736 = vmatprep.subr.mxu0 %v2384
    %2737 = vmatpush2.msra.mxu0 %v2383
    %2738 = vmatprep.subr.mxu0 %v2380
    %2739 = vmatpush2.msra.mxu0 %v2379
    %2740 = vmatprep.subr.mxu0 %v2376
    %2741 = vmatpush2.msra.mxu0 %v2375
    %2742 = vmatprep.subr.mxu0 %v2372
    %2743 = vmatpush2.msra.mxu0 %v2371
    %2744 = vmatprep.subr.mxu0 %v2368
    %2745 = vmatpush2.msra.mxu0 %v2367
    %2746 = vmatprep.subr.mxu0 %v2364
    %2747 = vmatpush2.msra.mxu0 %v2363
    %2748 = vmatprep.subr.mxu0 %v2360
    %2749 = vmatpush2.msra.mxu0 %v2359
    %2750 = vmatprep.subr.mxu0 %v2356
    %2751 = vmatpush2.msra.mxu0 %v2355
    %2752 = vmatprep.subr.mxu0 %v2352
    %2753 = vmatpush2.msra.mxu0 %v2351
    %2754 = vmatprep.subr.mxu0 %v2348
    %2755 = vmatpush2.msra.mxu0 %v2347
    %2756 = vmatprep.subr.mxu0 %v2344
    %2757 = vmatpush2.msra.mxu0 %v2343
    %2758 = vmatprep.mubr.f32.mxu0 %v2136
    %2759 = vmatmul.mubr.f32.gmra.mxu0 %v2135
    %v2760 = vpop.f32.mrf.mxu0
    %v2761 = vadd.f32 %v2672, %v2760
    %v2762 = vpop.f32.mrf.mxu0
    %v2763 = vadd.f32 %v2674, %v2762
    %2764 = vmatprep.mubr.f32.mxu0 %v2140
    %2765 = vmatmul.mubr.f32.gmra.mxu0 %v2139
    %v2766 = vpop.f32.mrf.mxu0
    %v2767 = vadd.f32 %v2678, %v2766
    %v2768 = vpop.f32.mrf.mxu0
    %v2769 = vadd.f32 %v2680, %v2768
    %2770 = vmatprep.mubr.f32.mxu0 %v2144
    %2771 = vmatmul.mubr.f32.gmra.mxu0 %v2143
    %v2772 = vpop.f32.mrf.mxu0
    %v2773 = vadd.f32 %v2684, %v2772
    %v2774 = vpop.f32.mrf.mxu0
    %v2775 = vadd.f32 %v2686, %v2774
    %2776 = vmatprep.mubr.f32.mxu0 %v2148
    %2777 = vmatmul.mubr.f32.gmra.mxu0 %v2147
    %v2778 = vpop.f32.mrf.mxu0
    %v2779 = vadd.f32 %v2690, %v2778
    %v2780 = vpop.f32.mrf.mxu0
    %v2781 = vadd.f32 %v2692, %v2780
    %2782 = vdwg.mxu0
    %2783 = vst [vmem:[#allocation11] sm:$0xff] %v2583
    %2784 = vst [vmem:[#allocation11 + $0x8] sm:$0xff] %v2585
    %2785 = vst [vmem:[#allocation11 + $0x10] sm:$0xff] %v2761
    %2786 = vst [vmem:[#allocation11 + $0x18] sm:$0xff] %v2763
    %2787 = vst [vmem:[#allocation11 + $0x20] sm:$0xff] %v2589
    %2788 = vst [vmem:[#allocation11 + $0x28] sm:$0xff] %v2591
    %2789 = vst [vmem:[#allocation11 + $0x30] sm:$0xff] %v2767
    %2790 = vst [vmem:[#allocation11 + $0x38] sm:$0xff] %v2769
    %2791 = vst [vmem:[#allocation11 + $0x40] sm:$0xff] %v2595
    %2792 = vst [vmem:[#allocation11 + $0x48] sm:$0xff] %v2597
    %2793 = vst [vmem:[#allocation11 + $0x50] sm:$0xff] %v2773
    %2794 = vst [vmem:[#allocation11 + $0x58] sm:$0xff] %v2775
    %2795 = vst [vmem:[#allocation11 + $0x60] sm:$0xff] %v2601
    %2796 = vst [vmem:[#allocation11 + $0x68] sm:$0xff] %v2603
    %2797 = vst [vmem:[#allocation11 + $0x70] sm:$0xff] %v2779
    %2798 = vst [vmem:[#allocation11 + $0x78] sm:$0xff] %v2781
    // Predicated region
    $region58: #{tpu_custom_call.1} parent=1 // pred_check
      _
    $region59: #{tpu_custom_call.1} parent=1 // pred_check_branch
      %2800 = sbr.rel (0) target = $region61
    $region60: #{tpu_custom_call.1} parent=1 // pred_region
      %s2802 = ssub.s32 2048, 2048
      %2803 = vsyncadd [#allocation4], %s2802
      %s2804 = sshll.u32 [#allocation11], 4
      %s2805 = int_to_ptr.vmem [resolvable:$true] %s2804
      %2810 = dma.vmem_to_hbm [thread:$0]  %s2805, 2048, %s9, [#allocation4], 512, 512, 32
    $region61: #{tpu_custom_call.1} parent=1 // pred_fallthru
      _
    // Predicated region
    $region62: #{tpu_custom_call.1} parent=1 // pred_check
      _
    $region63: #{tpu_custom_call.1} parent=1 // pred_check_branch
      %2812 = sbr.rel (0) target = $region65
    $region64: #{tpu_custom_call.1} parent=1 // pred_region
      %2813 = dma.done [#allocation4], 2048
    $region65: #{tpu_custom_call.1} parent=1 // pred_fallthru
      _
    %2814 = vsyncpa [#allocation3], 1
    %2815 = vsyncpa [#allocation6], 1
    %2816 = vsyncpa [#allocation9], 1
    %2817 = vsyncpa [#allocation4], 1

</llo_original>
